<compile_context>
chip_gen: v7x
topology: tpu7x:2x2x1
jax: 0.10.0
libtpu: 0.0.40
codegen_flags: <defaults>
</compile_context>

<pallas_src>
import jax
import jax.numpy as jnp
from jax import lax
from jax.experimental import pallas as pl
from jax.experimental.pallas import tpu as pltpu

FC_OUT_DIM = 16        # fc_out_dim
LSTM_OUT_DIM = 32      # lstm_out_dim
BIDIRECTIONAL = True   # bidirecional_lstm
NUM_LAYERS = 1         # num_of_layers
B_BLK = 8              # batch rows per grid step (f32 sublane tile)
# TODO(synk): apply_pepmass branch (fcPepmass1/2 + pepmassCombination) not
# implemented; it is disabled by default in the reference module config.


def _mse_embedding_kernel(inp_ref, lens_ref,
                          w1_ref, b1_ref, w2_ref, b2_ref,
                          wih_ref, bg_ref, whh_ref,
                          wfus_ref, bfus_ref,
                          out_ref, gates_ref):
    """One batch block. inp_ref: [L*Bb, 2] time-major rows (row = t*Bb + b),
    lens_ref: [Bb, 1] int32, out_ref: [Bb, H]. gates_ref: [L*Bb, 8H] scratch."""
    LB = inp_ref.shape[0]
    Bb = lens_ref.shape[0]
    L = LB // Bb
    H = wfus_ref.shape[1]          # lstm_out_dim
    G = 4 * H                      # per-direction gate width (128)

    # ---- Stage 1: fused feature MLPs + hoisted LSTM input projection --------
    # Three lane-dense MXU passes over the whole time-major activation:
    #   h1 = relu(x @ blockdiag-ish(wmz1, wit1))          [L*Bb, 64]
    #   tr = relu(h1 @ blockdiag(wmz2, wit2))             [L*Bb, 2F]
    #   gates_in = tr @ [wih_f | wih_b] + [b_f | b_b]     [L*Bb, 8H] (256 lanes)
    x = inp_ref[...]
    h1 = jnp.maximum(
        jnp.dot(x, w1_ref[...], preferred_element_type=jnp.float32) + b1_ref[...], 0.0)
    tr = jnp.maximum(
        jnp.dot(h1, w2_ref[...], preferred_element_type=jnp.float32) + b2_ref[...], 0.0)
    gates_ref[...] = (jnp.dot(tr, wih_ref[...], preferred_element_type=jnp.float32)
                      + bg_ref[...])

    # ---- Stage 2: bidirectional LSTM recurrence (both directions fused) -----
    lens = lens_ref[...]                                   # [Bb, 1] int32
    whh = whh_ref[...]                                     # [H, 8H]
    whh_f = whh[:, :G]
    whh_b = whh[:, G:]

    def cell(pre, h, c):
        i_g = jax.nn.sigmoid(pre[:, 0 * H:1 * H])
        f_g = jax.nn.sigmoid(pre[:, 1 * H:2 * H])
        g_g = jnp.tanh(pre[:, 2 * H:3 * H])
        o_g = jax.nn.sigmoid(pre[:, 3 * H:4 * H])
        c_new = f_g * c + i_g * g_g
        h_new = o_g * jnp.tanh(c_new)
        return h_new, c_new

    def step(i, carry):
        h_f, c_f, h_b, c_b = carry
        t_f = i
        t_b = L - 1 - i
        row_f = pl.multiple_of(t_f * Bb, Bb)
        row_b = pl.multiple_of(t_b * Bb, Bb)
        g_f = gates_ref[pl.ds(row_f, Bb), :]               # [Bb, 8H] aligned load
        g_b = gates_ref[pl.ds(row_b, Bb), :]
        pre_f = g_f[:, :G] + jnp.dot(h_f, whh_f, preferred_element_type=jnp.float32)
        pre_b = g_b[:, G:] + jnp.dot(h_b, whh_b, preferred_element_type=jnp.float32)
        h_f_new, c_f_new = cell(pre_f, h_f, c_f)
        h_b_new, c_b_new = cell(pre_b, h_b, c_b)
        # pack_padded_sequence semantics: state stops updating at t >= len.
        v_f = lens > t_f
        v_b = lens > t_b
        return (jnp.where(v_f, h_f_new, h_f), jnp.where(v_f, c_f_new, c_f),
                jnp.where(v_b, h_b_new, h_b), jnp.where(v_b, c_b_new, c_b))

    z = jnp.zeros((Bb, H), jnp.float32)
    _, c_fwd, _, c_bwd = lax.fori_loop(0, L, step, (z, z, z, z), unroll=True)

    # ---- Stage 3: fusion Linear + ReLU (split weight, no concatenate) -------
    fused = (jnp.dot(c_fwd, wfus_ref[:H, :], preferred_element_type=jnp.float32)
             + jnp.dot(c_bwd, wfus_ref[H:, :], preferred_element_type=jnp.float32)
             + bfus_ref[...])
    out_ref[...] = jnp.maximum(fused, 0.0)


# --------------------------- parameters ------------------------------------

def init_params(key, fc_out_dim=FC_OUT_DIM, lstm_out_dim=LSTM_OUT_DIM):
    """PyTorch-style uniform(-1/sqrt(fan_in)) init, weights stored as [in, out]."""
    def linear(k, fan_in, fan_out):
        bound = 1.0 / (fan_in ** 0.5)
        kw, kb = jax.random.split(k)
        w = jax.random.uniform(kw, (fan_in, fan_out), jnp.float32, -bound, bound)
        b = jax.random.uniform(kb, (1, fan_out), jnp.float32, -bound, bound)
        return w, b

    def lstm_dir(k):
        bound = 1.0 / (lstm_out_dim ** 0.5)
        k1, k2, k3, k4 = jax.random.split(k, 4)
        wih = jax.random.uniform(k1, (2 * fc_out_dim, 4 * lstm_out_dim), jnp.float32, -bound, bound)
        whh = jax.random.uniform(k2, (lstm_out_dim, 4 * lstm_out_dim), jnp.float32, -bound, bound)
        b_ih = jax.random.uniform(k3, (1, 4 * lstm_out_dim), jnp.float32, -bound, bound)
        b_hh = jax.random.uniform(k4, (1, 4 * lstm_out_dim), jnp.float32, -bound, bound)
        return wih, whh, b_ih + b_hh

    keys = jax.random.split(key, 7)
    p = {}
    p['wmz1'], p['bmz1'] = linear(keys[0], 1, 32)
    p['wmz2'], p['bmz2'] = linear(keys[1], 32, fc_out_dim)
    p['wit1'], p['bit1'] = linear(keys[2], 1, 32)
    p['wit2'], p['bit2'] = linear(keys[3], 32, fc_out_dim)
    p['wih_f'], p['whh_f'], p['b_f'] = lstm_dir(keys[4])
    p['wih_b'], p['whh_b'], p['b_b'] = lstm_dir(keys[5])
    p['wfus'], p['bfus'] = linear(keys[6], 2 * lstm_out_dim, lstm_out_dim)
    return p


def pack_params(p):
    """Consolidate the 16 per-layer tensors into 9 fused kernel arrays."""
    hid1 = p['wmz1'].shape[1]        # 32
    F = p['wmz2'].shape[1]           # fc_out_dim

    # layer 1 of both MLPs: [2, 64] "2x2 block" matrix (zeros off-block).
    w1 = jnp.zeros((2, 2 * hid1), jnp.float32)
    w1 = w1.at[0, :hid1].set(p['wmz1'][0])
    w1 = w1.at[1, hid1:].set(p['wit1'][0])
    b1 = jnp.concatenate([p['bmz1'], p['bit1']], axis=1)            # [1, 64]

    # layer 2: block-diagonal [64, 2F].
    w2 = jnp.zeros((2 * hid1, 2 * F), jnp.float32)
    w2 = w2.at[:hid1, :F].set(p['wmz2'])
    w2 = w2.at[hid1:, F:].set(p['wit2'])
    b2 = jnp.concatenate([p['bmz2'], p['bit2']], axis=1)            # [1, 2F]

    wih = jnp.concatenate([p['wih_f'], p['wih_b']], axis=1)         # [2F, 8H]
    bg = jnp.concatenate([p['b_f'], p['b_b']], axis=1)              # [1, 8H]
    whh = jnp.concatenate([p['whh_f'], p['whh_b']], axis=1)         # [H, 8H]
    return dict(w1=w1, b1=b1, w2=w2, b2=b2, wih=wih, bg=bg, whh=whh,
                wfus=p['wfus'], bfus=p['bfus'])


PACKED_ORDER = ['w1', 'b1', 'w2', 'b2', 'wih', 'bg', 'whh', 'wfus', 'bfus']


# --------------------------- wrapper ----------------------------------------

def ms_embedding_forward(peaks, peaks_len, params, *, b_blk=B_BLK):
    """peaks: [B, L, 2] (m/z, intensity), peaks_len: [B] int -> embedding [B, H]."""
    B, L, _ = peaks.shape
    packed = pack_params(params)
    H = packed['wfus'].shape[1]
    G2 = packed['wih'].shape[1]      # 8H

    # Pad batch to a multiple of the block size (padded rows get len=0; their
    # LSTM state stays zero and the rows are sliced off at the end).
    Bp = ((B + b_blk - 1) // b_blk) * b_blk
    if Bp != B:
        peaks = jnp.pad(peaks, ((0, Bp - B), (0, 0), (0, 0)))
        peaks_len = jnp.pad(peaks_len, (0, Bp - B))
    nblk = Bp // b_blk

    # Glue (plain JAX): pack m/z + intensity as one array, time-major within
    # each batch block: row index = (block, t, b_in_block).
    inp = (peaks.astype(jnp.float32)
                .reshape(nblk, b_blk, L, 2)
                .transpose(0, 2, 1, 3)
                .reshape(nblk * L * b_blk, 2))
    lens = peaks_len.astype(jnp.int32).reshape(Bp, 1)

    def full_spec(arr):
        return pl.BlockSpec(arr.shape, lambda i: (0,) * arr.ndim)

    args = [inp, lens] + [packed[k] for k in PACKED_ORDER]
    in_specs = ([pl.BlockSpec((L * b_blk, 2), lambda i: (i, 0)),
                 pl.BlockSpec((b_blk, 1), lambda i: (i, 0))]
                + [full_spec(packed[k]) for k in PACKED_ORDER])

    out = pl.pallas_call(
        _mse_embedding_kernel,
        out_shape=jax.ShapeDtypeStruct((Bp, H), jnp.float32),
        grid=(nblk,),
        in_specs=in_specs,
        out_specs=pl.BlockSpec((b_blk, H), lambda i: (i, 0)),
        scratch_shapes=[pltpu.VMEM((L * b_blk, G2), jnp.float32)],
        compiler_params=pltpu.CompilerParams(
            dimension_semantics=("parallel",)),
    )(*args)
    return out[:B]


# --------------------------- pure-JAX reference ------------------------------

def ms_embedding_reference(peaks, peaks_len, params):
    """Mirrors the PyTorch forward (uses the raw, unpacked parameters)."""
    B, L, _ = peaks.shape
    H = params['whh_f'].shape[0]

    def mlp(x, w1, b1, w2, b2):
        h = jax.nn.relu(x @ w1 + b1)
        return jax.nn.relu(h @ w2 + b2)

    fmz = mlp(peaks[:, :, 0:1], params['wmz1'], params['bmz1'], params['wmz2'], params['bmz2'])
    fit = mlp(peaks[:, :, 1:2], params['wit1'], params['bit1'], params['wit2'], params['bit2'])
    transform = jnp.concatenate([fmz, fit], axis=-1)                 # [B, L, 2F]

    def run_dir(wih, whh, bias, reverse):
        def step(carry, t):
            h, c = carry
            x_t = transform[:, t, :]
            gates = x_t @ wih + h @ whh + bias
            i_g = jax.nn.sigmoid(gates[:, :H])
            f_g = jax.nn.sigmoid(gates[:, H:2 * H])
            g_g = jnp.tanh(gates[:, 2 * H:3 * H])
            o_g = jax.nn.sigmoid(gates[:, 3 * H:])
            c_new = f_g * c + i_g * g_g
            h_new = o_g * jnp.tanh(c_new)
            valid = peaks_len[:, None] > t
            return (jnp.where(valid, h_new, h), jnp.where(valid, c_new, c)), None

        ts = jnp.arange(L)[::-1] if reverse else jnp.arange(L)
        (h, c), _ = lax.scan(step, (jnp.zeros((B, H)), jnp.zeros((B, H))), ts)
        return c

    c_f = run_dir(params['wih_f'], params['whh_f'], params['b_f'], False)
    c_b = run_dir(params['wih_b'], params['whh_b'], params['b_b'], True)
    cat = jnp.concatenate([c_f, c_b], axis=1)
    return jax.nn.relu(cat @ params['wfus'] + params['bfus'])


if __name__ == "__main__":
    key = jax.random.PRNGKey(0)
    kp, kx = jax.random.split(key)

    B, L = 8, 16
    params = init_params(kp)

    peaks = jax.random.uniform(kx, (B, L, 2), jnp.float32)
    peaks_len = jnp.array([16, 9, 4, 12, 16, 1, 7, 10], dtype=jnp.int32)
    # Zero padded positions like a real padded batch (does not affect output).
    pad_mask = (jnp.arange(L)[None, :] < peaks_len[:, None])[..., None]
    peaks = peaks * pad_mask

    out = jax.block_until_ready(ms_embedding_forward(peaks, peaks_len, params))
    ref = ms_embedding_reference(peaks, peaks_len, params)

    assert out.shape == (B, LSTM_OUT_DIM), out.shape
    err = float(jnp.max(jnp.abs(out - ref)))
    assert err < 1e-4, err
    print("KERNEL_OK")
</pallas_src>

<mosaic_0001>
module attributes {stable_mosaic.version = 11 : i64} {
  func.func @_mse_embedding_kernel(%arg0: i32, %arg1: memref<128x2xf32, #tpu.memory_space<vmem>>, %arg2: memref<8x1xi32, #tpu.memory_space<vmem>>, %arg3: memref<2x64xf32, #tpu.memory_space<vmem>>, %arg4: memref<1x64xf32, #tpu.memory_space<vmem>>, %arg5: memref<64x32xf32, #tpu.memory_space<vmem>>, %arg6: memref<1x32xf32, #tpu.memory_space<vmem>>, %arg7: memref<32x256xf32, #tpu.memory_space<vmem>>, %arg8: memref<1x256xf32, #tpu.memory_space<vmem>>, %arg9: memref<32x256xf32, #tpu.memory_space<vmem>>, %arg10: memref<64x32xf32, #tpu.memory_space<vmem>>, %arg11: memref<1x32xf32, #tpu.memory_space<vmem>>, %arg12: memref<8x32xf32, #tpu.memory_space<vmem>>, %arg13: memref<128x256xf32, #tpu.memory_space<vmem>>) attributes {dimension_semantics = [#tpu.dimension_semantics<parallel>], iteration_bounds = array<i64: 1>, scalar_prefetch = 0 : i64, scratch_operands = 1 : i64, tpu.core_type = #tpu.core_type<tc>, window_params = [{transform_indices = @transform_0, window_bounds = array<i64: 128, 2>}, {transform_indices = @transform_1, window_bounds = array<i64: 8, 1>}, {pipeline_mode = #tpu.pipeline_mode<synchronous>, transform_indices = @transform_2, window_bounds = array<i64: 2, 64>}, {pipeline_mode = #tpu.pipeline_mode<synchronous>, transform_indices = @transform_3, window_bounds = array<i64: 1, 64>}, {pipeline_mode = #tpu.pipeline_mode<synchronous>, transform_indices = @transform_4, window_bounds = array<i64: 64, 32>}, {pipeline_mode = #tpu.pipeline_mode<synchronous>, transform_indices = @transform_5, window_bounds = array<i64: 1, 32>}, {pipeline_mode = #tpu.pipeline_mode<synchronous>, transform_indices = @transform_6, window_bounds = array<i64: 32, 256>}, {pipeline_mode = #tpu.pipeline_mode<synchronous>, transform_indices = @transform_7, window_bounds = array<i64: 1, 256>}, {pipeline_mode = #tpu.pipeline_mode<synchronous>, transform_indices = @transform_8, window_bounds = array<i64: 32, 256>}, {pipeline_mode = #tpu.pipeline_mode<synchronous>, transform_indices = @transform_9, window_bounds = array<i64: 64, 32>}, {pipeline_mode = #tpu.pipeline_mode<synchronous>, transform_indices = @transform_10, window_bounds = array<i64: 1, 32>}, {transform_indices = @transform_11, window_bounds = array<i64: 8, 32>}]} {
    %c0 = arith.constant 0 : index
    %c0_0 = arith.constant 0 : index
    %0 = vector.load %arg1[%c0, %c0_0] : memref<128x2xf32, #tpu.memory_space<vmem>>, vector<128x2xf32>
    %c0_1 = arith.constant 0 : index
    %c0_2 = arith.constant 0 : index
    %1 = vector.load %arg3[%c0_1, %c0_2] : memref<2x64xf32, #tpu.memory_space<vmem>>, vector<2x64xf32>
    %cst = arith.constant dense<0.000000e+00> : vector<128x64xf32>
    %2 = tpu.matmul %0, %1, %cst {dimension_numbers = #tpu.dot_dimension_numbers<[1], [0], [0], [1], [0, 0, 1, 1], [], []>} : vector<128x2xf32>, vector<2x64xf32>, vector<128x64xf32> -> vector<128x64xf32>
    %c0_3 = arith.constant 0 : index
    %c0_4 = arith.constant 0 : index
    %3 = vector.load %arg4[%c0_3, %c0_4] : memref<1x64xf32, #tpu.memory_space<vmem>>, vector<1x64xf32>
    %4 = vector.broadcast %3 : vector<1x64xf32> to vector<128x64xf32>
    %5 = arith.addf %2, %4 : vector<128x64xf32>
    %cst_5 = arith.constant 0.000000e+00 : f32
    %6 = vector.broadcast %cst_5 : f32 to vector<128x64xf32>
    %7 = arith.maximumf %5, %6 : vector<128x64xf32>
    %c0_6 = arith.constant 0 : index
    %c0_7 = arith.constant 0 : index
    %8 = vector.load %arg5[%c0_6, %c0_7] : memref<64x32xf32, #tpu.memory_space<vmem>>, vector<64x32xf32>
    %cst_8 = arith.constant dense<0.000000e+00> : vector<128x32xf32>
    %9 = tpu.matmul %7, %8, %cst_8 {dimension_numbers = #tpu.dot_dimension_numbers<[1], [0], [0], [1], [0, 0, 1, 1], [], []>} : vector<128x64xf32>, vector<64x32xf32>, vector<128x32xf32> -> vector<128x32xf32>
    %c0_9 = arith.constant 0 : index
    %c0_10 = arith.constant 0 : index
    %10 = vector.load %arg6[%c0_9, %c0_10] : memref<1x32xf32, #tpu.memory_space<vmem>>, vector<1x32xf32>
    %11 = vector.broadcast %10 : vector<1x32xf32> to vector<128x32xf32>
    %12 = arith.addf %9, %11 : vector<128x32xf32>
    %cst_11 = arith.constant 0.000000e+00 : f32
    %13 = vector.broadcast %cst_11 : f32 to vector<128x32xf32>
    %14 = arith.maximumf %12, %13 : vector<128x32xf32>
    %c0_12 = arith.constant 0 : index
    %c0_13 = arith.constant 0 : index
    %15 = vector.load %arg7[%c0_12, %c0_13] : memref<32x256xf32, #tpu.memory_space<vmem>>, vector<32x256xf32>
    %cst_14 = arith.constant dense<0.000000e+00> : vector<128x256xf32>
    %16 = tpu.matmul %14, %15, %cst_14 {dimension_numbers = #tpu.dot_dimension_numbers<[1], [0], [0], [1], [0, 0, 1, 1], [], []>} : vector<128x32xf32>, vector<32x256xf32>, vector<128x256xf32> -> vector<128x256xf32>
    %c0_15 = arith.constant 0 : index
    %c0_16 = arith.constant 0 : index
    %17 = vector.load %arg8[%c0_15, %c0_16] : memref<1x256xf32, #tpu.memory_space<vmem>>, vector<1x256xf32>
    %18 = vector.broadcast %17 : vector<1x256xf32> to vector<128x256xf32>
    %19 = arith.addf %16, %18 : vector<128x256xf32>
    %c0_17 = arith.constant 0 : index
    %c0_18 = arith.constant 0 : index
    %20 = vector.load %arg13[%c0_17, %c0_18] : memref<128x256xf32, #tpu.memory_space<vmem>>, vector<128x256xf32>
    tpu.vector_store %arg13[%c0_17, %c0_18], %19 {strides = array<i32>} : memref<128x256xf32, #tpu.memory_space<vmem>>, vector<128x256xf32>,
    %c0_19 = arith.constant 0 : index
    %c0_20 = arith.constant 0 : index
    %21 = vector.load %arg2[%c0_19, %c0_20] : memref<8x1xi32, #tpu.memory_space<vmem>>, vector<8x1xi32>
    %c0_21 = arith.constant 0 : index
    %c0_22 = arith.constant 0 : index
    %22 = vector.load %arg9[%c0_21, %c0_22] : memref<32x256xf32, #tpu.memory_space<vmem>>, vector<32x256xf32>
    %23 = vector.extract_strided_slice %22 {offsets = [0, 0], sizes = [32, 128], strides = [1, 1]} : vector<32x256xf32> to vector<32x128xf32>
    %24 = vector.extract_strided_slice %22 {offsets = [0, 128], sizes = [32, 128], strides = [1, 1]} : vector<32x256xf32> to vector<32x128xf32>
    %cst_23 = arith.constant 0.000000e+00 : f32
    %25 = vector.broadcast %cst_23 : f32 to vector<8x32xf32>
    %c0_i32 = arith.constant 0 : i32
    %c15_i32 = arith.constant 15 : i32
    %26 = arith.subi %c15_i32, %c0_i32 : i32
    %c8_i32 = arith.constant 8 : i32
    %27 = arith.muli %c0_i32, %c8_i32 : i32
    %28 = tpu.assume_multiple %27, 8 : i32
    %c8_i32_24 = arith.constant 8 : i32
    %29 = arith.muli %26, %c8_i32_24 : i32
    %30 = tpu.assume_multiple %29, 8 : i32
    %31 = arith.index_cast %28 : i32 to index
    %c0_25 = arith.constant 0 : index
    %32 = vector.load %arg13[%31, %c0_25] : memref<128x256xf32, #tpu.memory_space<vmem>>, vector<8x256xf32>
    %33 = arith.index_cast %30 : i32 to index
    %c0_26 = arith.constant 0 : index
    %34 = vector.load %arg13[%33, %c0_26] : memref<128x256xf32, #tpu.memory_space<vmem>>, vector<8x256xf32>
    %35 = vector.extract_strided_slice %32 {offsets = [0, 0], sizes = [8, 128], strides = [1, 1]} : vector<8x256xf32> to vector<8x128xf32>
    %cst_27 = arith.constant dense<0.000000e+00> : vector<8x128xf32>
    %36 = tpu.matmul %25, %23, %cst_27 {dimension_numbers = #tpu.dot_dimension_numbers<[1], [0], [0], [1], [0, 0, 1, 1], [], []>} : vector<8x32xf32>, vector<32x128xf32>, vector<8x128xf32> -> vector<8x128xf32>
    %37 = arith.addf %35, %36 : vector<8x128xf32>
    %38 = vector.extract_strided_slice %34 {offsets = [0, 128], sizes = [8, 128], strides = [1, 1]} : vector<8x256xf32> to vector<8x128xf32>
    %cst_28 = arith.constant dense<0.000000e+00> : vector<8x128xf32>
    %39 = tpu.matmul %25, %24, %cst_28 {dimension_numbers = #tpu.dot_dimension_numbers<[1], [0], [0], [1], [0, 0, 1, 1], [], []>} : vector<8x32xf32>, vector<32x128xf32>, vector<8x128xf32> -> vector<8x128xf32>
    %40 = arith.addf %38, %39 : vector<8x128xf32>
    %41 = vector.extract_strided_slice %37 {offsets = [0, 0], sizes = [8, 32], strides = [1, 1]} : vector<8x128xf32> to vector<8x32xf32>
    %42 = arith.negf %41 : vector<8x32xf32>
    %43 = math.exp %42 : vector<8x32xf32>
    %cst_29 = arith.constant 1.000000e+00 : f32
    %44 = vector.broadcast %cst_29 : f32 to vector<8x32xf32>
    %45 = arith.addf %44, %43 : vector<8x32xf32>
    %46 = arith.divf %44, %45 : vector<8x32xf32>
    %47 = vector.extract_strided_slice %37 {offsets = [0, 32], sizes = [8, 32], strides = [1, 1]} : vector<8x128xf32> to vector<8x32xf32>
    %48 = arith.negf %47 : vector<8x32xf32>
    %49 = math.exp %48 : vector<8x32xf32>
    %cst_30 = arith.constant 1.000000e+00 : f32
    %50 = vector.broadcast %cst_30 : f32 to vector<8x32xf32>
    %51 = arith.addf %50, %49 : vector<8x32xf32>
    %52 = arith.divf %50, %51 : vector<8x32xf32>
    %53 = vector.extract_strided_slice %37 {offsets = [0, 64], sizes = [8, 32], strides = [1, 1]} : vector<8x128xf32> to vector<8x32xf32>
    %54 = math.tanh %53 : vector<8x32xf32>
    %55 = vector.extract_strided_slice %37 {offsets = [0, 96], sizes = [8, 32], strides = [1, 1]} : vector<8x128xf32> to vector<8x32xf32>
    %56 = arith.negf %55 : vector<8x32xf32>
    %57 = math.exp %56 : vector<8x32xf32>
    %cst_31 = arith.constant 1.000000e+00 : f32
    %58 = vector.broadcast %cst_31 : f32 to vector<8x32xf32>
    %59 = arith.addf %58, %57 : vector<8x32xf32>
    %60 = arith.divf %58, %59 : vector<8x32xf32>
    %61 = arith.mulf %52, %25 : vector<8x32xf32>
    %62 = arith.mulf %46, %54 : vector<8x32xf32>
    %63 = arith.addf %61, %62 : vector<8x32xf32>
    %64 = math.tanh %63 : vector<8x32xf32>
    %65 = arith.mulf %60, %64 : vector<8x32xf32>
    %66 = vector.extract_strided_slice %40 {offsets = [0, 0], sizes = [8, 32], strides = [1, 1]} : vector<8x128xf32> to vector<8x32xf32>
    %67 = arith.negf %66 : vector<8x32xf32>
    %68 = math.exp %67 : vector<8x32xf32>
    %cst_32 = arith.constant 1.000000e+00 : f32
    %69 = vector.broadcast %cst_32 : f32 to vector<8x32xf32>
    %70 = arith.addf %69, %68 : vector<8x32xf32>
    %71 = arith.divf %69, %70 : vector<8x32xf32>
    %72 = vector.extract_strided_slice %40 {offsets = [0, 32], sizes = [8, 32], strides = [1, 1]} : vector<8x128xf32> to vector<8x32xf32>
    %73 = arith.negf %72 : vector<8x32xf32>
    %74 = math.exp %73 : vector<8x32xf32>
    %cst_33 = arith.constant 1.000000e+00 : f32
    %75 = vector.broadcast %cst_33 : f32 to vector<8x32xf32>
    %76 = arith.addf %75, %74 : vector<8x32xf32>
    %77 = arith.divf %75, %76 : vector<8x32xf32>
    %78 = vector.extract_strided_slice %40 {offsets = [0, 64], sizes = [8, 32], strides = [1, 1]} : vector<8x128xf32> to vector<8x32xf32>
    %79 = math.tanh %78 : vector<8x32xf32>
    %80 = vector.extract_strided_slice %40 {offsets = [0, 96], sizes = [8, 32], strides = [1, 1]} : vector<8x128xf32> to vector<8x32xf32>
    %81 = arith.negf %80 : vector<8x32xf32>
    %82 = math.exp %81 : vector<8x32xf32>
    %cst_34 = arith.constant 1.000000e+00 : f32
    %83 = vector.broadcast %cst_34 : f32 to vector<8x32xf32>
    %84 = arith.addf %83, %82 : vector<8x32xf32>
    %85 = arith.divf %83, %84 : vector<8x32xf32>
    %86 = arith.mulf %77, %25 : vector<8x32xf32>
    %87 = arith.mulf %71, %79 : vector<8x32xf32>
    %88 = arith.addf %86, %87 : vector<8x32xf32>
    %89 = math.tanh %88 : vector<8x32xf32>
    %90 = arith.mulf %85, %89 : vector<8x32xf32>
    %91 = vector.broadcast %c0_i32 : i32 to vector<8x1xi32>
    %92 = arith.cmpi sgt, %21, %91 : vector<8x1xi32>
    %93 = vector.broadcast %26 : i32 to vector<8x1xi32>
    %94 = arith.cmpi sgt, %21, %93 : vector<8x1xi32>
    %95 = vector.shape_cast %92 : vector<8x1xi1> to vector<8x1xi1>
    %96 = vector.broadcast %95 : vector<8x1xi1> to vector<8x32xi1>
    %97 = arith.select %96, %65, %25 : vector<8x32xi1>, vector<8x32xf32>
    %98 = vector.shape_cast %92 : vector<8x1xi1> to vector<8x1xi1>
    %99 = vector.broadcast %98 : vector<8x1xi1> to vector<8x32xi1>
    %100 = arith.select %99, %63, %25 : vector<8x32xi1>, vector<8x32xf32>
    %101 = vector.shape_cast %94 : vector<8x1xi1> to vector<8x1xi1>
    %102 = vector.broadcast %101 : vector<8x1xi1> to vector<8x32xi1>
    %103 = arith.select %102, %90, %25 : vector<8x32xi1>, vector<8x32xf32>
    %104 = vector.shape_cast %94 : vector<8x1xi1> to vector<8x1xi1>
    %105 = vector.broadcast %104 : vector<8x1xi1> to vector<8x32xi1>
    %106 = arith.select %105, %88, %25 : vector<8x32xi1>, vector<8x32xf32>
    %c1_i32 = arith.constant 1 : i32
    %c15_i32_35 = arith.constant 15 : i32
    %107 = arith.subi %c15_i32_35, %c1_i32 : i32
    %c8_i32_36 = arith.constant 8 : i32
    %108 = arith.muli %c1_i32, %c8_i32_36 : i32
    %109 = tpu.assume_multiple %108, 8 : i32
    %c8_i32_37 = arith.constant 8 : i32
    %110 = arith.muli %107, %c8_i32_37 : i32
    %111 = tpu.assume_multiple %110, 8 : i32
    %112 = arith.index_cast %109 : i32 to index
    %c0_38 = arith.constant 0 : index
    %113 = vector.load %arg13[%112, %c0_38] : memref<128x256xf32, #tpu.memory_space<vmem>>, vector<8x256xf32>
    %114 = arith.index_cast %111 : i32 to index
    %c0_39 = arith.constant 0 : index
    %115 = vector.load %arg13[%114, %c0_39] : memref<128x256xf32, #tpu.memory_space<vmem>>, vector<8x256xf32>
    %116 = vector.extract_strided_slice %113 {offsets = [0, 0], sizes = [8, 128], strides = [1, 1]} : vector<8x256xf32> to vector<8x128xf32>
    %cst_40 = arith.constant dense<0.000000e+00> : vector<8x128xf32>
    %117 = tpu.matmul %97, %23, %cst_40 {dimension_numbers = #tpu.dot_dimension_numbers<[1], [0], [0], [1], [0, 0, 1, 1], [], []>} : vector<8x32xf32>, vector<32x128xf32>, vector<8x128xf32> -> vector<8x128xf32>
    %118 = arith.addf %116, %117 : vector<8x128xf32>
    %119 = vector.extract_strided_slice %115 {offsets = [0, 128], sizes = [8, 128], strides = [1, 1]} : vector<8x256xf32> to vector<8x128xf32>
    %cst_41 = arith.constant dense<0.000000e+00> : vector<8x128xf32>
    %120 = tpu.matmul %103, %24, %cst_41 {dimension_numbers = #tpu.dot_dimension_numbers<[1], [0], [0], [1], [0, 0, 1, 1], [], []>} : vector<8x32xf32>, vector<32x128xf32>, vector<8x128xf32> -> vector<8x128xf32>
    %121 = arith.addf %119, %120 : vector<8x128xf32>
    %122 = vector.extract_strided_slice %118 {offsets = [0, 0], sizes = [8, 32], strides = [1, 1]} : vector<8x128xf32> to vector<8x32xf32>
    %123 = arith.negf %122 : vector<8x32xf32>
    %124 = math.exp %123 : vector<8x32xf32>
    %cst_42 = arith.constant 1.000000e+00 : f32
    %125 = vector.broadcast %cst_42 : f32 to vector<8x32xf32>
    %126 = arith.addf %125, %124 : vector<8x32xf32>
    %127 = arith.divf %125, %126 : vector<8x32xf32>
    %128 = vector.extract_strided_slice %118 {offsets = [0, 32], sizes = [8, 32], strides = [1, 1]} : vector<8x128xf32> to vector<8x32xf32>
    %129 = arith.negf %128 : vector<8x32xf32>
    %130 = math.exp %129 : vector<8x32xf32>
    %cst_43 = arith.constant 1.000000e+00 : f32
    %131 = vector.broadcast %cst_43 : f32 to vector<8x32xf32>
    %132 = arith.addf %131, %130 : vector<8x32xf32>
    %133 = arith.divf %131, %132 : vector<8x32xf32>
    %134 = vector.extract_strided_slice %118 {offsets = [0, 64], sizes = [8, 32], strides = [1, 1]} : vector<8x128xf32> to vector<8x32xf32>
    %135 = math.tanh %134 : vector<8x32xf32>
    %136 = vector.extract_strided_slice %118 {offsets = [0, 96], sizes = [8, 32], strides = [1, 1]} : vector<8x128xf32> to vector<8x32xf32>
    %137 = arith.negf %136 : vector<8x32xf32>
    %138 = math.exp %137 : vector<8x32xf32>
    %cst_44 = arith.constant 1.000000e+00 : f32
    %139 = vector.broadcast %cst_44 : f32 to vector<8x32xf32>
    %140 = arith.addf %139, %138 : vector<8x32xf32>
    %141 = arith.divf %139, %140 : vector<8x32xf32>
    %142 = arith.mulf %133, %100 : vector<8x32xf32>
    %143 = arith.mulf %127, %135 : vector<8x32xf32>
    %144 = arith.addf %142, %143 : vector<8x32xf32>
    %145 = math.tanh %144 : vector<8x32xf32>
    %146 = arith.mulf %141, %145 : vector<8x32xf32>
    %147 = vector.extract_strided_slice %121 {offsets = [0, 0], sizes = [8, 32], strides = [1, 1]} : vector<8x128xf32> to vector<8x32xf32>
    %148 = arith.negf %147 : vector<8x32xf32>
    %149 = math.exp %148 : vector<8x32xf32>
    %cst_45 = arith.constant 1.000000e+00 : f32
    %150 = vector.broadcast %cst_45 : f32 to vector<8x32xf32>
    %151 = arith.addf %150, %149 : vector<8x32xf32>
    %152 = arith.divf %150, %151 : vector<8x32xf32>
    %153 = vector.extract_strided_slice %121 {offsets = [0, 32], sizes = [8, 32], strides = [1, 1]} : vector<8x128xf32> to vector<8x32xf32>
    %154 = arith.negf %153 : vector<8x32xf32>
    %155 = math.exp %154 : vector<8x32xf32>
    %cst_46 = arith.constant 1.000000e+00 : f32
    %156 = vector.broadcast %cst_46 : f32 to vector<8x32xf32>
    %157 = arith.addf %156, %155 : vector<8x32xf32>
    %158 = arith.divf %156, %157 : vector<8x32xf32>
    %159 = vector.extract_strided_slice %121 {offsets = [0, 64], sizes = [8, 32], strides = [1, 1]} : vector<8x128xf32> to vector<8x32xf32>
    %160 = math.tanh %159 : vector<8x32xf32>
    %161 = vector.extract_strided_slice %121 {offsets = [0, 96], sizes = [8, 32], strides = [1, 1]} : vector<8x128xf32> to vector<8x32xf32>
    %162 = arith.negf %161 : vector<8x32xf32>
    %163 = math.exp %162 : vector<8x32xf32>
    %cst_47 = arith.constant 1.000000e+00 : f32
    %164 = vector.broadcast %cst_47 : f32 to vector<8x32xf32>
    %165 = arith.addf %164, %163 : vector<8x32xf32>
    %166 = arith.divf %164, %165 : vector<8x32xf32>
    %167 = arith.mulf %158, %106 : vector<8x32xf32>
    %168 = arith.mulf %152, %160 : vector<8x32xf32>
    %169 = arith.addf %167, %168 : vector<8x32xf32>
    %170 = math.tanh %169 : vector<8x32xf32>
    %171 = arith.mulf %166, %170 : vector<8x32xf32>
    %172 = vector.broadcast %c1_i32 : i32 to vector<8x1xi32>
    %173 = arith.cmpi sgt, %21, %172 : vector<8x1xi32>
    %174 = vector.broadcast %107 : i32 to vector<8x1xi32>
    %175 = arith.cmpi sgt, %21, %174 : vector<8x1xi32>
    %176 = vector.shape_cast %173 : vector<8x1xi1> to vector<8x1xi1>
    %177 = vector.broadcast %176 : vector<8x1xi1> to vector<8x32xi1>
    %178 = arith.select %177, %146, %97 : vector<8x32xi1>, vector<8x32xf32>
    %179 = vector.shape_cast %173 : vector<8x1xi1> to vector<8x1xi1>
    %180 = vector.broadcast %179 : vector<8x1xi1> to vector<8x32xi1>
    %181 = arith.select %180, %144, %100 : vector<8x32xi1>, vector<8x32xf32>
    %182 = vector.shape_cast %175 : vector<8x1xi1> to vector<8x1xi1>
    %183 = vector.broadcast %182 : vector<8x1xi1> to vector<8x32xi1>
    %184 = arith.select %183, %171, %103 : vector<8x32xi1>, vector<8x32xf32>
    %185 = vector.shape_cast %175 : vector<8x1xi1> to vector<8x1xi1>
    %186 = vector.broadcast %185 : vector<8x1xi1> to vector<8x32xi1>
    %187 = arith.select %186, %169, %106 : vector<8x32xi1>, vector<8x32xf32>
    %c2_i32 = arith.constant 2 : i32
    %c15_i32_48 = arith.constant 15 : i32
    %188 = arith.subi %c15_i32_48, %c2_i32 : i32
    %c8_i32_49 = arith.constant 8 : i32
    %189 = arith.muli %c2_i32, %c8_i32_49 : i32
    %190 = tpu.assume_multiple %189, 8 : i32
    %c8_i32_50 = arith.constant 8 : i32
    %191 = arith.muli %188, %c8_i32_50 : i32
    %192 = tpu.assume_multiple %191, 8 : i32
    %193 = arith.index_cast %190 : i32 to index
    %c0_51 = arith.constant 0 : index
    %194 = vector.load %arg13[%193, %c0_51] : memref<128x256xf32, #tpu.memory_space<vmem>>, vector<8x256xf32>
    %195 = arith.index_cast %192 : i32 to index
    %c0_52 = arith.constant 0 : index
    %196 = vector.load %arg13[%195, %c0_52] : memref<128x256xf32, #tpu.memory_space<vmem>>, vector<8x256xf32>
    %197 = vector.extract_strided_slice %194 {offsets = [0, 0], sizes = [8, 128], strides = [1, 1]} : vector<8x256xf32> to vector<8x128xf32>
    %cst_53 = arith.constant dense<0.000000e+00> : vector<8x128xf32>
    %198 = tpu.matmul %178, %23, %cst_53 {dimension_numbers = #tpu.dot_dimension_numbers<[1], [0], [0], [1], [0, 0, 1, 1], [], []>} : vector<8x32xf32>, vector<32x128xf32>, vector<8x128xf32> -> vector<8x128xf32>
    %199 = arith.addf %197, %198 : vector<8x128xf32>
    %200 = vector.extract_strided_slice %196 {offsets = [0, 128], sizes = [8, 128], strides = [1, 1]} : vector<8x256xf32> to vector<8x128xf32>
    %cst_54 = arith.constant dense<0.000000e+00> : vector<8x128xf32>
    %201 = tpu.matmul %184, %24, %cst_54 {dimension_numbers = #tpu.dot_dimension_numbers<[1], [0], [0], [1], [0, 0, 1, 1], [], []>} : vector<8x32xf32>, vector<32x128xf32>, vector<8x128xf32> -> vector<8x128xf32>
    %202 = arith.addf %200, %201 : vector<8x128xf32>
    %203 = vector.extract_strided_slice %199 {offsets = [0, 0], sizes = [8, 32], strides = [1, 1]} : vector<8x128xf32> to vector<8x32xf32>
    %204 = arith.negf %203 : vector<8x32xf32>
    %205 = math.exp %204 : vector<8x32xf32>
    %cst_55 = arith.constant 1.000000e+00 : f32
    %206 = vector.broadcast %cst_55 : f32 to vector<8x32xf32>
    %207 = arith.addf %206, %205 : vector<8x32xf32>
    %208 = arith.divf %206, %207 : vector<8x32xf32>
    %209 = vector.extract_strided_slice %199 {offsets = [0, 32], sizes = [8, 32], strides = [1, 1]} : vector<8x128xf32> to vector<8x32xf32>
    %210 = arith.negf %209 : vector<8x32xf32>
    %211 = math.exp %210 : vector<8x32xf32>
    %cst_56 = arith.constant 1.000000e+00 : f32
    %212 = vector.broadcast %cst_56 : f32 to vector<8x32xf32>
    %213 = arith.addf %212, %211 : vector<8x32xf32>
    %214 = arith.divf %212, %213 : vector<8x32xf32>
    %215 = vector.extract_strided_slice %199 {offsets = [0, 64], sizes = [8, 32], strides = [1, 1]} : vector<8x128xf32> to vector<8x32xf32>
    %216 = math.tanh %215 : vector<8x32xf32>
    %217 = vector.extract_strided_slice %199 {offsets = [0, 96], sizes = [8, 32], strides = [1, 1]} : vector<8x128xf32> to vector<8x32xf32>
    %218 = arith.negf %217 : vector<8x32xf32>
    %219 = math.exp %218 : vector<8x32xf32>
    %cst_57 = arith.constant 1.000000e+00 : f32
    %220 = vector.broadcast %cst_57 : f32 to vector<8x32xf32>
    %221 = arith.addf %220, %219 : vector<8x32xf32>
    %222 = arith.divf %220, %221 : vector<8x32xf32>
    %223 = arith.mulf %214, %181 : vector<8x32xf32>
    %224 = arith.mulf %208, %216 : vector<8x32xf32>
    %225 = arith.addf %223, %224 : vector<8x32xf32>
    %226 = math.tanh %225 : vector<8x32xf32>
    %227 = arith.mulf %222, %226 : vector<8x32xf32>
    %228 = vector.extract_strided_slice %202 {offsets = [0, 0], sizes = [8, 32], strides = [1, 1]} : vector<8x128xf32> to vector<8x32xf32>
    %229 = arith.negf %228 : vector<8x32xf32>
    %230 = math.exp %229 : vector<8x32xf32>
    %cst_58 = arith.constant 1.000000e+00 : f32
    %231 = vector.broadcast %cst_58 : f32 to vector<8x32xf32>
    %232 = arith.addf %231, %230 : vector<8x32xf32>
    %233 = arith.divf %231, %232 : vector<8x32xf32>
    %234 = vector.extract_strided_slice %202 {offsets = [0, 32], sizes = [8, 32], strides = [1, 1]} : vector<8x128xf32> to vector<8x32xf32>
    %235 = arith.negf %234 : vector<8x32xf32>
    %236 = math.exp %235 : vector<8x32xf32>
    %cst_59 = arith.constant 1.000000e+00 : f32
    %237 = vector.broadcast %cst_59 : f32 to vector<8x32xf32>
    %238 = arith.addf %237, %236 : vector<8x32xf32>
    %239 = arith.divf %237, %238 : vector<8x32xf32>
    %240 = vector.extract_strided_slice %202 {offsets = [0, 64], sizes = [8, 32], strides = [1, 1]} : vector<8x128xf32> to vector<8x32xf32>
    %241 = math.tanh %240 : vector<8x32xf32>
    %242 = vector.extract_strided_slice %202 {offsets = [0, 96], sizes = [8, 32], strides = [1, 1]} : vector<8x128xf32> to vector<8x32xf32>
    %243 = arith.negf %242 : vector<8x32xf32>
    %244 = math.exp %243 : vector<8x32xf32>
    %cst_60 = arith.constant 1.000000e+00 : f32
    %245 = vector.broadcast %cst_60 : f32 to vector<8x32xf32>
    %246 = arith.addf %245, %244 : vector<8x32xf32>
    %247 = arith.divf %245, %246 : vector<8x32xf32>
    %248 = arith.mulf %239, %187 : vector<8x32xf32>
    %249 = arith.mulf %233, %241 : vector<8x32xf32>
    %250 = arith.addf %248, %249 : vector<8x32xf32>
    %251 = math.tanh %250 : vector<8x32xf32>
    %252 = arith.mulf %247, %251 : vector<8x32xf32>
    %253 = vector.broadcast %c2_i32 : i32 to vector<8x1xi32>
    %254 = arith.cmpi sgt, %21, %253 : vector<8x1xi32>
    %255 = vector.broadcast %188 : i32 to vector<8x1xi32>
    %256 = arith.cmpi sgt, %21, %255 : vector<8x1xi32>
    %257 = vector.shape_cast %254 : vector<8x1xi1> to vector<8x1xi1>
    %258 = vector.broadcast %257 : vector<8x1xi1> to vector<8x32xi1>
    %259 = arith.select %258, %227, %178 : vector<8x32xi1>, vector<8x32xf32>
    %260 = vector.shape_cast %254 : vector<8x1xi1> to vector<8x1xi1>
    %261 = vector.broadcast %260 : vector<8x1xi1> to vector<8x32xi1>
    %262 = arith.select %261, %225, %181 : vector<8x32xi1>, vector<8x32xf32>
    %263 = vector.shape_cast %256 : vector<8x1xi1> to vector<8x1xi1>
    %264 = vector.broadcast %263 : vector<8x1xi1> to vector<8x32xi1>
    %265 = arith.select %264, %252, %184 : vector<8x32xi1>, vector<8x32xf32>
    %266 = vector.shape_cast %256 : vector<8x1xi1> to vector<8x1xi1>
    %267 = vector.broadcast %266 : vector<8x1xi1> to vector<8x32xi1>
    %268 = arith.select %267, %250, %187 : vector<8x32xi1>, vector<8x32xf32>
    %c3_i32 = arith.constant 3 : i32
    %c15_i32_61 = arith.constant 15 : i32
    %269 = arith.subi %c15_i32_61, %c3_i32 : i32
    %c8_i32_62 = arith.constant 8 : i32
    %270 = arith.muli %c3_i32, %c8_i32_62 : i32
    %271 = tpu.assume_multiple %270, 8 : i32
    %c8_i32_63 = arith.constant 8 : i32
    %272 = arith.muli %269, %c8_i32_63 : i32
    %273 = tpu.assume_multiple %272, 8 : i32
    %274 = arith.index_cast %271 : i32 to index
    %c0_64 = arith.constant 0 : index
    %275 = vector.load %arg13[%274, %c0_64] : memref<128x256xf32, #tpu.memory_space<vmem>>, vector<8x256xf32>
    %276 = arith.index_cast %273 : i32 to index
    %c0_65 = arith.constant 0 : index
    %277 = vector.load %arg13[%276, %c0_65] : memref<128x256xf32, #tpu.memory_space<vmem>>, vector<8x256xf32>
    %278 = vector.extract_strided_slice %275 {offsets = [0, 0], sizes = [8, 128], strides = [1, 1]} : vector<8x256xf32> to vector<8x128xf32>
    %cst_66 = arith.constant dense<0.000000e+00> : vector<8x128xf32>
    %279 = tpu.matmul %259, %23, %cst_66 {dimension_numbers = #tpu.dot_dimension_numbers<[1], [0], [0], [1], [0, 0, 1, 1], [], []>} : vector<8x32xf32>, vector<32x128xf32>, vector<8x128xf32> -> vector<8x128xf32>
    %280 = arith.addf %278, %279 : vector<8x128xf32>
    %281 = vector.extract_strided_slice %277 {offsets = [0, 128], sizes = [8, 128], strides = [1, 1]} : vector<8x256xf32> to vector<8x128xf32>
    %cst_67 = arith.constant dense<0.000000e+00> : vector<8x128xf32>
    %282 = tpu.matmul %265, %24, %cst_67 {dimension_numbers = #tpu.dot_dimension_numbers<[1], [0], [0], [1], [0, 0, 1, 1], [], []>} : vector<8x32xf32>, vector<32x128xf32>, vector<8x128xf32> -> vector<8x128xf32>
    %283 = arith.addf %281, %282 : vector<8x128xf32>
    %284 = vector.extract_strided_slice %280 {offsets = [0, 0], sizes = [8, 32], strides = [1, 1]} : vector<8x128xf32> to vector<8x32xf32>
    %285 = arith.negf %284 : vector<8x32xf32>
    %286 = math.exp %285 : vector<8x32xf32>
    %cst_68 = arith.constant 1.000000e+00 : f32
    %287 = vector.broadcast %cst_68 : f32 to vector<8x32xf32>
    %288 = arith.addf %287, %286 : vector<8x32xf32>
    %289 = arith.divf %287, %288 : vector<8x32xf32>
    %290 = vector.extract_strided_slice %280 {offsets = [0, 32], sizes = [8, 32], strides = [1, 1]} : vector<8x128xf32> to vector<8x32xf32>
    %291 = arith.negf %290 : vector<8x32xf32>
    %292 = math.exp %291 : vector<8x32xf32>
    %cst_69 = arith.constant 1.000000e+00 : f32
    %293 = vector.broadcast %cst_69 : f32 to vector<8x32xf32>
    %294 = arith.addf %293, %292 : vector<8x32xf32>
    %295 = arith.divf %293, %294 : vector<8x32xf32>
    %296 = vector.extract_strided_slice %280 {offsets = [0, 64], sizes = [8, 32], strides = [1, 1]} : vector<8x128xf32> to vector<8x32xf32>
    %297 = math.tanh %296 : vector<8x32xf32>
    %298 = vector.extract_strided_slice %280 {offsets = [0, 96], sizes = [8, 32], strides = [1, 1]} : vector<8x128xf32> to vector<8x32xf32>
    %299 = arith.negf %298 : vector<8x32xf32>
    %300 = math.exp %299 : vector<8x32xf32>
    %cst_70 = arith.constant 1.000000e+00 : f32
    %301 = vector.broadcast %cst_70 : f32 to vector<8x32xf32>
    %302 = arith.addf %301, %300 : vector<8x32xf32>
    %303 = arith.divf %301, %302 : vector<8x32xf32>
    %304 = arith.mulf %295, %262 : vector<8x32xf32>
    %305 = arith.mulf %289, %297 : vector<8x32xf32>
    %306 = arith.addf %304, %305 : vector<8x32xf32>
    %307 = math.tanh %306 : vector<8x32xf32>
    %308 = arith.mulf %303, %307 : vector<8x32xf32>
    %309 = vector.extract_strided_slice %283 {offsets = [0, 0], sizes = [8, 32], strides = [1, 1]} : vector<8x128xf32> to vector<8x32xf32>
    %310 = arith.negf %309 : vector<8x32xf32>
    %311 = math.exp %310 : vector<8x32xf32>
    %cst_71 = arith.constant 1.000000e+00 : f32
    %312 = vector.broadcast %cst_71 : f32 to vector<8x32xf32>
    %313 = arith.addf %312, %311 : vector<8x32xf32>
    %314 = arith.divf %312, %313 : vector<8x32xf32>
    %315 = vector.extract_strided_slice %283 {offsets = [0, 32], sizes = [8, 32], strides = [1, 1]} : vector<8x128xf32> to vector<8x32xf32>
    %316 = arith.negf %315 : vector<8x32xf32>
    %317 = math.exp %316 : vector<8x32xf32>
    %cst_72 = arith.constant 1.000000e+00 : f32
    %318 = vector.broadcast %cst_72 : f32 to vector<8x32xf32>
    %319 = arith.addf %318, %317 : vector<8x32xf32>
    %320 = arith.divf %318, %319 : vector<8x32xf32>
    %321 = vector.extract_strided_slice %283 {offsets = [0, 64], sizes = [8, 32], strides = [1, 1]} : vector<8x128xf32> to vector<8x32xf32>
    %322 = math.tanh %321 : vector<8x32xf32>
    %323 = vector.extract_strided_slice %283 {offsets = [0, 96], sizes = [8, 32], strides = [1, 1]} : vector<8x128xf32> to vector<8x32xf32>
    %324 = arith.negf %323 : vector<8x32xf32>
    %325 = math.exp %324 : vector<8x32xf32>
    %cst_73 = arith.constant 1.000000e+00 : f32
    %326 = vector.broadcast %cst_73 : f32 to vector<8x32xf32>
    %327 = arith.addf %326, %325 : vector<8x32xf32>
    %328 = arith.divf %326, %327 : vector<8x32xf32>
    %329 = arith.mulf %320, %268 : vector<8x32xf32>
    %330 = arith.mulf %314, %322 : vector<8x32xf32>
    %331 = arith.addf %329, %330 : vector<8x32xf32>
    %332 = math.tanh %331 : vector<8x32xf32>
    %333 = arith.mulf %328, %332 : vector<8x32xf32>
    %334 = vector.broadcast %c3_i32 : i32 to vector<8x1xi32>
    %335 = arith.cmpi sgt, %21, %334 : vector<8x1xi32>
    %336 = vector.broadcast %269 : i32 to vector<8x1xi32>
    %337 = arith.cmpi sgt, %21, %336 : vector<8x1xi32>
    %338 = vector.shape_cast %335 : vector<8x1xi1> to vector<8x1xi1>
    %339 = vector.broadcast %338 : vector<8x1xi1> to vector<8x32xi1>
    %340 = arith.select %339, %308, %259 : vector<8x32xi1>, vector<8x32xf32>
    %341 = vector.shape_cast %335 : vector<8x1xi1> to vector<8x1xi1>
    %342 = vector.broadcast %341 : vector<8x1xi1> to vector<8x32xi1>
    %343 = arith.select %342, %306, %262 : vector<8x32xi1>, vector<8x32xf32>
    %344 = vector.shape_cast %337 : vector<8x1xi1> to vector<8x1xi1>
    %345 = vector.broadcast %344 : vector<8x1xi1> to vector<8x32xi1>
    %346 = arith.select %345, %333, %265 : vector<8x32xi1>, vector<8x32xf32>
    %347 = vector.shape_cast %337 : vector<8x1xi1> to vector<8x1xi1>
    %348 = vector.broadcast %347 : vector<8x1xi1> to vector<8x32xi1>
    %349 = arith.select %348, %331, %268 : vector<8x32xi1>, vector<8x32xf32>
    %c4_i32 = arith.constant 4 : i32
    %c15_i32_74 = arith.constant 15 : i32
    %350 = arith.subi %c15_i32_74, %c4_i32 : i32
    %c8_i32_75 = arith.constant 8 : i32
    %351 = arith.muli %c4_i32, %c8_i32_75 : i32
    %352 = tpu.assume_multiple %351, 8 : i32
    %c8_i32_76 = arith.constant 8 : i32
    %353 = arith.muli %350, %c8_i32_76 : i32
    %354 = tpu.assume_multiple %353, 8 : i32
    %355 = arith.index_cast %352 : i32 to index
    %c0_77 = arith.constant 0 : index
    %356 = vector.load %arg13[%355, %c0_77] : memref<128x256xf32, #tpu.memory_space<vmem>>, vector<8x256xf32>
    %357 = arith.index_cast %354 : i32 to index
    %c0_78 = arith.constant 0 : index
    %358 = vector.load %arg13[%357, %c0_78] : memref<128x256xf32, #tpu.memory_space<vmem>>, vector<8x256xf32>
    %359 = vector.extract_strided_slice %356 {offsets = [0, 0], sizes = [8, 128], strides = [1, 1]} : vector<8x256xf32> to vector<8x128xf32>
    %cst_79 = arith.constant dense<0.000000e+00> : vector<8x128xf32>
    %360 = tpu.matmul %340, %23, %cst_79 {dimension_numbers = #tpu.dot_dimension_numbers<[1], [0], [0], [1], [0, 0, 1, 1], [], []>} : vector<8x32xf32>, vector<32x128xf32>, vector<8x128xf32> -> vector<8x128xf32>
    %361 = arith.addf %359, %360 : vector<8x128xf32>
    %362 = vector.extract_strided_slice %358 {offsets = [0, 128], sizes = [8, 128], strides = [1, 1]} : vector<8x256xf32> to vector<8x128xf32>
    %cst_80 = arith.constant dense<0.000000e+00> : vector<8x128xf32>
    %363 = tpu.matmul %346, %24, %cst_80 {dimension_numbers = #tpu.dot_dimension_numbers<[1], [0], [0], [1], [0, 0, 1, 1], [], []>} : vector<8x32xf32>, vector<32x128xf32>, vector<8x128xf32> -> vector<8x128xf32>
    %364 = arith.addf %362, %363 : vector<8x128xf32>
    %365 = vector.extract_strided_slice %361 {offsets = [0, 0], sizes = [8, 32], strides = [1, 1]} : vector<8x128xf32> to vector<8x32xf32>
    %366 = arith.negf %365 : vector<8x32xf32>
    %367 = math.exp %366 : vector<8x32xf32>
    %cst_81 = arith.constant 1.000000e+00 : f32
    %368 = vector.broadcast %cst_81 : f32 to vector<8x32xf32>
    %369 = arith.addf %368, %367 : vector<8x32xf32>
    %370 = arith.divf %368, %369 : vector<8x32xf32>
    %371 = vector.extract_strided_slice %361 {offsets = [0, 32], sizes = [8, 32], strides = [1, 1]} : vector<8x128xf32> to vector<8x32xf32>
    %372 = arith.negf %371 : vector<8x32xf32>
    %373 = math.exp %372 : vector<8x32xf32>
    %cst_82 = arith.constant 1.000000e+00 : f32
    %374 = vector.broadcast %cst_82 : f32 to vector<8x32xf32>
    %375 = arith.addf %374, %373 : vector<8x32xf32>
    %376 = arith.divf %374, %375 : vector<8x32xf32>
    %377 = vector.extract_strided_slice %361 {offsets = [0, 64], sizes = [8, 32], strides = [1, 1]} : vector<8x128xf32> to vector<8x32xf32>
    %378 = math.tanh %377 : vector<8x32xf32>
    %379 = vector.extract_strided_slice %361 {offsets = [0, 96], sizes = [8, 32], strides = [1, 1]} : vector<8x128xf32> to vector<8x32xf32>
    %380 = arith.negf %379 : vector<8x32xf32>
    %381 = math.exp %380 : vector<8x32xf32>
    %cst_83 = arith.constant 1.000000e+00 : f32
    %382 = vector.broadcast %cst_83 : f32 to vector<8x32xf32>
    %383 = arith.addf %382, %381 : vector<8x32xf32>
    %384 = arith.divf %382, %383 : vector<8x32xf32>
    %385 = arith.mulf %376, %343 : vector<8x32xf32>
    %386 = arith.mulf %370, %378 : vector<8x32xf32>
    %387 = arith.addf %385, %386 : vector<8x32xf32>
    %388 = math.tanh %387 : vector<8x32xf32>
    %389 = arith.mulf %384, %388 : vector<8x32xf32>
    %390 = vector.extract_strided_slice %364 {offsets = [0, 0], sizes = [8, 32], strides = [1, 1]} : vector<8x128xf32> to vector<8x32xf32>
    %391 = arith.negf %390 : vector<8x32xf32>
    %392 = math.exp %391 : vector<8x32xf32>
    %cst_84 = arith.constant 1.000000e+00 : f32
    %393 = vector.broadcast %cst_84 : f32 to vector<8x32xf32>
    %394 = arith.addf %393, %392 : vector<8x32xf32>
    %395 = arith.divf %393, %394 : vector<8x32xf32>
    %396 = vector.extract_strided_slice %364 {offsets = [0, 32], sizes = [8, 32], strides = [1, 1]} : vector<8x128xf32> to vector<8x32xf32>
    %397 = arith.negf %396 : vector<8x32xf32>
    %398 = math.exp %397 : vector<8x32xf32>
    %cst_85 = arith.constant 1.000000e+00 : f32
    %399 = vector.broadcast %cst_85 : f32 to vector<8x32xf32>
    %400 = arith.addf %399, %398 : vector<8x32xf32>
    %401 = arith.divf %399, %400 : vector<8x32xf32>
    %402 = vector.extract_strided_slice %364 {offsets = [0, 64], sizes = [8, 32], strides = [1, 1]} : vector<8x128xf32> to vector<8x32xf32>
    %403 = math.tanh %402 : vector<8x32xf32>
    %404 = vector.extract_strided_slice %364 {offsets = [0, 96], sizes = [8, 32], strides = [1, 1]} : vector<8x128xf32> to vector<8x32xf32>
    %405 = arith.negf %404 : vector<8x32xf32>
    %406 = math.exp %405 : vector<8x32xf32>
    %cst_86 = arith.constant 1.000000e+00 : f32
    %407 = vector.broadcast %cst_86 : f32 to vector<8x32xf32>
    %408 = arith.addf %407, %406 : vector<8x32xf32>
    %409 = arith.divf %407, %408 : vector<8x32xf32>
    %410 = arith.mulf %401, %349 : vector<8x32xf32>
    %411 = arith.mulf %395, %403 : vector<8x32xf32>
    %412 = arith.addf %410, %411 : vector<8x32xf32>
    %413 = math.tanh %412 : vector<8x32xf32>
    %414 = arith.mulf %409, %413 : vector<8x32xf32>
    %415 = vector.broadcast %c4_i32 : i32 to vector<8x1xi32>
    %416 = arith.cmpi sgt, %21, %415 : vector<8x1xi32>
    %417 = vector.broadcast %350 : i32 to vector<8x1xi32>
    %418 = arith.cmpi sgt, %21, %417 : vector<8x1xi32>
    %419 = vector.shape_cast %416 : vector<8x1xi1> to vector<8x1xi1>
    %420 = vector.broadcast %419 : vector<8x1xi1> to vector<8x32xi1>
    %421 = arith.select %420, %389, %340 : vector<8x32xi1>, vector<8x32xf32>
    %422 = vector.shape_cast %416 : vector<8x1xi1> to vector<8x1xi1>
    %423 = vector.broadcast %422 : vector<8x1xi1> to vector<8x32xi1>
    %424 = arith.select %423, %387, %343 : vector<8x32xi1>, vector<8x32xf32>
    %425 = vector.shape_cast %418 : vector<8x1xi1> to vector<8x1xi1>
    %426 = vector.broadcast %425 : vector<8x1xi1> to vector<8x32xi1>
    %427 = arith.select %426, %414, %346 : vector<8x32xi1>, vector<8x32xf32>
    %428 = vector.shape_cast %418 : vector<8x1xi1> to vector<8x1xi1>
    %429 = vector.broadcast %428 : vector<8x1xi1> to vector<8x32xi1>
    %430 = arith.select %429, %412, %349 : vector<8x32xi1>, vector<8x32xf32>
    %c5_i32 = arith.constant 5 : i32
    %c15_i32_87 = arith.constant 15 : i32
    %431 = arith.subi %c15_i32_87, %c5_i32 : i32
    %c8_i32_88 = arith.constant 8 : i32
    %432 = arith.muli %c5_i32, %c8_i32_88 : i32
    %433 = tpu.assume_multiple %432, 8 : i32
    %c8_i32_89 = arith.constant 8 : i32
    %434 = arith.muli %431, %c8_i32_89 : i32
    %435 = tpu.assume_multiple %434, 8 : i32
    %436 = arith.index_cast %433 : i32 to index
    %c0_90 = arith.constant 0 : index
    %437 = vector.load %arg13[%436, %c0_90] : memref<128x256xf32, #tpu.memory_space<vmem>>, vector<8x256xf32>
    %438 = arith.index_cast %435 : i32 to index
    %c0_91 = arith.constant 0 : index
    %439 = vector.load %arg13[%438, %c0_91] : memref<128x256xf32, #tpu.memory_space<vmem>>, vector<8x256xf32>
    %440 = vector.extract_strided_slice %437 {offsets = [0, 0], sizes = [8, 128], strides = [1, 1]} : vector<8x256xf32> to vector<8x128xf32>
    %cst_92 = arith.constant dense<0.000000e+00> : vector<8x128xf32>
    %441 = tpu.matmul %421, %23, %cst_92 {dimension_numbers = #tpu.dot_dimension_numbers<[1], [0], [0], [1], [0, 0, 1, 1], [], []>} : vector<8x32xf32>, vector<32x128xf32>, vector<8x128xf32> -> vector<8x128xf32>
    %442 = arith.addf %440, %441 : vector<8x128xf32>
    %443 = vector.extract_strided_slice %439 {offsets = [0, 128], sizes = [8, 128], strides = [1, 1]} : vector<8x256xf32> to vector<8x128xf32>
    %cst_93 = arith.constant dense<0.000000e+00> : vector<8x128xf32>
    %444 = tpu.matmul %427, %24, %cst_93 {dimension_numbers = #tpu.dot_dimension_numbers<[1], [0], [0], [1], [0, 0, 1, 1], [], []>} : vector<8x32xf32>, vector<32x128xf32>, vector<8x128xf32> -> vector<8x128xf32>
    %445 = arith.addf %443, %444 : vector<8x128xf32>
    %446 = vector.extract_strided_slice %442 {offsets = [0, 0], sizes = [8, 32], strides = [1, 1]} : vector<8x128xf32> to vector<8x32xf32>
    %447 = arith.negf %446 : vector<8x32xf32>
    %448 = math.exp %447 : vector<8x32xf32>
    %cst_94 = arith.constant 1.000000e+00 : f32
    %449 = vector.broadcast %cst_94 : f32 to vector<8x32xf32>
    %450 = arith.addf %449, %448 : vector<8x32xf32>
    %451 = arith.divf %449, %450 : vector<8x32xf32>
    %452 = vector.extract_strided_slice %442 {offsets = [0, 32], sizes = [8, 32], strides = [1, 1]} : vector<8x128xf32> to vector<8x32xf32>
    %453 = arith.negf %452 : vector<8x32xf32>
    %454 = math.exp %453 : vector<8x32xf32>
    %cst_95 = arith.constant 1.000000e+00 : f32
    %455 = vector.broadcast %cst_95 : f32 to vector<8x32xf32>
    %456 = arith.addf %455, %454 : vector<8x32xf32>
    %457 = arith.divf %455, %456 : vector<8x32xf32>
    %458 = vector.extract_strided_slice %442 {offsets = [0, 64], sizes = [8, 32], strides = [1, 1]} : vector<8x128xf32> to vector<8x32xf32>
    %459 = math.tanh %458 : vector<8x32xf32>
    %460 = vector.extract_strided_slice %442 {offsets = [0, 96], sizes = [8, 32], strides = [1, 1]} : vector<8x128xf32> to vector<8x32xf32>
    %461 = arith.negf %460 : vector<8x32xf32>
    %462 = math.exp %461 : vector<8x32xf32>
    %cst_96 = arith.constant 1.000000e+00 : f32
    %463 = vector.broadcast %cst_96 : f32 to vector<8x32xf32>
    %464 = arith.addf %463, %462 : vector<8x32xf32>
    %465 = arith.divf %463, %464 : vector<8x32xf32>
    %466 = arith.mulf %457, %424 : vector<8x32xf32>
    %467 = arith.mulf %451, %459 : vector<8x32xf32>
    %468 = arith.addf %466, %467 : vector<8x32xf32>
    %469 = math.tanh %468 : vector<8x32xf32>
    %470 = arith.mulf %465, %469 : vector<8x32xf32>
    %471 = vector.extract_strided_slice %445 {offsets = [0, 0], sizes = [8, 32], strides = [1, 1]} : vector<8x128xf32> to vector<8x32xf32>
    %472 = arith.negf %471 : vector<8x32xf32>
    %473 = math.exp %472 : vector<8x32xf32>
    %cst_97 = arith.constant 1.000000e+00 : f32
    %474 = vector.broadcast %cst_97 : f32 to vector<8x32xf32>
    %475 = arith.addf %474, %473 : vector<8x32xf32>
    %476 = arith.divf %474, %475 : vector<8x32xf32>
    %477 = vector.extract_strided_slice %445 {offsets = [0, 32], sizes = [8, 32], strides = [1, 1]} : vector<8x128xf32> to vector<8x32xf32>
    %478 = arith.negf %477 : vector<8x32xf32>
    %479 = math.exp %478 : vector<8x32xf32>
    %cst_98 = arith.constant 1.000000e+00 : f32
    %480 = vector.broadcast %cst_98 : f32 to vector<8x32xf32>
    %481 = arith.addf %480, %479 : vector<8x32xf32>
    %482 = arith.divf %480, %481 : vector<8x32xf32>
    %483 = vector.extract_strided_slice %445 {offsets = [0, 64], sizes = [8, 32], strides = [1, 1]} : vector<8x128xf32> to vector<8x32xf32>
    %484 = math.tanh %483 : vector<8x32xf32>
    %485 = vector.extract_strided_slice %445 {offsets = [0, 96], sizes = [8, 32], strides = [1, 1]} : vector<8x128xf32> to vector<8x32xf32>
    %486 = arith.negf %485 : vector<8x32xf32>
    %487 = math.exp %486 : vector<8x32xf32>
    %cst_99 = arith.constant 1.000000e+00 : f32
    %488 = vector.broadcast %cst_99 : f32 to vector<8x32xf32>
    %489 = arith.addf %488, %487 : vector<8x32xf32>
    %490 = arith.divf %488, %489 : vector<8x32xf32>
    %491 = arith.mulf %482, %430 : vector<8x32xf32>
    %492 = arith.mulf %476, %484 : vector<8x32xf32>
    %493 = arith.addf %491, %492 : vector<8x32xf32>
    %494 = math.tanh %493 : vector<8x32xf32>
    %495 = arith.mulf %490, %494 : vector<8x32xf32>
    %496 = vector.broadcast %c5_i32 : i32 to vector<8x1xi32>
    %497 = arith.cmpi sgt, %21, %496 : vector<8x1xi32>
    %498 = vector.broadcast %431 : i32 to vector<8x1xi32>
    %499 = arith.cmpi sgt, %21, %498 : vector<8x1xi32>
    %500 = vector.shape_cast %497 : vector<8x1xi1> to vector<8x1xi1>
    %501 = vector.broadcast %500 : vector<8x1xi1> to vector<8x32xi1>
    %502 = arith.select %501, %470, %421 : vector<8x32xi1>, vector<8x32xf32>
    %503 = vector.shape_cast %497 : vector<8x1xi1> to vector<8x1xi1>
    %504 = vector.broadcast %503 : vector<8x1xi1> to vector<8x32xi1>
    %505 = arith.select %504, %468, %424 : vector<8x32xi1>, vector<8x32xf32>
    %506 = vector.shape_cast %499 : vector<8x1xi1> to vector<8x1xi1>
    %507 = vector.broadcast %506 : vector<8x1xi1> to vector<8x32xi1>
    %508 = arith.select %507, %495, %427 : vector<8x32xi1>, vector<8x32xf32>
    %509 = vector.shape_cast %499 : vector<8x1xi1> to vector<8x1xi1>
    %510 = vector.broadcast %509 : vector<8x1xi1> to vector<8x32xi1>
    %511 = arith.select %510, %493, %430 : vector<8x32xi1>, vector<8x32xf32>
    %c6_i32 = arith.constant 6 : i32
    %c15_i32_100 = arith.constant 15 : i32
    %512 = arith.subi %c15_i32_100, %c6_i32 : i32
    %c8_i32_101 = arith.constant 8 : i32
    %513 = arith.muli %c6_i32, %c8_i32_101 : i32
    %514 = tpu.assume_multiple %513, 8 : i32
    %c8_i32_102 = arith.constant 8 : i32
    %515 = arith.muli %512, %c8_i32_102 : i32
    %516 = tpu.assume_multiple %515, 8 : i32
    %517 = arith.index_cast %514 : i32 to index
    %c0_103 = arith.constant 0 : index
    %518 = vector.load %arg13[%517, %c0_103] : memref<128x256xf32, #tpu.memory_space<vmem>>, vector<8x256xf32>
    %519 = arith.index_cast %516 : i32 to index
    %c0_104 = arith.constant 0 : index
    %520 = vector.load %arg13[%519, %c0_104] : memref<128x256xf32, #tpu.memory_space<vmem>>, vector<8x256xf32>
    %521 = vector.extract_strided_slice %518 {offsets = [0, 0], sizes = [8, 128], strides = [1, 1]} : vector<8x256xf32> to vector<8x128xf32>
    %cst_105 = arith.constant dense<0.000000e+00> : vector<8x128xf32>
    %522 = tpu.matmul %502, %23, %cst_105 {dimension_numbers = #tpu.dot_dimension_numbers<[1], [0], [0], [1], [0, 0, 1, 1], [], []>} : vector<8x32xf32>, vector<32x128xf32>, vector<8x128xf32> -> vector<8x128xf32>
    %523 = arith.addf %521, %522 : vector<8x128xf32>
    %524 = vector.extract_strided_slice %520 {offsets = [0, 128], sizes = [8, 128], strides = [1, 1]} : vector<8x256xf32> to vector<8x128xf32>
    %cst_106 = arith.constant dense<0.000000e+00> : vector<8x128xf32>
    %525 = tpu.matmul %508, %24, %cst_106 {dimension_numbers = #tpu.dot_dimension_numbers<[1], [0], [0], [1], [0, 0, 1, 1], [], []>} : vector<8x32xf32>, vector<32x128xf32>, vector<8x128xf32> -> vector<8x128xf32>
    %526 = arith.addf %524, %525 : vector<8x128xf32>
    %527 = vector.extract_strided_slice %523 {offsets = [0, 0], sizes = [8, 32], strides = [1, 1]} : vector<8x128xf32> to vector<8x32xf32>
    %528 = arith.negf %527 : vector<8x32xf32>
    %529 = math.exp %528 : vector<8x32xf32>
    %cst_107 = arith.constant 1.000000e+00 : f32
    %530 = vector.broadcast %cst_107 : f32 to vector<8x32xf32>
    %531 = arith.addf %530, %529 : vector<8x32xf32>
    %532 = arith.divf %530, %531 : vector<8x32xf32>
    %533 = vector.extract_strided_slice %523 {offsets = [0, 32], sizes = [8, 32], strides = [1, 1]} : vector<8x128xf32> to vector<8x32xf32>
    %534 = arith.negf %533 : vector<8x32xf32>
    %535 = math.exp %534 : vector<8x32xf32>
    %cst_108 = arith.constant 1.000000e+00 : f32
    %536 = vector.broadcast %cst_108 : f32 to vector<8x32xf32>
    %537 = arith.addf %536, %535 : vector<8x32xf32>
    %538 = arith.divf %536, %537 : vector<8x32xf32>
    %539 = vector.extract_strided_slice %523 {offsets = [0, 64], sizes = [8, 32], strides = [1, 1]} : vector<8x128xf32> to vector<8x32xf32>
    %540 = math.tanh %539 : vector<8x32xf32>
    %541 = vector.extract_strided_slice %523 {offsets = [0, 96], sizes = [8, 32], strides = [1, 1]} : vector<8x128xf32> to vector<8x32xf32>
    %542 = arith.negf %541 : vector<8x32xf32>
    %543 = math.exp %542 : vector<8x32xf32>
    %cst_109 = arith.constant 1.000000e+00 : f32
    %544 = vector.broadcast %cst_109 : f32 to vector<8x32xf32>
    %545 = arith.addf %544, %543 : vector<8x32xf32>
    %546 = arith.divf %544, %545 : vector<8x32xf32>
    %547 = arith.mulf %538, %505 : vector<8x32xf32>
    %548 = arith.mulf %532, %540 : vector<8x32xf32>
    %549 = arith.addf %547, %548 : vector<8x32xf32>
    %550 = math.tanh %549 : vector<8x32xf32>
    %551 = arith.mulf %546, %550 : vector<8x32xf32>
    %552 = vector.extract_strided_slice %526 {offsets = [0, 0], sizes = [8, 32], strides = [1, 1]} : vector<8x128xf32> to vector<8x32xf32>
    %553 = arith.negf %552 : vector<8x32xf32>
    %554 = math.exp %553 : vector<8x32xf32>
    %cst_110 = arith.constant 1.000000e+00 : f32
    %555 = vector.broadcast %cst_110 : f32 to vector<8x32xf32>
    %556 = arith.addf %555, %554 : vector<8x32xf32>
    %557 = arith.divf %555, %556 : vector<8x32xf32>
    %558 = vector.extract_strided_slice %526 {offsets = [0, 32], sizes = [8, 32], strides = [1, 1]} : vector<8x128xf32> to vector<8x32xf32>
    %559 = arith.negf %558 : vector<8x32xf32>
    %560 = math.exp %559 : vector<8x32xf32>
    %cst_111 = arith.constant 1.000000e+00 : f32
    %561 = vector.broadcast %cst_111 : f32 to vector<8x32xf32>
    %562 = arith.addf %561, %560 : vector<8x32xf32>
    %563 = arith.divf %561, %562 : vector<8x32xf32>
    %564 = vector.extract_strided_slice %526 {offsets = [0, 64], sizes = [8, 32], strides = [1, 1]} : vector<8x128xf32> to vector<8x32xf32>
    %565 = math.tanh %564 : vector<8x32xf32>
    %566 = vector.extract_strided_slice %526 {offsets = [0, 96], sizes = [8, 32], strides = [1, 1]} : vector<8x128xf32> to vector<8x32xf32>
    %567 = arith.negf %566 : vector<8x32xf32>
    %568 = math.exp %567 : vector<8x32xf32>
    %cst_112 = arith.constant 1.000000e+00 : f32
    %569 = vector.broadcast %cst_112 : f32 to vector<8x32xf32>
    %570 = arith.addf %569, %568 : vector<8x32xf32>
    %571 = arith.divf %569, %570 : vector<8x32xf32>
    %572 = arith.mulf %563, %511 : vector<8x32xf32>
    %573 = arith.mulf %557, %565 : vector<8x32xf32>
    %574 = arith.addf %572, %573 : vector<8x32xf32>
    %575 = math.tanh %574 : vector<8x32xf32>
    %576 = arith.mulf %571, %575 : vector<8x32xf32>
    %577 = vector.broadcast %c6_i32 : i32 to vector<8x1xi32>
    %578 = arith.cmpi sgt, %21, %577 : vector<8x1xi32>
    %579 = vector.broadcast %512 : i32 to vector<8x1xi32>
    %580 = arith.cmpi sgt, %21, %579 : vector<8x1xi32>
    %581 = vector.shape_cast %578 : vector<8x1xi1> to vector<8x1xi1>
    %582 = vector.broadcast %581 : vector<8x1xi1> to vector<8x32xi1>
    %583 = arith.select %582, %551, %502 : vector<8x32xi1>, vector<8x32xf32>
    %584 = vector.shape_cast %578 : vector<8x1xi1> to vector<8x1xi1>
    %585 = vector.broadcast %584 : vector<8x1xi1> to vector<8x32xi1>
    %586 = arith.select %585, %549, %505 : vector<8x32xi1>, vector<8x32xf32>
    %587 = vector.shape_cast %580 : vector<8x1xi1> to vector<8x1xi1>
    %588 = vector.broadcast %587 : vector<8x1xi1> to vector<8x32xi1>
    %589 = arith.select %588, %576, %508 : vector<8x32xi1>, vector<8x32xf32>
    %590 = vector.shape_cast %580 : vector<8x1xi1> to vector<8x1xi1>
    %591 = vector.broadcast %590 : vector<8x1xi1> to vector<8x32xi1>
    %592 = arith.select %591, %574, %511 : vector<8x32xi1>, vector<8x32xf32>
    %c7_i32 = arith.constant 7 : i32
    %c15_i32_113 = arith.constant 15 : i32
    %593 = arith.subi %c15_i32_113, %c7_i32 : i32
    %c8_i32_114 = arith.constant 8 : i32
    %594 = arith.muli %c7_i32, %c8_i32_114 : i32
    %595 = tpu.assume_multiple %594, 8 : i32
    %c8_i32_115 = arith.constant 8 : i32
    %596 = arith.muli %593, %c8_i32_115 : i32
    %597 = tpu.assume_multiple %596, 8 : i32
    %598 = arith.index_cast %595 : i32 to index
    %c0_116 = arith.constant 0 : index
    %599 = vector.load %arg13[%598, %c0_116] : memref<128x256xf32, #tpu.memory_space<vmem>>, vector<8x256xf32>
    %600 = arith.index_cast %597 : i32 to index
    %c0_117 = arith.constant 0 : index
    %601 = vector.load %arg13[%600, %c0_117] : memref<128x256xf32, #tpu.memory_space<vmem>>, vector<8x256xf32>
    %602 = vector.extract_strided_slice %599 {offsets = [0, 0], sizes = [8, 128], strides = [1, 1]} : vector<8x256xf32> to vector<8x128xf32>
    %cst_118 = arith.constant dense<0.000000e+00> : vector<8x128xf32>
    %603 = tpu.matmul %583, %23, %cst_118 {dimension_numbers = #tpu.dot_dimension_numbers<[1], [0], [0], [1], [0, 0, 1, 1], [], []>} : vector<8x32xf32>, vector<32x128xf32>, vector<8x128xf32> -> vector<8x128xf32>
    %604 = arith.addf %602, %603 : vector<8x128xf32>
    %605 = vector.extract_strided_slice %601 {offsets = [0, 128], sizes = [8, 128], strides = [1, 1]} : vector<8x256xf32> to vector<8x128xf32>
    %cst_119 = arith.constant dense<0.000000e+00> : vector<8x128xf32>
    %606 = tpu.matmul %589, %24, %cst_119 {dimension_numbers = #tpu.dot_dimension_numbers<[1], [0], [0], [1], [0, 0, 1, 1], [], []>} : vector<8x32xf32>, vector<32x128xf32>, vector<8x128xf32> -> vector<8x128xf32>
    %607 = arith.addf %605, %606 : vector<8x128xf32>
    %608 = vector.extract_strided_slice %604 {offsets = [0, 0], sizes = [8, 32], strides = [1, 1]} : vector<8x128xf32> to vector<8x32xf32>
    %609 = arith.negf %608 : vector<8x32xf32>
    %610 = math.exp %609 : vector<8x32xf32>
    %cst_120 = arith.constant 1.000000e+00 : f32
    %611 = vector.broadcast %cst_120 : f32 to vector<8x32xf32>
    %612 = arith.addf %611, %610 : vector<8x32xf32>
    %613 = arith.divf %611, %612 : vector<8x32xf32>
    %614 = vector.extract_strided_slice %604 {offsets = [0, 32], sizes = [8, 32], strides = [1, 1]} : vector<8x128xf32> to vector<8x32xf32>
    %615 = arith.negf %614 : vector<8x32xf32>
    %616 = math.exp %615 : vector<8x32xf32>
    %cst_121 = arith.constant 1.000000e+00 : f32
    %617 = vector.broadcast %cst_121 : f32 to vector<8x32xf32>
    %618 = arith.addf %617, %616 : vector<8x32xf32>
    %619 = arith.divf %617, %618 : vector<8x32xf32>
    %620 = vector.extract_strided_slice %604 {offsets = [0, 64], sizes = [8, 32], strides = [1, 1]} : vector<8x128xf32> to vector<8x32xf32>
    %621 = math.tanh %620 : vector<8x32xf32>
    %622 = vector.extract_strided_slice %604 {offsets = [0, 96], sizes = [8, 32], strides = [1, 1]} : vector<8x128xf32> to vector<8x32xf32>
    %623 = arith.negf %622 : vector<8x32xf32>
    %624 = math.exp %623 : vector<8x32xf32>
    %cst_122 = arith.constant 1.000000e+00 : f32
    %625 = vector.broadcast %cst_122 : f32 to vector<8x32xf32>
    %626 = arith.addf %625, %624 : vector<8x32xf32>
    %627 = arith.divf %625, %626 : vector<8x32xf32>
    %628 = arith.mulf %619, %586 : vector<8x32xf32>
    %629 = arith.mulf %613, %621 : vector<8x32xf32>
    %630 = arith.addf %628, %629 : vector<8x32xf32>
    %631 = math.tanh %630 : vector<8x32xf32>
    %632 = arith.mulf %627, %631 : vector<8x32xf32>
    %633 = vector.extract_strided_slice %607 {offsets = [0, 0], sizes = [8, 32], strides = [1, 1]} : vector<8x128xf32> to vector<8x32xf32>
    %634 = arith.negf %633 : vector<8x32xf32>
    %635 = math.exp %634 : vector<8x32xf32>
    %cst_123 = arith.constant 1.000000e+00 : f32
    %636 = vector.broadcast %cst_123 : f32 to vector<8x32xf32>
    %637 = arith.addf %636, %635 : vector<8x32xf32>
    %638 = arith.divf %636, %637 : vector<8x32xf32>
    %639 = vector.extract_strided_slice %607 {offsets = [0, 32], sizes = [8, 32], strides = [1, 1]} : vector<8x128xf32> to vector<8x32xf32>
    %640 = arith.negf %639 : vector<8x32xf32>
    %641 = math.exp %640 : vector<8x32xf32>
    %cst_124 = arith.constant 1.000000e+00 : f32
    %642 = vector.broadcast %cst_124 : f32 to vector<8x32xf32>
    %643 = arith.addf %642, %641 : vector<8x32xf32>
    %644 = arith.divf %642, %643 : vector<8x32xf32>
    %645 = vector.extract_strided_slice %607 {offsets = [0, 64], sizes = [8, 32], strides = [1, 1]} : vector<8x128xf32> to vector<8x32xf32>
    %646 = math.tanh %645 : vector<8x32xf32>
    %647 = vector.extract_strided_slice %607 {offsets = [0, 96], sizes = [8, 32], strides = [1, 1]} : vector<8x128xf32> to vector<8x32xf32>
    %648 = arith.negf %647 : vector<8x32xf32>
    %649 = math.exp %648 : vector<8x32xf32>
    %cst_125 = arith.constant 1.000000e+00 : f32
    %650 = vector.broadcast %cst_125 : f32 to vector<8x32xf32>
    %651 = arith.addf %650, %649 : vector<8x32xf32>
    %652 = arith.divf %650, %651 : vector<8x32xf32>
    %653 = arith.mulf %644, %592 : vector<8x32xf32>
    %654 = arith.mulf %638, %646 : vector<8x32xf32>
    %655 = arith.addf %653, %654 : vector<8x32xf32>
    %656 = math.tanh %655 : vector<8x32xf32>
    %657 = arith.mulf %652, %656 : vector<8x32xf32>
    %658 = vector.broadcast %c7_i32 : i32 to vector<8x1xi32>
    %659 = arith.cmpi sgt, %21, %658 : vector<8x1xi32>
    %660 = vector.broadcast %593 : i32 to vector<8x1xi32>
    %661 = arith.cmpi sgt, %21, %660 : vector<8x1xi32>
    %662 = vector.shape_cast %659 : vector<8x1xi1> to vector<8x1xi1>
    %663 = vector.broadcast %662 : vector<8x1xi1> to vector<8x32xi1>
    %664 = arith.select %663, %632, %583 : vector<8x32xi1>, vector<8x32xf32>
    %665 = vector.shape_cast %659 : vector<8x1xi1> to vector<8x1xi1>
    %666 = vector.broadcast %665 : vector<8x1xi1> to vector<8x32xi1>
    %667 = arith.select %666, %630, %586 : vector<8x32xi1>, vector<8x32xf32>
    %668 = vector.shape_cast %661 : vector<8x1xi1> to vector<8x1xi1>
    %669 = vector.broadcast %668 : vector<8x1xi1> to vector<8x32xi1>
    %670 = arith.select %669, %657, %589 : vector<8x32xi1>, vector<8x32xf32>
    %671 = vector.shape_cast %661 : vector<8x1xi1> to vector<8x1xi1>
    %672 = vector.broadcast %671 : vector<8x1xi1> to vector<8x32xi1>
    %673 = arith.select %672, %655, %592 : vector<8x32xi1>, vector<8x32xf32>
    %c8_i32_126 = arith.constant 8 : i32
    %c15_i32_127 = arith.constant 15 : i32
    %674 = arith.subi %c15_i32_127, %c8_i32_126 : i32
    %c8_i32_128 = arith.constant 8 : i32
    %675 = arith.muli %c8_i32_126, %c8_i32_128 : i32
    %676 = tpu.assume_multiple %675, 8 : i32
    %c8_i32_129 = arith.constant 8 : i32
    %677 = arith.muli %674, %c8_i32_129 : i32
    %678 = tpu.assume_multiple %677, 8 : i32
    %679 = arith.index_cast %676 : i32 to index
    %c0_130 = arith.constant 0 : index
    %680 = vector.load %arg13[%679, %c0_130] : memref<128x256xf32, #tpu.memory_space<vmem>>, vector<8x256xf32>
    %681 = arith.index_cast %678 : i32 to index
    %c0_131 = arith.constant 0 : index
    %682 = vector.load %arg13[%681, %c0_131] : memref<128x256xf32, #tpu.memory_space<vmem>>, vector<8x256xf32>
    %683 = vector.extract_strided_slice %680 {offsets = [0, 0], sizes = [8, 128], strides = [1, 1]} : vector<8x256xf32> to vector<8x128xf32>
    %cst_132 = arith.constant dense<0.000000e+00> : vector<8x128xf32>
    %684 = tpu.matmul %664, %23, %cst_132 {dimension_numbers = #tpu.dot_dimension_numbers<[1], [0], [0], [1], [0, 0, 1, 1], [], []>} : vector<8x32xf32>, vector<32x128xf32>, vector<8x128xf32> -> vector<8x128xf32>
    %685 = arith.addf %683, %684 : vector<8x128xf32>
    %686 = vector.extract_strided_slice %682 {offsets = [0, 128], sizes = [8, 128], strides = [1, 1]} : vector<8x256xf32> to vector<8x128xf32>
    %cst_133 = arith.constant dense<0.000000e+00> : vector<8x128xf32>
    %687 = tpu.matmul %670, %24, %cst_133 {dimension_numbers = #tpu.dot_dimension_numbers<[1], [0], [0], [1], [0, 0, 1, 1], [], []>} : vector<8x32xf32>, vector<32x128xf32>, vector<8x128xf32> -> vector<8x128xf32>
    %688 = arith.addf %686, %687 : vector<8x128xf32>
    %689 = vector.extract_strided_slice %685 {offsets = [0, 0], sizes = [8, 32], strides = [1, 1]} : vector<8x128xf32> to vector<8x32xf32>
    %690 = arith.negf %689 : vector<8x32xf32>
    %691 = math.exp %690 : vector<8x32xf32>
    %cst_134 = arith.constant 1.000000e+00 : f32
    %692 = vector.broadcast %cst_134 : f32 to vector<8x32xf32>
    %693 = arith.addf %692, %691 : vector<8x32xf32>
    %694 = arith.divf %692, %693 : vector<8x32xf32>
    %695 = vector.extract_strided_slice %685 {offsets = [0, 32], sizes = [8, 32], strides = [1, 1]} : vector<8x128xf32> to vector<8x32xf32>
    %696 = arith.negf %695 : vector<8x32xf32>
    %697 = math.exp %696 : vector<8x32xf32>
    %cst_135 = arith.constant 1.000000e+00 : f32
    %698 = vector.broadcast %cst_135 : f32 to vector<8x32xf32>
    %699 = arith.addf %698, %697 : vector<8x32xf32>
    %700 = arith.divf %698, %699 : vector<8x32xf32>
    %701 = vector.extract_strided_slice %685 {offsets = [0, 64], sizes = [8, 32], strides = [1, 1]} : vector<8x128xf32> to vector<8x32xf32>
    %702 = math.tanh %701 : vector<8x32xf32>
    %703 = vector.extract_strided_slice %685 {offsets = [0, 96], sizes = [8, 32], strides = [1, 1]} : vector<8x128xf32> to vector<8x32xf32>
    %704 = arith.negf %703 : vector<8x32xf32>
    %705 = math.exp %704 : vector<8x32xf32>
    %cst_136 = arith.constant 1.000000e+00 : f32
    %706 = vector.broadcast %cst_136 : f32 to vector<8x32xf32>
    %707 = arith.addf %706, %705 : vector<8x32xf32>
    %708 = arith.divf %706, %707 : vector<8x32xf32>
    %709 = arith.mulf %700, %667 : vector<8x32xf32>
    %710 = arith.mulf %694, %702 : vector<8x32xf32>
    %711 = arith.addf %709, %710 : vector<8x32xf32>
    %712 = math.tanh %711 : vector<8x32xf32>
    %713 = arith.mulf %708, %712 : vector<8x32xf32>
    %714 = vector.extract_strided_slice %688 {offsets = [0, 0], sizes = [8, 32], strides = [1, 1]} : vector<8x128xf32> to vector<8x32xf32>
    %715 = arith.negf %714 : vector<8x32xf32>
    %716 = math.exp %715 : vector<8x32xf32>
    %cst_137 = arith.constant 1.000000e+00 : f32
    %717 = vector.broadcast %cst_137 : f32 to vector<8x32xf32>
    %718 = arith.addf %717, %716 : vector<8x32xf32>
    %719 = arith.divf %717, %718 : vector<8x32xf32>
    %720 = vector.extract_strided_slice %688 {offsets = [0, 32], sizes = [8, 32], strides = [1, 1]} : vector<8x128xf32> to vector<8x32xf32>
    %721 = arith.negf %720 : vector<8x32xf32>
    %722 = math.exp %721 : vector<8x32xf32>
    %cst_138 = arith.constant 1.000000e+00 : f32
    %723 = vector.broadcast %cst_138 : f32 to vector<8x32xf32>
    %724 = arith.addf %723, %722 : vector<8x32xf32>
    %725 = arith.divf %723, %724 : vector<8x32xf32>
    %726 = vector.extract_strided_slice %688 {offsets = [0, 64], sizes = [8, 32], strides = [1, 1]} : vector<8x128xf32> to vector<8x32xf32>
    %727 = math.tanh %726 : vector<8x32xf32>
    %728 = vector.extract_strided_slice %688 {offsets = [0, 96], sizes = [8, 32], strides = [1, 1]} : vector<8x128xf32> to vector<8x32xf32>
    %729 = arith.negf %728 : vector<8x32xf32>
    %730 = math.exp %729 : vector<8x32xf32>
    %cst_139 = arith.constant 1.000000e+00 : f32
    %731 = vector.broadcast %cst_139 : f32 to vector<8x32xf32>
    %732 = arith.addf %731, %730 : vector<8x32xf32>
    %733 = arith.divf %731, %732 : vector<8x32xf32>
    %734 = arith.mulf %725, %673 : vector<8x32xf32>
    %735 = arith.mulf %719, %727 : vector<8x32xf32>
    %736 = arith.addf %734, %735 : vector<8x32xf32>
    %737 = math.tanh %736 : vector<8x32xf32>
    %738 = arith.mulf %733, %737 : vector<8x32xf32>
    %739 = vector.broadcast %c8_i32_126 : i32 to vector<8x1xi32>
    %740 = arith.cmpi sgt, %21, %739 : vector<8x1xi32>
    %741 = vector.broadcast %674 : i32 to vector<8x1xi32>
    %742 = arith.cmpi sgt, %21, %741 : vector<8x1xi32>
    %743 = vector.shape_cast %740 : vector<8x1xi1> to vector<8x1xi1>
    %744 = vector.broadcast %743 : vector<8x1xi1> to vector<8x32xi1>
    %745 = arith.select %744, %713, %664 : vector<8x32xi1>, vector<8x32xf32>
    %746 = vector.shape_cast %740 : vector<8x1xi1> to vector<8x1xi1>
    %747 = vector.broadcast %746 : vector<8x1xi1> to vector<8x32xi1>
    %748 = arith.select %747, %711, %667 : vector<8x32xi1>, vector<8x32xf32>
    %749 = vector.shape_cast %742 : vector<8x1xi1> to vector<8x1xi1>
    %750 = vector.broadcast %749 : vector<8x1xi1> to vector<8x32xi1>
    %751 = arith.select %750, %738, %670 : vector<8x32xi1>, vector<8x32xf32>
    %752 = vector.shape_cast %742 : vector<8x1xi1> to vector<8x1xi1>
    %753 = vector.broadcast %752 : vector<8x1xi1> to vector<8x32xi1>
    %754 = arith.select %753, %736, %673 : vector<8x32xi1>, vector<8x32xf32>
    %c9_i32 = arith.constant 9 : i32
    %c15_i32_140 = arith.constant 15 : i32
    %755 = arith.subi %c15_i32_140, %c9_i32 : i32
    %c8_i32_141 = arith.constant 8 : i32
    %756 = arith.muli %c9_i32, %c8_i32_141 : i32
    %757 = tpu.assume_multiple %756, 8 : i32
    %c8_i32_142 = arith.constant 8 : i32
    %758 = arith.muli %755, %c8_i32_142 : i32
    %759 = tpu.assume_multiple %758, 8 : i32
    %760 = arith.index_cast %757 : i32 to index
    %c0_143 = arith.constant 0 : index
    %761 = vector.load %arg13[%760, %c0_143] : memref<128x256xf32, #tpu.memory_space<vmem>>, vector<8x256xf32>
    %762 = arith.index_cast %759 : i32 to index
    %c0_144 = arith.constant 0 : index
    %763 = vector.load %arg13[%762, %c0_144] : memref<128x256xf32, #tpu.memory_space<vmem>>, vector<8x256xf32>
    %764 = vector.extract_strided_slice %761 {offsets = [0, 0], sizes = [8, 128], strides = [1, 1]} : vector<8x256xf32> to vector<8x128xf32>
    %cst_145 = arith.constant dense<0.000000e+00> : vector<8x128xf32>
    %765 = tpu.matmul %745, %23, %cst_145 {dimension_numbers = #tpu.dot_dimension_numbers<[1], [0], [0], [1], [0, 0, 1, 1], [], []>} : vector<8x32xf32>, vector<32x128xf32>, vector<8x128xf32> -> vector<8x128xf32>
    %766 = arith.addf %764, %765 : vector<8x128xf32>
    %767 = vector.extract_strided_slice %763 {offsets = [0, 128], sizes = [8, 128], strides = [1, 1]} : vector<8x256xf32> to vector<8x128xf32>
    %cst_146 = arith.constant dense<0.000000e+00> : vector<8x128xf32>
    %768 = tpu.matmul %751, %24, %cst_146 {dimension_numbers = #tpu.dot_dimension_numbers<[1], [0], [0], [1], [0, 0, 1, 1], [], []>} : vector<8x32xf32>, vector<32x128xf32>, vector<8x128xf32> -> vector<8x128xf32>
    %769 = arith.addf %767, %768 : vector<8x128xf32>
    %770 = vector.extract_strided_slice %766 {offsets = [0, 0], sizes = [8, 32], strides = [1, 1]} : vector<8x128xf32> to vector<8x32xf32>
    %771 = arith.negf %770 : vector<8x32xf32>
    %772 = math.exp %771 : vector<8x32xf32>
    %cst_147 = arith.constant 1.000000e+00 : f32
    %773 = vector.broadcast %cst_147 : f32 to vector<8x32xf32>
    %774 = arith.addf %773, %772 : vector<8x32xf32>
    %775 = arith.divf %773, %774 : vector<8x32xf32>
    %776 = vector.extract_strided_slice %766 {offsets = [0, 32], sizes = [8, 32], strides = [1, 1]} : vector<8x128xf32> to vector<8x32xf32>
    %777 = arith.negf %776 : vector<8x32xf32>
    %778 = math.exp %777 : vector<8x32xf32>
    %cst_148 = arith.constant 1.000000e+00 : f32
    %779 = vector.broadcast %cst_148 : f32 to vector<8x32xf32>
    %780 = arith.addf %779, %778 : vector<8x32xf32>
    %781 = arith.divf %779, %780 : vector<8x32xf32>
    %782 = vector.extract_strided_slice %766 {offsets = [0, 64], sizes = [8, 32], strides = [1, 1]} : vector<8x128xf32> to vector<8x32xf32>
    %783 = math.tanh %782 : vector<8x32xf32>
    %784 = vector.extract_strided_slice %766 {offsets = [0, 96], sizes = [8, 32], strides = [1, 1]} : vector<8x128xf32> to vector<8x32xf32>
    %785 = arith.negf %784 : vector<8x32xf32>
    %786 = math.exp %785 : vector<8x32xf32>
    %cst_149 = arith.constant 1.000000e+00 : f32
    %787 = vector.broadcast %cst_149 : f32 to vector<8x32xf32>
    %788 = arith.addf %787, %786 : vector<8x32xf32>
    %789 = arith.divf %787, %788 : vector<8x32xf32>
    %790 = arith.mulf %781, %748 : vector<8x32xf32>
    %791 = arith.mulf %775, %783 : vector<8x32xf32>
    %792 = arith.addf %790, %791 : vector<8x32xf32>
    %793 = math.tanh %792 : vector<8x32xf32>
    %794 = arith.mulf %789, %793 : vector<8x32xf32>
    %795 = vector.extract_strided_slice %769 {offsets = [0, 0], sizes = [8, 32], strides = [1, 1]} : vector<8x128xf32> to vector<8x32xf32>
    %796 = arith.negf %795 : vector<8x32xf32>
    %797 = math.exp %796 : vector<8x32xf32>
    %cst_150 = arith.constant 1.000000e+00 : f32
    %798 = vector.broadcast %cst_150 : f32 to vector<8x32xf32>
    %799 = arith.addf %798, %797 : vector<8x32xf32>
    %800 = arith.divf %798, %799 : vector<8x32xf32>
    %801 = vector.extract_strided_slice %769 {offsets = [0, 32], sizes = [8, 32], strides = [1, 1]} : vector<8x128xf32> to vector<8x32xf32>
    %802 = arith.negf %801 : vector<8x32xf32>
    %803 = math.exp %802 : vector<8x32xf32>
    %cst_151 = arith.constant 1.000000e+00 : f32
    %804 = vector.broadcast %cst_151 : f32 to vector<8x32xf32>
    %805 = arith.addf %804, %803 : vector<8x32xf32>
    %806 = arith.divf %804, %805 : vector<8x32xf32>
    %807 = vector.extract_strided_slice %769 {offsets = [0, 64], sizes = [8, 32], strides = [1, 1]} : vector<8x128xf32> to vector<8x32xf32>
    %808 = math.tanh %807 : vector<8x32xf32>
    %809 = vector.extract_strided_slice %769 {offsets = [0, 96], sizes = [8, 32], strides = [1, 1]} : vector<8x128xf32> to vector<8x32xf32>
    %810 = arith.negf %809 : vector<8x32xf32>
    %811 = math.exp %810 : vector<8x32xf32>
    %cst_152 = arith.constant 1.000000e+00 : f32
    %812 = vector.broadcast %cst_152 : f32 to vector<8x32xf32>
    %813 = arith.addf %812, %811 : vector<8x32xf32>
    %814 = arith.divf %812, %813 : vector<8x32xf32>
    %815 = arith.mulf %806, %754 : vector<8x32xf32>
    %816 = arith.mulf %800, %808 : vector<8x32xf32>
    %817 = arith.addf %815, %816 : vector<8x32xf32>
    %818 = math.tanh %817 : vector<8x32xf32>
    %819 = arith.mulf %814, %818 : vector<8x32xf32>
    %820 = vector.broadcast %c9_i32 : i32 to vector<8x1xi32>
    %821 = arith.cmpi sgt, %21, %820 : vector<8x1xi32>
    %822 = vector.broadcast %755 : i32 to vector<8x1xi32>
    %823 = arith.cmpi sgt, %21, %822 : vector<8x1xi32>
    %824 = vector.shape_cast %821 : vector<8x1xi1> to vector<8x1xi1>
    %825 = vector.broadcast %824 : vector<8x1xi1> to vector<8x32xi1>
    %826 = arith.select %825, %794, %745 : vector<8x32xi1>, vector<8x32xf32>
    %827 = vector.shape_cast %821 : vector<8x1xi1> to vector<8x1xi1>
    %828 = vector.broadcast %827 : vector<8x1xi1> to vector<8x32xi1>
    %829 = arith.select %828, %792, %748 : vector<8x32xi1>, vector<8x32xf32>
    %830 = vector.shape_cast %823 : vector<8x1xi1> to vector<8x1xi1>
    %831 = vector.broadcast %830 : vector<8x1xi1> to vector<8x32xi1>
    %832 = arith.select %831, %819, %751 : vector<8x32xi1>, vector<8x32xf32>
    %833 = vector.shape_cast %823 : vector<8x1xi1> to vector<8x1xi1>
    %834 = vector.broadcast %833 : vector<8x1xi1> to vector<8x32xi1>
    %835 = arith.select %834, %817, %754 : vector<8x32xi1>, vector<8x32xf32>
    %c10_i32 = arith.constant 10 : i32
    %c15_i32_153 = arith.constant 15 : i32
    %836 = arith.subi %c15_i32_153, %c10_i32 : i32
    %c8_i32_154 = arith.constant 8 : i32
    %837 = arith.muli %c10_i32, %c8_i32_154 : i32
    %838 = tpu.assume_multiple %837, 8 : i32
    %c8_i32_155 = arith.constant 8 : i32
    %839 = arith.muli %836, %c8_i32_155 : i32
    %840 = tpu.assume_multiple %839, 8 : i32
    %841 = arith.index_cast %838 : i32 to index
    %c0_156 = arith.constant 0 : index
    %842 = vector.load %arg13[%841, %c0_156] : memref<128x256xf32, #tpu.memory_space<vmem>>, vector<8x256xf32>
    %843 = arith.index_cast %840 : i32 to index
    %c0_157 = arith.constant 0 : index
    %844 = vector.load %arg13[%843, %c0_157] : memref<128x256xf32, #tpu.memory_space<vmem>>, vector<8x256xf32>
    %845 = vector.extract_strided_slice %842 {offsets = [0, 0], sizes = [8, 128], strides = [1, 1]} : vector<8x256xf32> to vector<8x128xf32>
    %cst_158 = arith.constant dense<0.000000e+00> : vector<8x128xf32>
    %846 = tpu.matmul %826, %23, %cst_158 {dimension_numbers = #tpu.dot_dimension_numbers<[1], [0], [0], [1], [0, 0, 1, 1], [], []>} : vector<8x32xf32>, vector<32x128xf32>, vector<8x128xf32> -> vector<8x128xf32>
    %847 = arith.addf %845, %846 : vector<8x128xf32>
    %848 = vector.extract_strided_slice %844 {offsets = [0, 128], sizes = [8, 128], strides = [1, 1]} : vector<8x256xf32> to vector<8x128xf32>
    %cst_159 = arith.constant dense<0.000000e+00> : vector<8x128xf32>
    %849 = tpu.matmul %832, %24, %cst_159 {dimension_numbers = #tpu.dot_dimension_numbers<[1], [0], [0], [1], [0, 0, 1, 1], [], []>} : vector<8x32xf32>, vector<32x128xf32>, vector<8x128xf32> -> vector<8x128xf32>
    %850 = arith.addf %848, %849 : vector<8x128xf32>
    %851 = vector.extract_strided_slice %847 {offsets = [0, 0], sizes = [8, 32], strides = [1, 1]} : vector<8x128xf32> to vector<8x32xf32>
    %852 = arith.negf %851 : vector<8x32xf32>
    %853 = math.exp %852 : vector<8x32xf32>
    %cst_160 = arith.constant 1.000000e+00 : f32
    %854 = vector.broadcast %cst_160 : f32 to vector<8x32xf32>
    %855 = arith.addf %854, %853 : vector<8x32xf32>
    %856 = arith.divf %854, %855 : vector<8x32xf32>
    %857 = vector.extract_strided_slice %847 {offsets = [0, 32], sizes = [8, 32], strides = [1, 1]} : vector<8x128xf32> to vector<8x32xf32>
    %858 = arith.negf %857 : vector<8x32xf32>
    %859 = math.exp %858 : vector<8x32xf32>
    %cst_161 = arith.constant 1.000000e+00 : f32
    %860 = vector.broadcast %cst_161 : f32 to vector<8x32xf32>
    %861 = arith.addf %860, %859 : vector<8x32xf32>
    %862 = arith.divf %860, %861 : vector<8x32xf32>
    %863 = vector.extract_strided_slice %847 {offsets = [0, 64], sizes = [8, 32], strides = [1, 1]} : vector<8x128xf32> to vector<8x32xf32>
    %864 = math.tanh %863 : vector<8x32xf32>
    %865 = vector.extract_strided_slice %847 {offsets = [0, 96], sizes = [8, 32], strides = [1, 1]} : vector<8x128xf32> to vector<8x32xf32>
    %866 = arith.negf %865 : vector<8x32xf32>
    %867 = math.exp %866 : vector<8x32xf32>
    %cst_162 = arith.constant 1.000000e+00 : f32
    %868 = vector.broadcast %cst_162 : f32 to vector<8x32xf32>
    %869 = arith.addf %868, %867 : vector<8x32xf32>
    %870 = arith.divf %868, %869 : vector<8x32xf32>
    %871 = arith.mulf %862, %829 : vector<8x32xf32>
    %872 = arith.mulf %856, %864 : vector<8x32xf32>
    %873 = arith.addf %871, %872 : vector<8x32xf32>
    %874 = math.tanh %873 : vector<8x32xf32>
    %875 = arith.mulf %870, %874 : vector<8x32xf32>
    %876 = vector.extract_strided_slice %850 {offsets = [0, 0], sizes = [8, 32], strides = [1, 1]} : vector<8x128xf32> to vector<8x32xf32>
    %877 = arith.negf %876 : vector<8x32xf32>
    %878 = math.exp %877 : vector<8x32xf32>
    %cst_163 = arith.constant 1.000000e+00 : f32
    %879 = vector.broadcast %cst_163 : f32 to vector<8x32xf32>
    %880 = arith.addf %879, %878 : vector<8x32xf32>
    %881 = arith.divf %879, %880 : vector<8x32xf32>
    %882 = vector.extract_strided_slice %850 {offsets = [0, 32], sizes = [8, 32], strides = [1, 1]} : vector<8x128xf32> to vector<8x32xf32>
    %883 = arith.negf %882 : vector<8x32xf32>
    %884 = math.exp %883 : vector<8x32xf32>
    %cst_164 = arith.constant 1.000000e+00 : f32
    %885 = vector.broadcast %cst_164 : f32 to vector<8x32xf32>
    %886 = arith.addf %885, %884 : vector<8x32xf32>
    %887 = arith.divf %885, %886 : vector<8x32xf32>
    %888 = vector.extract_strided_slice %850 {offsets = [0, 64], sizes = [8, 32], strides = [1, 1]} : vector<8x128xf32> to vector<8x32xf32>
    %889 = math.tanh %888 : vector<8x32xf32>
    %890 = vector.extract_strided_slice %850 {offsets = [0, 96], sizes = [8, 32], strides = [1, 1]} : vector<8x128xf32> to vector<8x32xf32>
    %891 = arith.negf %890 : vector<8x32xf32>
    %892 = math.exp %891 : vector<8x32xf32>
    %cst_165 = arith.constant 1.000000e+00 : f32
    %893 = vector.broadcast %cst_165 : f32 to vector<8x32xf32>
    %894 = arith.addf %893, %892 : vector<8x32xf32>
    %895 = arith.divf %893, %894 : vector<8x32xf32>
    %896 = arith.mulf %887, %835 : vector<8x32xf32>
    %897 = arith.mulf %881, %889 : vector<8x32xf32>
    %898 = arith.addf %896, %897 : vector<8x32xf32>
    %899 = math.tanh %898 : vector<8x32xf32>
    %900 = arith.mulf %895, %899 : vector<8x32xf32>
    %901 = vector.broadcast %c10_i32 : i32 to vector<8x1xi32>
    %902 = arith.cmpi sgt, %21, %901 : vector<8x1xi32>
    %903 = vector.broadcast %836 : i32 to vector<8x1xi32>
    %904 = arith.cmpi sgt, %21, %903 : vector<8x1xi32>
    %905 = vector.shape_cast %902 : vector<8x1xi1> to vector<8x1xi1>
    %906 = vector.broadcast %905 : vector<8x1xi1> to vector<8x32xi1>
    %907 = arith.select %906, %875, %826 : vector<8x32xi1>, vector<8x32xf32>
    %908 = vector.shape_cast %902 : vector<8x1xi1> to vector<8x1xi1>
    %909 = vector.broadcast %908 : vector<8x1xi1> to vector<8x32xi1>
    %910 = arith.select %909, %873, %829 : vector<8x32xi1>, vector<8x32xf32>
    %911 = vector.shape_cast %904 : vector<8x1xi1> to vector<8x1xi1>
    %912 = vector.broadcast %911 : vector<8x1xi1> to vector<8x32xi1>
    %913 = arith.select %912, %900, %832 : vector<8x32xi1>, vector<8x32xf32>
    %914 = vector.shape_cast %904 : vector<8x1xi1> to vector<8x1xi1>
    %915 = vector.broadcast %914 : vector<8x1xi1> to vector<8x32xi1>
    %916 = arith.select %915, %898, %835 : vector<8x32xi1>, vector<8x32xf32>
    %c11_i32 = arith.constant 11 : i32
    %c15_i32_166 = arith.constant 15 : i32
    %917 = arith.subi %c15_i32_166, %c11_i32 : i32
    %c8_i32_167 = arith.constant 8 : i32
    %918 = arith.muli %c11_i32, %c8_i32_167 : i32
    %919 = tpu.assume_multiple %918, 8 : i32
    %c8_i32_168 = arith.constant 8 : i32
    %920 = arith.muli %917, %c8_i32_168 : i32
    %921 = tpu.assume_multiple %920, 8 : i32
    %922 = arith.index_cast %919 : i32 to index
    %c0_169 = arith.constant 0 : index
    %923 = vector.load %arg13[%922, %c0_169] : memref<128x256xf32, #tpu.memory_space<vmem>>, vector<8x256xf32>
    %924 = arith.index_cast %921 : i32 to index
    %c0_170 = arith.constant 0 : index
    %925 = vector.load %arg13[%924, %c0_170] : memref<128x256xf32, #tpu.memory_space<vmem>>, vector<8x256xf32>
    %926 = vector.extract_strided_slice %923 {offsets = [0, 0], sizes = [8, 128], strides = [1, 1]} : vector<8x256xf32> to vector<8x128xf32>
    %cst_171 = arith.constant dense<0.000000e+00> : vector<8x128xf32>
    %927 = tpu.matmul %907, %23, %cst_171 {dimension_numbers = #tpu.dot_dimension_numbers<[1], [0], [0], [1], [0, 0, 1, 1], [], []>} : vector<8x32xf32>, vector<32x128xf32>, vector<8x128xf32> -> vector<8x128xf32>
    %928 = arith.addf %926, %927 : vector<8x128xf32>
    %929 = vector.extract_strided_slice %925 {offsets = [0, 128], sizes = [8, 128], strides = [1, 1]} : vector<8x256xf32> to vector<8x128xf32>
    %cst_172 = arith.constant dense<0.000000e+00> : vector<8x128xf32>
    %930 = tpu.matmul %913, %24, %cst_172 {dimension_numbers = #tpu.dot_dimension_numbers<[1], [0], [0], [1], [0, 0, 1, 1], [], []>} : vector<8x32xf32>, vector<32x128xf32>, vector<8x128xf32> -> vector<8x128xf32>
    %931 = arith.addf %929, %930 : vector<8x128xf32>
    %932 = vector.extract_strided_slice %928 {offsets = [0, 0], sizes = [8, 32], strides = [1, 1]} : vector<8x128xf32> to vector<8x32xf32>
    %933 = arith.negf %932 : vector<8x32xf32>
    %934 = math.exp %933 : vector<8x32xf32>
    %cst_173 = arith.constant 1.000000e+00 : f32
    %935 = vector.broadcast %cst_173 : f32 to vector<8x32xf32>
    %936 = arith.addf %935, %934 : vector<8x32xf32>
    %937 = arith.divf %935, %936 : vector<8x32xf32>
    %938 = vector.extract_strided_slice %928 {offsets = [0, 32], sizes = [8, 32], strides = [1, 1]} : vector<8x128xf32> to vector<8x32xf32>
    %939 = arith.negf %938 : vector<8x32xf32>
    %940 = math.exp %939 : vector<8x32xf32>
    %cst_174 = arith.constant 1.000000e+00 : f32
    %941 = vector.broadcast %cst_174 : f32 to vector<8x32xf32>
    %942 = arith.addf %941, %940 : vector<8x32xf32>
    %943 = arith.divf %941, %942 : vector<8x32xf32>
    %944 = vector.extract_strided_slice %928 {offsets = [0, 64], sizes = [8, 32], strides = [1, 1]} : vector<8x128xf32> to vector<8x32xf32>
    %945 = math.tanh %944 : vector<8x32xf32>
    %946 = vector.extract_strided_slice %928 {offsets = [0, 96], sizes = [8, 32], strides = [1, 1]} : vector<8x128xf32> to vector<8x32xf32>
    %947 = arith.negf %946 : vector<8x32xf32>
    %948 = math.exp %947 : vector<8x32xf32>
    %cst_175 = arith.constant 1.000000e+00 : f32
    %949 = vector.broadcast %cst_175 : f32 to vector<8x32xf32>
    %950 = arith.addf %949, %948 : vector<8x32xf32>
    %951 = arith.divf %949, %950 : vector<8x32xf32>
    %952 = arith.mulf %943, %910 : vector<8x32xf32>
    %953 = arith.mulf %937, %945 : vector<8x32xf32>
    %954 = arith.addf %952, %953 : vector<8x32xf32>
    %955 = math.tanh %954 : vector<8x32xf32>
    %956 = arith.mulf %951, %955 : vector<8x32xf32>
    %957 = vector.extract_strided_slice %931 {offsets = [0, 0], sizes = [8, 32], strides = [1, 1]} : vector<8x128xf32> to vector<8x32xf32>
    %958 = arith.negf %957 : vector<8x32xf32>
    %959 = math.exp %958 : vector<8x32xf32>
    %cst_176 = arith.constant 1.000000e+00 : f32
    %960 = vector.broadcast %cst_176 : f32 to vector<8x32xf32>
    %961 = arith.addf %960, %959 : vector<8x32xf32>
    %962 = arith.divf %960, %961 : vector<8x32xf32>
    %963 = vector.extract_strided_slice %931 {offsets = [0, 32], sizes = [8, 32], strides = [1, 1]} : vector<8x128xf32> to vector<8x32xf32>
    %964 = arith.negf %963 : vector<8x32xf32>
    %965 = math.exp %964 : vector<8x32xf32>
    %cst_177 = arith.constant 1.000000e+00 : f32
    %966 = vector.broadcast %cst_177 : f32 to vector<8x32xf32>
    %967 = arith.addf %966, %965 : vector<8x32xf32>
    %968 = arith.divf %966, %967 : vector<8x32xf32>
    %969 = vector.extract_strided_slice %931 {offsets = [0, 64], sizes = [8, 32], strides = [1, 1]} : vector<8x128xf32> to vector<8x32xf32>
    %970 = math.tanh %969 : vector<8x32xf32>
    %971 = vector.extract_strided_slice %931 {offsets = [0, 96], sizes = [8, 32], strides = [1, 1]} : vector<8x128xf32> to vector<8x32xf32>
    %972 = arith.negf %971 : vector<8x32xf32>
    %973 = math.exp %972 : vector<8x32xf32>
    %cst_178 = arith.constant 1.000000e+00 : f32
    %974 = vector.broadcast %cst_178 : f32 to vector<8x32xf32>
    %975 = arith.addf %974, %973 : vector<8x32xf32>
    %976 = arith.divf %974, %975 : vector<8x32xf32>
    %977 = arith.mulf %968, %916 : vector<8x32xf32>
    %978 = arith.mulf %962, %970 : vector<8x32xf32>
    %979 = arith.addf %977, %978 : vector<8x32xf32>
    %980 = math.tanh %979 : vector<8x32xf32>
    %981 = arith.mulf %976, %980 : vector<8x32xf32>
    %982 = vector.broadcast %c11_i32 : i32 to vector<8x1xi32>
    %983 = arith.cmpi sgt, %21, %982 : vector<8x1xi32>
    %984 = vector.broadcast %917 : i32 to vector<8x1xi32>
    %985 = arith.cmpi sgt, %21, %984 : vector<8x1xi32>
    %986 = vector.shape_cast %983 : vector<8x1xi1> to vector<8x1xi1>
    %987 = vector.broadcast %986 : vector<8x1xi1> to vector<8x32xi1>
    %988 = arith.select %987, %956, %907 : vector<8x32xi1>, vector<8x32xf32>
    %989 = vector.shape_cast %983 : vector<8x1xi1> to vector<8x1xi1>
    %990 = vector.broadcast %989 : vector<8x1xi1> to vector<8x32xi1>
    %991 = arith.select %990, %954, %910 : vector<8x32xi1>, vector<8x32xf32>
    %992 = vector.shape_cast %985 : vector<8x1xi1> to vector<8x1xi1>
    %993 = vector.broadcast %992 : vector<8x1xi1> to vector<8x32xi1>
    %994 = arith.select %993, %981, %913 : vector<8x32xi1>, vector<8x32xf32>
    %995 = vector.shape_cast %985 : vector<8x1xi1> to vector<8x1xi1>
    %996 = vector.broadcast %995 : vector<8x1xi1> to vector<8x32xi1>
    %997 = arith.select %996, %979, %916 : vector<8x32xi1>, vector<8x32xf32>
    %c12_i32 = arith.constant 12 : i32
    %c15_i32_179 = arith.constant 15 : i32
    %998 = arith.subi %c15_i32_179, %c12_i32 : i32
    %c8_i32_180 = arith.constant 8 : i32
    %999 = arith.muli %c12_i32, %c8_i32_180 : i32
    %1000 = tpu.assume_multiple %999, 8 : i32
    %c8_i32_181 = arith.constant 8 : i32
    %1001 = arith.muli %998, %c8_i32_181 : i32
    %1002 = tpu.assume_multiple %1001, 8 : i32
    %1003 = arith.index_cast %1000 : i32 to index
    %c0_182 = arith.constant 0 : index
    %1004 = vector.load %arg13[%1003, %c0_182] : memref<128x256xf32, #tpu.memory_space<vmem>>, vector<8x256xf32>
    %1005 = arith.index_cast %1002 : i32 to index
    %c0_183 = arith.constant 0 : index
    %1006 = vector.load %arg13[%1005, %c0_183] : memref<128x256xf32, #tpu.memory_space<vmem>>, vector<8x256xf32>
    %1007 = vector.extract_strided_slice %1004 {offsets = [0, 0], sizes = [8, 128], strides = [1, 1]} : vector<8x256xf32> to vector<8x128xf32>
    %cst_184 = arith.constant dense<0.000000e+00> : vector<8x128xf32>
    %1008 = tpu.matmul %988, %23, %cst_184 {dimension_numbers = #tpu.dot_dimension_numbers<[1], [0], [0], [1], [0, 0, 1, 1], [], []>} : vector<8x32xf32>, vector<32x128xf32>, vector<8x128xf32> -> vector<8x128xf32>
    %1009 = arith.addf %1007, %1008 : vector<8x128xf32>
    %1010 = vector.extract_strided_slice %1006 {offsets = [0, 128], sizes = [8, 128], strides = [1, 1]} : vector<8x256xf32> to vector<8x128xf32>
    %cst_185 = arith.constant dense<0.000000e+00> : vector<8x128xf32>
    %1011 = tpu.matmul %994, %24, %cst_185 {dimension_numbers = #tpu.dot_dimension_numbers<[1], [0], [0], [1], [0, 0, 1, 1], [], []>} : vector<8x32xf32>, vector<32x128xf32>, vector<8x128xf32> -> vector<8x128xf32>
    %1012 = arith.addf %1010, %1011 : vector<8x128xf32>
    %1013 = vector.extract_strided_slice %1009 {offsets = [0, 0], sizes = [8, 32], strides = [1, 1]} : vector<8x128xf32> to vector<8x32xf32>
    %1014 = arith.negf %1013 : vector<8x32xf32>
    %1015 = math.exp %1014 : vector<8x32xf32>
    %cst_186 = arith.constant 1.000000e+00 : f32
    %1016 = vector.broadcast %cst_186 : f32 to vector<8x32xf32>
    %1017 = arith.addf %1016, %1015 : vector<8x32xf32>
    %1018 = arith.divf %1016, %1017 : vector<8x32xf32>
    %1019 = vector.extract_strided_slice %1009 {offsets = [0, 32], sizes = [8, 32], strides = [1, 1]} : vector<8x128xf32> to vector<8x32xf32>
    %1020 = arith.negf %1019 : vector<8x32xf32>
    %1021 = math.exp %1020 : vector<8x32xf32>
    %cst_187 = arith.constant 1.000000e+00 : f32
    %1022 = vector.broadcast %cst_187 : f32 to vector<8x32xf32>
    %1023 = arith.addf %1022, %1021 : vector<8x32xf32>
    %1024 = arith.divf %1022, %1023 : vector<8x32xf32>
    %1025 = vector.extract_strided_slice %1009 {offsets = [0, 64], sizes = [8, 32], strides = [1, 1]} : vector<8x128xf32> to vector<8x32xf32>
    %1026 = math.tanh %1025 : vector<8x32xf32>
    %1027 = vector.extract_strided_slice %1009 {offsets = [0, 96], sizes = [8, 32], strides = [1, 1]} : vector<8x128xf32> to vector<8x32xf32>
    %1028 = arith.negf %1027 : vector<8x32xf32>
    %1029 = math.exp %1028 : vector<8x32xf32>
    %cst_188 = arith.constant 1.000000e+00 : f32
    %1030 = vector.broadcast %cst_188 : f32 to vector<8x32xf32>
    %1031 = arith.addf %1030, %1029 : vector<8x32xf32>
    %1032 = arith.divf %1030, %1031 : vector<8x32xf32>
    %1033 = arith.mulf %1024, %991 : vector<8x32xf32>
    %1034 = arith.mulf %1018, %1026 : vector<8x32xf32>
    %1035 = arith.addf %1033, %1034 : vector<8x32xf32>
    %1036 = math.tanh %1035 : vector<8x32xf32>
    %1037 = arith.mulf %1032, %1036 : vector<8x32xf32>
    %1038 = vector.extract_strided_slice %1012 {offsets = [0, 0], sizes = [8, 32], strides = [1, 1]} : vector<8x128xf32> to vector<8x32xf32>
    %1039 = arith.negf %1038 : vector<8x32xf32>
    %1040 = math.exp %1039 : vector<8x32xf32>
    %cst_189 = arith.constant 1.000000e+00 : f32
    %1041 = vector.broadcast %cst_189 : f32 to vector<8x32xf32>
    %1042 = arith.addf %1041, %1040 : vector<8x32xf32>
    %1043 = arith.divf %1041, %1042 : vector<8x32xf32>
    %1044 = vector.extract_strided_slice %1012 {offsets = [0, 32], sizes = [8, 32], strides = [1, 1]} : vector<8x128xf32> to vector<8x32xf32>
    %1045 = arith.negf %1044 : vector<8x32xf32>
    %1046 = math.exp %1045 : vector<8x32xf32>
    %cst_190 = arith.constant 1.000000e+00 : f32
    %1047 = vector.broadcast %cst_190 : f32 to vector<8x32xf32>
    %1048 = arith.addf %1047, %1046 : vector<8x32xf32>
    %1049 = arith.divf %1047, %1048 : vector<8x32xf32>
    %1050 = vector.extract_strided_slice %1012 {offsets = [0, 64], sizes = [8, 32], strides = [1, 1]} : vector<8x128xf32> to vector<8x32xf32>
    %1051 = math.tanh %1050 : vector<8x32xf32>
    %1052 = vector.extract_strided_slice %1012 {offsets = [0, 96], sizes = [8, 32], strides = [1, 1]} : vector<8x128xf32> to vector<8x32xf32>
    %1053 = arith.negf %1052 : vector<8x32xf32>
    %1054 = math.exp %1053 : vector<8x32xf32>
    %cst_191 = arith.constant 1.000000e+00 : f32
    %1055 = vector.broadcast %cst_191 : f32 to vector<8x32xf32>
    %1056 = arith.addf %1055, %1054 : vector<8x32xf32>
    %1057 = arith.divf %1055, %1056 : vector<8x32xf32>
    %1058 = arith.mulf %1049, %997 : vector<8x32xf32>
    %1059 = arith.mulf %1043, %1051 : vector<8x32xf32>
    %1060 = arith.addf %1058, %1059 : vector<8x32xf32>
    %1061 = math.tanh %1060 : vector<8x32xf32>
    %1062 = arith.mulf %1057, %1061 : vector<8x32xf32>
    %1063 = vector.broadcast %c12_i32 : i32 to vector<8x1xi32>
    %1064 = arith.cmpi sgt, %21, %1063 : vector<8x1xi32>
    %1065 = vector.broadcast %998 : i32 to vector<8x1xi32>
    %1066 = arith.cmpi sgt, %21, %1065 : vector<8x1xi32>
    %1067 = vector.shape_cast %1064 : vector<8x1xi1> to vector<8x1xi1>
    %1068 = vector.broadcast %1067 : vector<8x1xi1> to vector<8x32xi1>
    %1069 = arith.select %1068, %1037, %988 : vector<8x32xi1>, vector<8x32xf32>
    %1070 = vector.shape_cast %1064 : vector<8x1xi1> to vector<8x1xi1>
    %1071 = vector.broadcast %1070 : vector<8x1xi1> to vector<8x32xi1>
    %1072 = arith.select %1071, %1035, %991 : vector<8x32xi1>, vector<8x32xf32>
    %1073 = vector.shape_cast %1066 : vector<8x1xi1> to vector<8x1xi1>
    %1074 = vector.broadcast %1073 : vector<8x1xi1> to vector<8x32xi1>
    %1075 = arith.select %1074, %1062, %994 : vector<8x32xi1>, vector<8x32xf32>
    %1076 = vector.shape_cast %1066 : vector<8x1xi1> to vector<8x1xi1>
    %1077 = vector.broadcast %1076 : vector<8x1xi1> to vector<8x32xi1>
    %1078 = arith.select %1077, %1060, %997 : vector<8x32xi1>, vector<8x32xf32>
    %c13_i32 = arith.constant 13 : i32
    %c15_i32_192 = arith.constant 15 : i32
    %1079 = arith.subi %c15_i32_192, %c13_i32 : i32
    %c8_i32_193 = arith.constant 8 : i32
    %1080 = arith.muli %c13_i32, %c8_i32_193 : i32
    %1081 = tpu.assume_multiple %1080, 8 : i32
    %c8_i32_194 = arith.constant 8 : i32
    %1082 = arith.muli %1079, %c8_i32_194 : i32
    %1083 = tpu.assume_multiple %1082, 8 : i32
    %1084 = arith.index_cast %1081 : i32 to index
    %c0_195 = arith.constant 0 : index
    %1085 = vector.load %arg13[%1084, %c0_195] : memref<128x256xf32, #tpu.memory_space<vmem>>, vector<8x256xf32>
    %1086 = arith.index_cast %1083 : i32 to index
    %c0_196 = arith.constant 0 : index
    %1087 = vector.load %arg13[%1086, %c0_196] : memref<128x256xf32, #tpu.memory_space<vmem>>, vector<8x256xf32>
    %1088 = vector.extract_strided_slice %1085 {offsets = [0, 0], sizes = [8, 128], strides = [1, 1]} : vector<8x256xf32> to vector<8x128xf32>
    %cst_197 = arith.constant dense<0.000000e+00> : vector<8x128xf32>
    %1089 = tpu.matmul %1069, %23, %cst_197 {dimension_numbers = #tpu.dot_dimension_numbers<[1], [0], [0], [1], [0, 0, 1, 1], [], []>} : vector<8x32xf32>, vector<32x128xf32>, vector<8x128xf32> -> vector<8x128xf32>
    %1090 = arith.addf %1088, %1089 : vector<8x128xf32>
    %1091 = vector.extract_strided_slice %1087 {offsets = [0, 128], sizes = [8, 128], strides = [1, 1]} : vector<8x256xf32> to vector<8x128xf32>
    %cst_198 = arith.constant dense<0.000000e+00> : vector<8x128xf32>
    %1092 = tpu.matmul %1075, %24, %cst_198 {dimension_numbers = #tpu.dot_dimension_numbers<[1], [0], [0], [1], [0, 0, 1, 1], [], []>} : vector<8x32xf32>, vector<32x128xf32>, vector<8x128xf32> -> vector<8x128xf32>
    %1093 = arith.addf %1091, %1092 : vector<8x128xf32>
    %1094 = vector.extract_strided_slice %1090 {offsets = [0, 0], sizes = [8, 32], strides = [1, 1]} : vector<8x128xf32> to vector<8x32xf32>
    %1095 = arith.negf %1094 : vector<8x32xf32>
    %1096 = math.exp %1095 : vector<8x32xf32>
    %cst_199 = arith.constant 1.000000e+00 : f32
    %1097 = vector.broadcast %cst_199 : f32 to vector<8x32xf32>
    %1098 = arith.addf %1097, %1096 : vector<8x32xf32>
    %1099 = arith.divf %1097, %1098 : vector<8x32xf32>
    %1100 = vector.extract_strided_slice %1090 {offsets = [0, 32], sizes = [8, 32], strides = [1, 1]} : vector<8x128xf32> to vector<8x32xf32>
    %1101 = arith.negf %1100 : vector<8x32xf32>
    %1102 = math.exp %1101 : vector<8x32xf32>
    %cst_200 = arith.constant 1.000000e+00 : f32
    %1103 = vector.broadcast %cst_200 : f32 to vector<8x32xf32>
    %1104 = arith.addf %1103, %1102 : vector<8x32xf32>
    %1105 = arith.divf %1103, %1104 : vector<8x32xf32>
    %1106 = vector.extract_strided_slice %1090 {offsets = [0, 64], sizes = [8, 32], strides = [1, 1]} : vector<8x128xf32> to vector<8x32xf32>
    %1107 = math.tanh %1106 : vector<8x32xf32>
    %1108 = vector.extract_strided_slice %1090 {offsets = [0, 96], sizes = [8, 32], strides = [1, 1]} : vector<8x128xf32> to vector<8x32xf32>
    %1109 = arith.negf %1108 : vector<8x32xf32>
    %1110 = math.exp %1109 : vector<8x32xf32>
    %cst_201 = arith.constant 1.000000e+00 : f32
    %1111 = vector.broadcast %cst_201 : f32 to vector<8x32xf32>
    %1112 = arith.addf %1111, %1110 : vector<8x32xf32>
    %1113 = arith.divf %1111, %1112 : vector<8x32xf32>
    %1114 = arith.mulf %1105, %1072 : vector<8x32xf32>
    %1115 = arith.mulf %1099, %1107 : vector<8x32xf32>
    %1116 = arith.addf %1114, %1115 : vector<8x32xf32>
    %1117 = math.tanh %1116 : vector<8x32xf32>
    %1118 = arith.mulf %1113, %1117 : vector<8x32xf32>
    %1119 = vector.extract_strided_slice %1093 {offsets = [0, 0], sizes = [8, 32], strides = [1, 1]} : vector<8x128xf32> to vector<8x32xf32>
    %1120 = arith.negf %1119 : vector<8x32xf32>
    %1121 = math.exp %1120 : vector<8x32xf32>
    %cst_202 = arith.constant 1.000000e+00 : f32
    %1122 = vector.broadcast %cst_202 : f32 to vector<8x32xf32>
    %1123 = arith.addf %1122, %1121 : vector<8x32xf32>
    %1124 = arith.divf %1122, %1123 : vector<8x32xf32>
    %1125 = vector.extract_strided_slice %1093 {offsets = [0, 32], sizes = [8, 32], strides = [1, 1]} : vector<8x128xf32> to vector<8x32xf32>
    %1126 = arith.negf %1125 : vector<8x32xf32>
    %1127 = math.exp %1126 : vector<8x32xf32>
    %cst_203 = arith.constant 1.000000e+00 : f32
    %1128 = vector.broadcast %cst_203 : f32 to vector<8x32xf32>
    %1129 = arith.addf %1128, %1127 : vector<8x32xf32>
    %1130 = arith.divf %1128, %1129 : vector<8x32xf32>
    %1131 = vector.extract_strided_slice %1093 {offsets = [0, 64], sizes = [8, 32], strides = [1, 1]} : vector<8x128xf32> to vector<8x32xf32>
    %1132 = math.tanh %1131 : vector<8x32xf32>
    %1133 = vector.extract_strided_slice %1093 {offsets = [0, 96], sizes = [8, 32], strides = [1, 1]} : vector<8x128xf32> to vector<8x32xf32>
    %1134 = arith.negf %1133 : vector<8x32xf32>
    %1135 = math.exp %1134 : vector<8x32xf32>
    %cst_204 = arith.constant 1.000000e+00 : f32
    %1136 = vector.broadcast %cst_204 : f32 to vector<8x32xf32>
    %1137 = arith.addf %1136, %1135 : vector<8x32xf32>
    %1138 = arith.divf %1136, %1137 : vector<8x32xf32>
    %1139 = arith.mulf %1130, %1078 : vector<8x32xf32>
    %1140 = arith.mulf %1124, %1132 : vector<8x32xf32>
    %1141 = arith.addf %1139, %1140 : vector<8x32xf32>
    %1142 = math.tanh %1141 : vector<8x32xf32>
    %1143 = arith.mulf %1138, %1142 : vector<8x32xf32>
    %1144 = vector.broadcast %c13_i32 : i32 to vector<8x1xi32>
    %1145 = arith.cmpi sgt, %21, %1144 : vector<8x1xi32>
    %1146 = vector.broadcast %1079 : i32 to vector<8x1xi32>
    %1147 = arith.cmpi sgt, %21, %1146 : vector<8x1xi32>
    %1148 = vector.shape_cast %1145 : vector<8x1xi1> to vector<8x1xi1>
    %1149 = vector.broadcast %1148 : vector<8x1xi1> to vector<8x32xi1>
    %1150 = arith.select %1149, %1118, %1069 : vector<8x32xi1>, vector<8x32xf32>
    %1151 = vector.shape_cast %1145 : vector<8x1xi1> to vector<8x1xi1>
    %1152 = vector.broadcast %1151 : vector<8x1xi1> to vector<8x32xi1>
    %1153 = arith.select %1152, %1116, %1072 : vector<8x32xi1>, vector<8x32xf32>
    %1154 = vector.shape_cast %1147 : vector<8x1xi1> to vector<8x1xi1>
    %1155 = vector.broadcast %1154 : vector<8x1xi1> to vector<8x32xi1>
    %1156 = arith.select %1155, %1143, %1075 : vector<8x32xi1>, vector<8x32xf32>
    %1157 = vector.shape_cast %1147 : vector<8x1xi1> to vector<8x1xi1>
    %1158 = vector.broadcast %1157 : vector<8x1xi1> to vector<8x32xi1>
    %1159 = arith.select %1158, %1141, %1078 : vector<8x32xi1>, vector<8x32xf32>
    %c14_i32 = arith.constant 14 : i32
    %c15_i32_205 = arith.constant 15 : i32
    %1160 = arith.subi %c15_i32_205, %c14_i32 : i32
    %c8_i32_206 = arith.constant 8 : i32
    %1161 = arith.muli %c14_i32, %c8_i32_206 : i32
    %1162 = tpu.assume_multiple %1161, 8 : i32
    %c8_i32_207 = arith.constant 8 : i32
    %1163 = arith.muli %1160, %c8_i32_207 : i32
    %1164 = tpu.assume_multiple %1163, 8 : i32
    %1165 = arith.index_cast %1162 : i32 to index
    %c0_208 = arith.constant 0 : index
    %1166 = vector.load %arg13[%1165, %c0_208] : memref<128x256xf32, #tpu.memory_space<vmem>>, vector<8x256xf32>
    %1167 = arith.index_cast %1164 : i32 to index
    %c0_209 = arith.constant 0 : index
    %1168 = vector.load %arg13[%1167, %c0_209] : memref<128x256xf32, #tpu.memory_space<vmem>>, vector<8x256xf32>
    %1169 = vector.extract_strided_slice %1166 {offsets = [0, 0], sizes = [8, 128], strides = [1, 1]} : vector<8x256xf32> to vector<8x128xf32>
    %cst_210 = arith.constant dense<0.000000e+00> : vector<8x128xf32>
    %1170 = tpu.matmul %1150, %23, %cst_210 {dimension_numbers = #tpu.dot_dimension_numbers<[1], [0], [0], [1], [0, 0, 1, 1], [], []>} : vector<8x32xf32>, vector<32x128xf32>, vector<8x128xf32> -> vector<8x128xf32>
    %1171 = arith.addf %1169, %1170 : vector<8x128xf32>
    %1172 = vector.extract_strided_slice %1168 {offsets = [0, 128], sizes = [8, 128], strides = [1, 1]} : vector<8x256xf32> to vector<8x128xf32>
    %cst_211 = arith.constant dense<0.000000e+00> : vector<8x128xf32>
    %1173 = tpu.matmul %1156, %24, %cst_211 {dimension_numbers = #tpu.dot_dimension_numbers<[1], [0], [0], [1], [0, 0, 1, 1], [], []>} : vector<8x32xf32>, vector<32x128xf32>, vector<8x128xf32> -> vector<8x128xf32>
    %1174 = arith.addf %1172, %1173 : vector<8x128xf32>
    %1175 = vector.extract_strided_slice %1171 {offsets = [0, 0], sizes = [8, 32], strides = [1, 1]} : vector<8x128xf32> to vector<8x32xf32>
    %1176 = arith.negf %1175 : vector<8x32xf32>
    %1177 = math.exp %1176 : vector<8x32xf32>
    %cst_212 = arith.constant 1.000000e+00 : f32
    %1178 = vector.broadcast %cst_212 : f32 to vector<8x32xf32>
    %1179 = arith.addf %1178, %1177 : vector<8x32xf32>
    %1180 = arith.divf %1178, %1179 : vector<8x32xf32>
    %1181 = vector.extract_strided_slice %1171 {offsets = [0, 32], sizes = [8, 32], strides = [1, 1]} : vector<8x128xf32> to vector<8x32xf32>
    %1182 = arith.negf %1181 : vector<8x32xf32>
    %1183 = math.exp %1182 : vector<8x32xf32>
    %cst_213 = arith.constant 1.000000e+00 : f32
    %1184 = vector.broadcast %cst_213 : f32 to vector<8x32xf32>
    %1185 = arith.addf %1184, %1183 : vector<8x32xf32>
    %1186 = arith.divf %1184, %1185 : vector<8x32xf32>
    %1187 = vector.extract_strided_slice %1171 {offsets = [0, 64], sizes = [8, 32], strides = [1, 1]} : vector<8x128xf32> to vector<8x32xf32>
    %1188 = math.tanh %1187 : vector<8x32xf32>
    %1189 = vector.extract_strided_slice %1171 {offsets = [0, 96], sizes = [8, 32], strides = [1, 1]} : vector<8x128xf32> to vector<8x32xf32>
    %1190 = arith.negf %1189 : vector<8x32xf32>
    %1191 = math.exp %1190 : vector<8x32xf32>
    %cst_214 = arith.constant 1.000000e+00 : f32
    %1192 = vector.broadcast %cst_214 : f32 to vector<8x32xf32>
    %1193 = arith.addf %1192, %1191 : vector<8x32xf32>
    %1194 = arith.divf %1192, %1193 : vector<8x32xf32>
    %1195 = arith.mulf %1186, %1153 : vector<8x32xf32>
    %1196 = arith.mulf %1180, %1188 : vector<8x32xf32>
    %1197 = arith.addf %1195, %1196 : vector<8x32xf32>
    %1198 = math.tanh %1197 : vector<8x32xf32>
    %1199 = arith.mulf %1194, %1198 : vector<8x32xf32>
    %1200 = vector.extract_strided_slice %1174 {offsets = [0, 0], sizes = [8, 32], strides = [1, 1]} : vector<8x128xf32> to vector<8x32xf32>
    %1201 = arith.negf %1200 : vector<8x32xf32>
    %1202 = math.exp %1201 : vector<8x32xf32>
    %cst_215 = arith.constant 1.000000e+00 : f32
    %1203 = vector.broadcast %cst_215 : f32 to vector<8x32xf32>
    %1204 = arith.addf %1203, %1202 : vector<8x32xf32>
    %1205 = arith.divf %1203, %1204 : vector<8x32xf32>
    %1206 = vector.extract_strided_slice %1174 {offsets = [0, 32], sizes = [8, 32], strides = [1, 1]} : vector<8x128xf32> to vector<8x32xf32>
    %1207 = arith.negf %1206 : vector<8x32xf32>
    %1208 = math.exp %1207 : vector<8x32xf32>
    %cst_216 = arith.constant 1.000000e+00 : f32
    %1209 = vector.broadcast %cst_216 : f32 to vector<8x32xf32>
    %1210 = arith.addf %1209, %1208 : vector<8x32xf32>
    %1211 = arith.divf %1209, %1210 : vector<8x32xf32>
    %1212 = vector.extract_strided_slice %1174 {offsets = [0, 64], sizes = [8, 32], strides = [1, 1]} : vector<8x128xf32> to vector<8x32xf32>
    %1213 = math.tanh %1212 : vector<8x32xf32>
    %1214 = vector.extract_strided_slice %1174 {offsets = [0, 96], sizes = [8, 32], strides = [1, 1]} : vector<8x128xf32> to vector<8x32xf32>
    %1215 = arith.negf %1214 : vector<8x32xf32>
    %1216 = math.exp %1215 : vector<8x32xf32>
    %cst_217 = arith.constant 1.000000e+00 : f32
    %1217 = vector.broadcast %cst_217 : f32 to vector<8x32xf32>
    %1218 = arith.addf %1217, %1216 : vector<8x32xf32>
    %1219 = arith.divf %1217, %1218 : vector<8x32xf32>
    %1220 = arith.mulf %1211, %1159 : vector<8x32xf32>
    %1221 = arith.mulf %1205, %1213 : vector<8x32xf32>
    %1222 = arith.addf %1220, %1221 : vector<8x32xf32>
    %1223 = math.tanh %1222 : vector<8x32xf32>
    %1224 = arith.mulf %1219, %1223 : vector<8x32xf32>
    %1225 = vector.broadcast %c14_i32 : i32 to vector<8x1xi32>
    %1226 = arith.cmpi sgt, %21, %1225 : vector<8x1xi32>
    %1227 = vector.broadcast %1160 : i32 to vector<8x1xi32>
    %1228 = arith.cmpi sgt, %21, %1227 : vector<8x1xi32>
    %1229 = vector.shape_cast %1226 : vector<8x1xi1> to vector<8x1xi1>
    %1230 = vector.broadcast %1229 : vector<8x1xi1> to vector<8x32xi1>
    %1231 = arith.select %1230, %1199, %1150 : vector<8x32xi1>, vector<8x32xf32>
    %1232 = vector.shape_cast %1226 : vector<8x1xi1> to vector<8x1xi1>
    %1233 = vector.broadcast %1232 : vector<8x1xi1> to vector<8x32xi1>
    %1234 = arith.select %1233, %1197, %1153 : vector<8x32xi1>, vector<8x32xf32>
    %1235 = vector.shape_cast %1228 : vector<8x1xi1> to vector<8x1xi1>
    %1236 = vector.broadcast %1235 : vector<8x1xi1> to vector<8x32xi1>
    %1237 = arith.select %1236, %1224, %1156 : vector<8x32xi1>, vector<8x32xf32>
    %1238 = vector.shape_cast %1228 : vector<8x1xi1> to vector<8x1xi1>
    %1239 = vector.broadcast %1238 : vector<8x1xi1> to vector<8x32xi1>
    %1240 = arith.select %1239, %1222, %1159 : vector<8x32xi1>, vector<8x32xf32>
    %c15_i32_218 = arith.constant 15 : i32
    %c15_i32_219 = arith.constant 15 : i32
    %1241 = arith.subi %c15_i32_219, %c15_i32_218 : i32
    %c8_i32_220 = arith.constant 8 : i32
    %1242 = arith.muli %c15_i32_218, %c8_i32_220 : i32
    %1243 = tpu.assume_multiple %1242, 8 : i32
    %c8_i32_221 = arith.constant 8 : i32
    %1244 = arith.muli %1241, %c8_i32_221 : i32
    %1245 = tpu.assume_multiple %1244, 8 : i32
    %1246 = arith.index_cast %1243 : i32 to index
    %c0_222 = arith.constant 0 : index
    %1247 = vector.load %arg13[%1246, %c0_222] : memref<128x256xf32, #tpu.memory_space<vmem>>, vector<8x256xf32>
    %1248 = arith.index_cast %1245 : i32 to index
    %c0_223 = arith.constant 0 : index
    %1249 = vector.load %arg13[%1248, %c0_223] : memref<128x256xf32, #tpu.memory_space<vmem>>, vector<8x256xf32>
    %1250 = vector.extract_strided_slice %1247 {offsets = [0, 0], sizes = [8, 128], strides = [1, 1]} : vector<8x256xf32> to vector<8x128xf32>
    %cst_224 = arith.constant dense<0.000000e+00> : vector<8x128xf32>
    %1251 = tpu.matmul %1231, %23, %cst_224 {dimension_numbers = #tpu.dot_dimension_numbers<[1], [0], [0], [1], [0, 0, 1, 1], [], []>} : vector<8x32xf32>, vector<32x128xf32>, vector<8x128xf32> -> vector<8x128xf32>
    %1252 = arith.addf %1250, %1251 : vector<8x128xf32>
    %1253 = vector.extract_strided_slice %1249 {offsets = [0, 128], sizes = [8, 128], strides = [1, 1]} : vector<8x256xf32> to vector<8x128xf32>
    %cst_225 = arith.constant dense<0.000000e+00> : vector<8x128xf32>
    %1254 = tpu.matmul %1237, %24, %cst_225 {dimension_numbers = #tpu.dot_dimension_numbers<[1], [0], [0], [1], [0, 0, 1, 1], [], []>} : vector<8x32xf32>, vector<32x128xf32>, vector<8x128xf32> -> vector<8x128xf32>
    %1255 = arith.addf %1253, %1254 : vector<8x128xf32>
    %1256 = vector.extract_strided_slice %1252 {offsets = [0, 0], sizes = [8, 32], strides = [1, 1]} : vector<8x128xf32> to vector<8x32xf32>
    %1257 = arith.negf %1256 : vector<8x32xf32>
    %1258 = math.exp %1257 : vector<8x32xf32>
    %cst_226 = arith.constant 1.000000e+00 : f32
    %1259 = vector.broadcast %cst_226 : f32 to vector<8x32xf32>
    %1260 = arith.addf %1259, %1258 : vector<8x32xf32>
    %1261 = arith.divf %1259, %1260 : vector<8x32xf32>
    %1262 = vector.extract_strided_slice %1252 {offsets = [0, 32], sizes = [8, 32], strides = [1, 1]} : vector<8x128xf32> to vector<8x32xf32>
    %1263 = arith.negf %1262 : vector<8x32xf32>
    %1264 = math.exp %1263 : vector<8x32xf32>
    %cst_227 = arith.constant 1.000000e+00 : f32
    %1265 = vector.broadcast %cst_227 : f32 to vector<8x32xf32>
    %1266 = arith.addf %1265, %1264 : vector<8x32xf32>
    %1267 = arith.divf %1265, %1266 : vector<8x32xf32>
    %1268 = vector.extract_strided_slice %1252 {offsets = [0, 64], sizes = [8, 32], strides = [1, 1]} : vector<8x128xf32> to vector<8x32xf32>
    %1269 = math.tanh %1268 : vector<8x32xf32>
    %1270 = vector.extract_strided_slice %1252 {offsets = [0, 96], sizes = [8, 32], strides = [1, 1]} : vector<8x128xf32> to vector<8x32xf32>
    %1271 = arith.negf %1270 : vector<8x32xf32>
    %1272 = math.exp %1271 : vector<8x32xf32>
    %cst_228 = arith.constant 1.000000e+00 : f32
    %1273 = vector.broadcast %cst_228 : f32 to vector<8x32xf32>
    %1274 = arith.addf %1273, %1272 : vector<8x32xf32>
    %1275 = arith.divf %1273, %1274 : vector<8x32xf32>
    %1276 = arith.mulf %1267, %1234 : vector<8x32xf32>
    %1277 = arith.mulf %1261, %1269 : vector<8x32xf32>
    %1278 = arith.addf %1276, %1277 : vector<8x32xf32>
    %1279 = math.tanh %1278 : vector<8x32xf32>
    %1280 = arith.mulf %1275, %1279 : vector<8x32xf32>
    %1281 = vector.extract_strided_slice %1255 {offsets = [0, 0], sizes = [8, 32], strides = [1, 1]} : vector<8x128xf32> to vector<8x32xf32>
    %1282 = arith.negf %1281 : vector<8x32xf32>
    %1283 = math.exp %1282 : vector<8x32xf32>
    %cst_229 = arith.constant 1.000000e+00 : f32
    %1284 = vector.broadcast %cst_229 : f32 to vector<8x32xf32>
    %1285 = arith.addf %1284, %1283 : vector<8x32xf32>
    %1286 = arith.divf %1284, %1285 : vector<8x32xf32>
    %1287 = vector.extract_strided_slice %1255 {offsets = [0, 32], sizes = [8, 32], strides = [1, 1]} : vector<8x128xf32> to vector<8x32xf32>
    %1288 = arith.negf %1287 : vector<8x32xf32>
    %1289 = math.exp %1288 : vector<8x32xf32>
    %cst_230 = arith.constant 1.000000e+00 : f32
    %1290 = vector.broadcast %cst_230 : f32 to vector<8x32xf32>
    %1291 = arith.addf %1290, %1289 : vector<8x32xf32>
    %1292 = arith.divf %1290, %1291 : vector<8x32xf32>
    %1293 = vector.extract_strided_slice %1255 {offsets = [0, 64], sizes = [8, 32], strides = [1, 1]} : vector<8x128xf32> to vector<8x32xf32>
    %1294 = math.tanh %1293 : vector<8x32xf32>
    %1295 = vector.extract_strided_slice %1255 {offsets = [0, 96], sizes = [8, 32], strides = [1, 1]} : vector<8x128xf32> to vector<8x32xf32>
    %1296 = arith.negf %1295 : vector<8x32xf32>
    %1297 = math.exp %1296 : vector<8x32xf32>
    %cst_231 = arith.constant 1.000000e+00 : f32
    %1298 = vector.broadcast %cst_231 : f32 to vector<8x32xf32>
    %1299 = arith.addf %1298, %1297 : vector<8x32xf32>
    %1300 = arith.divf %1298, %1299 : vector<8x32xf32>
    %1301 = arith.mulf %1292, %1240 : vector<8x32xf32>
    %1302 = arith.mulf %1286, %1294 : vector<8x32xf32>
    %1303 = arith.addf %1301, %1302 : vector<8x32xf32>
    %1304 = math.tanh %1303 : vector<8x32xf32>
    %1305 = arith.mulf %1300, %1304 : vector<8x32xf32>
    %1306 = vector.broadcast %c15_i32_218 : i32 to vector<8x1xi32>
    %1307 = arith.cmpi sgt, %21, %1306 : vector<8x1xi32>
    %1308 = vector.broadcast %1241 : i32 to vector<8x1xi32>
    %1309 = arith.cmpi sgt, %21, %1308 : vector<8x1xi32>
    %1310 = vector.shape_cast %1307 : vector<8x1xi1> to vector<8x1xi1>
    %1311 = vector.broadcast %1310 : vector<8x1xi1> to vector<8x32xi1>
    %1312 = arith.select %1311, %1280, %1231 : vector<8x32xi1>, vector<8x32xf32>
    %1313 = vector.shape_cast %1307 : vector<8x1xi1> to vector<8x1xi1>
    %1314 = vector.broadcast %1313 : vector<8x1xi1> to vector<8x32xi1>
    %1315 = arith.select %1314, %1278, %1234 : vector<8x32xi1>, vector<8x32xf32>
    %1316 = vector.shape_cast %1309 : vector<8x1xi1> to vector<8x1xi1>
    %1317 = vector.broadcast %1316 : vector<8x1xi1> to vector<8x32xi1>
    %1318 = arith.select %1317, %1305, %1237 : vector<8x32xi1>, vector<8x32xf32>
    %1319 = vector.shape_cast %1309 : vector<8x1xi1> to vector<8x1xi1>
    %1320 = vector.broadcast %1319 : vector<8x1xi1> to vector<8x32xi1>
    %1321 = arith.select %1320, %1303, %1240 : vector<8x32xi1>, vector<8x32xf32>
    %c16_i32 = arith.constant 16 : i32
    %c0_232 = arith.constant 0 : index
    %c0_233 = arith.constant 0 : index
    %1322 = vector.load %arg10[%c0_232, %c0_233] : memref<64x32xf32, #tpu.memory_space<vmem>>, vector<32x32xf32>
    %cst_234 = arith.constant dense<0.000000e+00> : vector<8x32xf32>
    %1323 = tpu.matmul %1315, %1322, %cst_234 {dimension_numbers = #tpu.dot_dimension_numbers<[1], [0], [0], [1], [0, 0, 1, 1], [], []>} : vector<8x32xf32>, vector<32x32xf32>, vector<8x32xf32> -> vector<8x32xf32>
    %c32 = arith.constant 32 : index
    %c0_235 = arith.constant 0 : index
    %1324 = vector.load %arg10[%c32, %c0_235] : memref<64x32xf32, #tpu.memory_space<vmem>>, vector<32x32xf32>
    %cst_236 = arith.constant dense<0.000000e+00> : vector<8x32xf32>
    %1325 = tpu.matmul %1321, %1324, %cst_236 {dimension_numbers = #tpu.dot_dimension_numbers<[1], [0], [0], [1], [0, 0, 1, 1], [], []>} : vector<8x32xf32>, vector<32x32xf32>, vector<8x32xf32> -> vector<8x32xf32>
    %1326 = arith.addf %1323, %1325 : vector<8x32xf32>
    %c0_237 = arith.constant 0 : index
    %c0_238 = arith.constant 0 : index
    %1327 = vector.load %arg11[%c0_237, %c0_238] : memref<1x32xf32, #tpu.memory_space<vmem>>, vector<1x32xf32>
    %1328 = vector.broadcast %1327 : vector<1x32xf32> to vector<8x32xf32>
    %1329 = arith.addf %1326, %1328 : vector<8x32xf32>
    %cst_239 = arith.constant 0.000000e+00 : f32
    %1330 = vector.broadcast %cst_239 : f32 to vector<8x32xf32>
    %1331 = arith.maximumf %1329, %1330 : vector<8x32xf32>
    %c0_240 = arith.constant 0 : index
    %c0_241 = arith.constant 0 : index
    %1332 = vector.load %arg12[%c0_240, %c0_241] : memref<8x32xf32, #tpu.memory_space<vmem>>, vector<8x32xf32>
    tpu.vector_store %arg12[%c0_240, %c0_241], %1331 {strides = array<i32>} : memref<8x32xf32, #tpu.memory_space<vmem>>, vector<8x32xf32>,
    return
  }
  func.func @transform_0(%arg0: i32) -> (i32, i32) {
    %c0_i32 = arith.constant 0 : i32
    %c0_i32_0 = arith.constant 0 : i32
    return %arg0, %c0_i32 : i32, i32
  }
  func.func @transform_1(%arg0: i32) -> (i32, i32) {
    %c0_i32 = arith.constant 0 : i32
    %c0_i32_0 = arith.constant 0 : i32
    return %arg0, %c0_i32 : i32, i32
  }
  func.func @transform_2(%arg0: i32) -> (i32, i32) {
    %c0_i32 = arith.constant 0 : i32
    %c0_i32_0 = arith.constant 0 : i32
    %c0_i32_1 = arith.constant 0 : i32
    return %c0_i32, %c0_i32_0 : i32, i32
  }
  func.func @transform_3(%arg0: i32) -> (i32, i32) {
    %c0_i32 = arith.constant 0 : i32
    %c0_i32_0 = arith.constant 0 : i32
    %c0_i32_1 = arith.constant 0 : i32
    return %c0_i32, %c0_i32_0 : i32, i32
  }
  func.func @transform_4(%arg0: i32) -> (i32, i32) {
    %c0_i32 = arith.constant 0 : i32
    %c0_i32_0 = arith.constant 0 : i32
    %c0_i32_1 = arith.constant 0 : i32
    return %c0_i32, %c0_i32_0 : i32, i32
  }
  func.func @transform_5(%arg0: i32) -> (i32, i32) {
    %c0_i32 = arith.constant 0 : i32
    %c0_i32_0 = arith.constant 0 : i32
    %c0_i32_1 = arith.constant 0 : i32
    return %c0_i32, %c0_i32_0 : i32, i32
  }
  func.func @transform_6(%arg0: i32) -> (i32, i32) {
    %c0_i32 = arith.constant 0 : i32
    %c0_i32_0 = arith.constant 0 : i32
    %c0_i32_1 = arith.constant 0 : i32
    return %c0_i32, %c0_i32_0 : i32, i32
  }
  func.func @transform_7(%arg0: i32) -> (i32, i32) {
    %c0_i32 = arith.constant 0 : i32
    %c0_i32_0 = arith.constant 0 : i32
    %c0_i32_1 = arith.constant 0 : i32
    return %c0_i32, %c0_i32_0 : i32, i32
  }
  func.func @transform_8(%arg0: i32) -> (i32, i32) {
    %c0_i32 = arith.constant 0 : i32
    %c0_i32_0 = arith.constant 0 : i32
    %c0_i32_1 = arith.constant 0 : i32
    return %c0_i32, %c0_i32_0 : i32, i32
  }
  func.func @transform_9(%arg0: i32) -> (i32, i32) {
    %c0_i32 = arith.constant 0 : i32
    %c0_i32_0 = arith.constant 0 : i32
    %c0_i32_1 = arith.constant 0 : i32
    return %c0_i32, %c0_i32_0 : i32, i32
  }
  func.func @transform_10(%arg0: i32) -> (i32, i32) {
    %c0_i32 = arith.constant 0 : i32
    %c0_i32_0 = arith.constant 0 : i32
    %c0_i32_1 = arith.constant 0 : i32
    return %c0_i32, %c0_i32_0 : i32, i32
  }
  func.func @transform_11(%arg0: i32) -> (i32, i32) {
    %c0_i32 = arith.constant 0 : i32
    %c0_i32_0 = arith.constant 0 : i32
    return %arg0, %c0_i32 : i32, i32
  }
}

</mosaic_0001>

<llo_original>
// kernel: tpu_custom_call.1
$region0: #{tpu_custom_call.1}
  #allocation0 [shape = 'u32[]', space=smem, size = 0x4, offset = 0x4, fixed_abs, tag = 'smem constant byte address 0x4 - core index']
  #allocation1 [shape = 'u32[144,128]{1,0:T(1,128)}', space=vmem, size = 0x12000, scoped, tag = 'internal scratch']
  #allocation2 [shape = 'f32[128,256]{1,0:T(8,128)}', space=vmem, size = 0x20000, scoped, tag = 'scratch operand']
  %s0 = inlined_call_operand.vmem [shape: f32[128,2], index: 0, kind: input, shape index: {}]
  %s1 = inlined_call_operand.vmem [shape: s32[8,1], index: 1, kind: input, shape index: {}]
  %s2 = inlined_call_operand.vmem [shape: f32[2,64], index: 2, kind: input, shape index: {}]
  %s3 = inlined_call_operand.vmem [shape: f32[1,64], index: 3, kind: input, shape index: {}]
  %s4 = inlined_call_operand.vmem [shape: f32[64,32], index: 4, kind: input, shape index: {}]
  %s5 = inlined_call_operand.vmem [shape: f32[1,32], index: 5, kind: input, shape index: {}]
  %s6 = inlined_call_operand.vmem [shape: f32[32,256], index: 6, kind: input, shape index: {}]
  %s7 = inlined_call_operand.vmem [shape: f32[1,256], index: 7, kind: input, shape index: {}]
  %s8 = inlined_call_operand.vmem [shape: f32[32,256], index: 8, kind: input, shape index: {}]
  %s9 = inlined_call_operand.vmem [shape: f32[64,32], index: 9, kind: input, shape index: {}]
  %s10 = inlined_call_operand.vmem [shape: f32[1,32], index: 10, kind: input, shape index: {}]
  %s11 = inlined_call_operand.hbm [shape: f32[8,32], index: 11, kind: output, shape index: {}]
  %s12 = sld [smem:[#allocation0]]
  $region54: #{tpu_custom_call.1} parent=0
    _
  %s14 = ssub.s32 1, %s12
  %s15 = scalar_select 0, %s14, %s12
  $region1: #{tpu_custom_call.1} parent=0
    #allocation3 [shape = 'u8[4096]{0}', space=vmem, size = 0x1000, scoped, tag = 'output window, operand 0, single buffered']
    #allocation4 [shape = 's32[1]{0}', space=sflag, size = 0x4, scoped, tag = 'scoped memory for tpu_custom_call.1']
    %16 = vsyncpa [#allocation4], 0
    // Predicated region
    $region2: #{tpu_custom_call.1} parent=1 // pred_check
      _
    $region3: #{tpu_custom_call.1} parent=1 // pred_check_branch
      %18 = sbr.rel (0) target = $region5
    $region4: #{tpu_custom_call.1} parent=1 // pred_region
      _
    $region5: #{tpu_custom_call.1} parent=1 // pred_fallthru
      _
    // Predicated region
    $region6: #{tpu_custom_call.1} parent=1 // pred_check
      _
    $region7: #{tpu_custom_call.1} parent=1 // pred_check_branch
      %20 = sbr.rel (0) target = $region9
    $region8: #{tpu_custom_call.1} parent=1 // pred_region
      _
    $region9: #{tpu_custom_call.1} parent=1 // pred_fallthru
      _
    // Predicated region
    $region10: #{tpu_custom_call.1} parent=1 // pred_check
      _
    $region11: #{tpu_custom_call.1} parent=1 // pred_check_branch
      %22 = sbr.rel (0) target = $region13
    $region12: #{tpu_custom_call.1} parent=1 // pred_region
      _
    $region13: #{tpu_custom_call.1} parent=1 // pred_fallthru
      _
    // Predicated region
    $region14: #{tpu_custom_call.1} parent=1 // pred_check
      _
    $region15: #{tpu_custom_call.1} parent=1 // pred_check_branch
      %24 = sbr.rel (0) target = $region17
    $region16: #{tpu_custom_call.1} parent=1 // pred_region
      _
    $region17: #{tpu_custom_call.1} parent=1 // pred_fallthru
      _
    // Predicated region
    $region18: #{tpu_custom_call.1} parent=1 // pred_check
      _
    $region19: #{tpu_custom_call.1} parent=1 // pred_check_branch
      %26 = sbr.rel (0) target = $region21
    $region20: #{tpu_custom_call.1} parent=1 // pred_region
      _
    $region21: #{tpu_custom_call.1} parent=1 // pred_fallthru
      _
    // Predicated region
    $region22: #{tpu_custom_call.1} parent=1 // pred_check
      _
    $region23: #{tpu_custom_call.1} parent=1 // pred_check_branch
      %28 = sbr.rel (0) target = $region25
    $region24: #{tpu_custom_call.1} parent=1 // pred_region
      _
    $region25: #{tpu_custom_call.1} parent=1 // pred_fallthru
      _
    // Predicated region
    $region26: #{tpu_custom_call.1} parent=1 // pred_check
      _
    $region27: #{tpu_custom_call.1} parent=1 // pred_check_branch
      %30 = sbr.rel (0) target = $region29
    $region28: #{tpu_custom_call.1} parent=1 // pred_region
      _
    $region29: #{tpu_custom_call.1} parent=1 // pred_fallthru
      _
    // Predicated region
    $region30: #{tpu_custom_call.1} parent=1 // pred_check
      _
    $region31: #{tpu_custom_call.1} parent=1 // pred_check_branch
      %32 = sbr.rel (0) target = $region33
    $region32: #{tpu_custom_call.1} parent=1 // pred_region
      _
    $region33: #{tpu_custom_call.1} parent=1 // pred_fallthru
      _
    // Predicated region
    $region34: #{tpu_custom_call.1} parent=1 // pred_check
      _
    $region35: #{tpu_custom_call.1} parent=1 // pred_check_branch
      %34 = sbr.rel (0) target = $region37
    $region36: #{tpu_custom_call.1} parent=1 // pred_region
      _
    $region37: #{tpu_custom_call.1} parent=1 // pred_fallthru
      _
    // Predicated region
    $region38: #{tpu_custom_call.1} parent=1 // pred_check
      _
    $region39: #{tpu_custom_call.1} parent=1 // pred_check_branch
      %36 = sbr.rel (0) target = $region41
    $region40: #{tpu_custom_call.1} parent=1 // pred_region
      _
    $region41: #{tpu_custom_call.1} parent=1 // pred_fallthru
      _
    // Predicated region
    $region42: #{tpu_custom_call.1} parent=1 // pred_check
      _
    $region43: #{tpu_custom_call.1} parent=1 // pred_check_branch
      %38 = sbr.rel (0) target = $region45
    $region44: #{tpu_custom_call.1} parent=1 // pred_region
      _
    $region45: #{tpu_custom_call.1} parent=1 // pred_fallthru
      _
    %v39 = vld [vmem:[%s0] sm:$0xff]
    %v40 = vld [vmem:[%s0 + $0x8] sm:$0xff]
    %v41 = vld [vmem:[%s0 + $0x10] sm:$0xff]
    %v42 = vld [vmem:[%s0 + $0x18] sm:$0xff]
    %v43 = vld [vmem:[%s0 + $0x20] sm:$0xff]
    %v44 = vld [vmem:[%s0 + $0x28] sm:$0xff]
    %v45 = vld [vmem:[%s0 + $0x30] sm:$0xff]
    %v46 = vld [vmem:[%s0 + $0x38] sm:$0xff]
    %v47 = vld [vmem:[%s0 + $0x40] sm:$0xff]
    %v48 = vld [vmem:[%s0 + $0x48] sm:$0xff]
    %v49 = vld [vmem:[%s0 + $0x50] sm:$0xff]
    %v50 = vld [vmem:[%s0 + $0x58] sm:$0xff]
    %v51 = vld [vmem:[%s0 + $0x60] sm:$0xff]
    %v52 = vld [vmem:[%s0 + $0x68] sm:$0xff]
    %v53 = vld [vmem:[%s0 + $0x70] sm:$0xff]
    %v54 = vld [vmem:[%s0 + $0x78] sm:$0xff]
    %v55 = vld [vmem:[%s2] sm:$0x3]
    %v56 = vld [vmem:[%s3] sm:$0x1]
    %v58 = vlaneseq
    %v59 = vshrl.u32 %v58, 7
    %v60 = vsub.s32 0, %v59
    %v61 = vrot.slane %v56, %v60
    %vm63 = vcmask 15360
    %v65 = vsel %vm63, %v39, 0
    %v68 = vsel %vm63, %v40, 0
    %v71 = vsel %vm63, %v41, 0
    %v74 = vsel %vm63, %v42, 0
    %v77 = vsel %vm63, %v43, 0
    %v80 = vsel %vm63, %v44, 0
    %v83 = vsel %vm63, %v45, 0
    %v86 = vsel %vm63, %v46, 0
    %v89 = vsel %vm63, %v47, 0
    %v92 = vsel %vm63, %v48, 0
    %v95 = vsel %vm63, %v49, 0
    %v98 = vsel %vm63, %v50, 0
    %v101 = vsel %vm63, %v51, 0
    %v104 = vsel %vm63, %v52, 0
    %v107 = vsel %vm63, %v53, 0
    %v110 = vsel %vm63, %v54, 0
    %vm112 = vcmask 1041408
    %v114 = vsel %vm112, %v55, 0
    %116 = vmatprep.subr.mxu0 0.0
    %117 = vmatpush1.msra.mxu0 %v114
    %118 = vmatprep.subr.mxu0 0.0
    %119 = vmatpush1.msra.mxu0 0.0
    %120 = vmatprep.subr.mxu0 0.0
    %121 = vmatpush1.msra.mxu0 0.0
    %122 = vmatprep.subr.mxu0 0.0
    %123 = vmatpush1.msra.mxu0 0.0
    %124 = vmatprep.subr.mxu0 0.0
    %125 = vmatpush1.msra.mxu0 0.0
    %126 = vmatprep.subr.mxu0 0.0
    %127 = vmatpush1.msra.mxu0 0.0
    %128 = vmatprep.subr.mxu0 0.0
    %129 = vmatpush1.msra.mxu0 0.0
    %130 = vmatprep.subr.mxu0 0.0
    %131 = vmatpush1.msra.mxu0 0.0
    %132 = vmatprep.subr.mxu0 0.0
    %133 = vmatpush1.msra.mxu0 0.0
    %134 = vmatprep.subr.mxu0 0.0
    %135 = vmatpush1.msra.mxu0 0.0
    %136 = vmatprep.subr.mxu0 0.0
    %137 = vmatpush1.msra.mxu0 0.0
    %138 = vmatprep.subr.mxu0 0.0
    %139 = vmatpush1.msra.mxu0 0.0
    %140 = vmatprep.subr.mxu0 0.0
    %141 = vmatpush1.msra.mxu0 0.0
    %142 = vmatprep.subr.mxu0 0.0
    %143 = vmatpush1.msra.mxu0 0.0
    %144 = vmatprep.subr.mxu0 0.0
    %145 = vmatpush1.msra.mxu0 0.0
    %146 = vmatprep.subr.mxu0 0.0
    %147 = vmatpush1.msra.mxu0 0.0
    %148 = vmatprep.subr.mxu0 0.0
    %149 = vmatpush1.msra.mxu0 0.0
    %150 = vmatprep.subr.mxu0 0.0
    %151 = vmatpush1.msra.mxu0 0.0
    %152 = vmatprep.subr.mxu0 0.0
    %153 = vmatpush1.msra.mxu0 0.0
    %154 = vmatprep.subr.mxu0 0.0
    %155 = vmatpush1.msra.mxu0 0.0
    %156 = vmatprep.subr.mxu0 0.0
    %157 = vmatpush1.msra.mxu0 0.0
    %158 = vmatprep.subr.mxu0 0.0
    %159 = vmatpush1.msra.mxu0 0.0
    %160 = vmatprep.subr.mxu0 0.0
    %161 = vmatpush1.msra.mxu0 0.0
    %162 = vmatprep.subr.mxu0 0.0
    %163 = vmatpush1.msra.mxu0 0.0
    %164 = vmatprep.subr.mxu0 0.0
    %165 = vmatpush1.msra.mxu0 0.0
    %166 = vmatprep.subr.mxu0 0.0
    %167 = vmatpush1.msra.mxu0 0.0
    %168 = vmatprep.subr.mxu0 0.0
    %169 = vmatpush1.msra.mxu0 0.0
    %170 = vmatprep.subr.mxu0 0.0
    %171 = vmatpush1.msra.mxu0 0.0
    %172 = vmatprep.subr.mxu0 0.0
    %173 = vmatpush1.msra.mxu0 0.0
    %174 = vmatprep.subr.mxu0 0.0
    %175 = vmatpush1.msra.mxu0 0.0
    %176 = vmatprep.subr.mxu0 0.0
    %177 = vmatpush1.msra.mxu0 0.0
    %178 = vmatprep.subr.mxu0 0.0
    %179 = vmatpush1.msra.mxu0 0.0
    %180 = vmatprep.mubr.f32.mxu0 0.0
    %181 = vmatmul.mubr.f32.gmra.mrb[0].mxu0 %v65
    %v182 = vpop.f32.mrb[0].mxu0
    %v183 = vadd.f32 %v61, %v182
    %v184 = vpop.f32.mrb[0].mxu0
    %185 = vmatprep.mubr.f32.mxu0 0.0
    %186 = vmatmul.mubr.f32.gmra.mrb[0].mxu0 %v68
    %v187 = vpop.f32.mrb[0].mxu0
    %v188 = vadd.f32 %v61, %v187
    %v189 = vpop.f32.mrb[0].mxu0
    %190 = vmatprep.mubr.f32.mxu0 0.0
    %191 = vmatmul.mubr.f32.gmra.mrb[0].mxu0 %v71
    %v192 = vpop.f32.mrb[0].mxu0
    %v193 = vadd.f32 %v61, %v192
    %v194 = vpop.f32.mrb[0].mxu0
    %195 = vmatprep.mubr.f32.mxu0 0.0
    %196 = vmatmul.mubr.f32.gmra.mrb[0].mxu0 %v74
    %v197 = vpop.f32.mrb[0].mxu0
    %v198 = vadd.f32 %v61, %v197
    %v199 = vpop.f32.mrb[0].mxu0
    %200 = vmatprep.mubr.f32.mxu0 0.0
    %201 = vmatmul.mubr.f32.gmra.mrb[0].mxu0 %v77
    %v202 = vpop.f32.mrb[0].mxu0
    %v203 = vadd.f32 %v61, %v202
    %v204 = vpop.f32.mrb[0].mxu0
    %205 = vmatprep.mubr.f32.mxu0 0.0
    %206 = vmatmul.mubr.f32.gmra.mrb[0].mxu0 %v80
    %v207 = vpop.f32.mrb[0].mxu0
    %v208 = vadd.f32 %v61, %v207
    %v209 = vpop.f32.mrb[0].mxu0
    %210 = vmatprep.mubr.f32.mxu0 0.0
    %211 = vmatmul.mubr.f32.gmra.mrb[0].mxu0 %v83
    %v212 = vpop.f32.mrb[0].mxu0
    %v213 = vadd.f32 %v61, %v212
    %v214 = vpop.f32.mrb[0].mxu0
    %215 = vmatprep.mubr.f32.mxu0 0.0
    %216 = vmatmul.mubr.f32.gmra.mrb[0].mxu0 %v86
    %v217 = vpop.f32.mrb[0].mxu0
    %v218 = vadd.f32 %v61, %v217
    %v219 = vpop.f32.mrb[0].mxu0
    %220 = vmatprep.mubr.f32.mxu0 0.0
    %221 = vmatmul.mubr.f32.gmra.mrb[0].mxu0 %v89
    %v222 = vpop.f32.mrb[0].mxu0
    %v223 = vadd.f32 %v61, %v222
    %v224 = vpop.f32.mrb[0].mxu0
    %225 = vmatprep.mubr.f32.mxu0 0.0
    %226 = vmatmul.mubr.f32.gmra.mrb[0].mxu0 %v92
    %v227 = vpop.f32.mrb[0].mxu0
    %v228 = vadd.f32 %v61, %v227
    %v229 = vpop.f32.mrb[0].mxu0
    %230 = vmatprep.mubr.f32.mxu0 0.0
    %231 = vmatmul.mubr.f32.gmra.mrb[0].mxu0 %v95
    %v232 = vpop.f32.mrb[0].mxu0
    %v233 = vadd.f32 %v61, %v232
    %v234 = vpop.f32.mrb[0].mxu0
    %235 = vmatprep.mubr.f32.mxu0 0.0
    %236 = vmatmul.mubr.f32.gmra.mrb[0].mxu0 %v98
    %v237 = vpop.f32.mrb[0].mxu0
    %v238 = vadd.f32 %v61, %v237
    %v239 = vpop.f32.mrb[0].mxu0
    %240 = vmatprep.mubr.f32.mxu0 0.0
    %241 = vmatmul.mubr.f32.gmra.mrb[0].mxu0 %v101
    %v242 = vpop.f32.mrb[0].mxu0
    %v243 = vadd.f32 %v61, %v242
    %v244 = vpop.f32.mrb[0].mxu0
    %245 = vmatprep.mubr.f32.mxu0 0.0
    %246 = vmatmul.mubr.f32.gmra.mrb[0].mxu0 %v104
    %v247 = vpop.f32.mrb[0].mxu0
    %v248 = vadd.f32 %v61, %v247
    %v249 = vpop.f32.mrb[0].mxu0
    %250 = vmatprep.mubr.f32.mxu0 0.0
    %251 = vmatmul.mubr.f32.gmra.mrb[0].mxu0 %v107
    %v252 = vpop.f32.mrb[0].mxu0
    %v253 = vadd.f32 %v61, %v252
    %v254 = vpop.f32.mrb[0].mxu0
    %255 = vmatprep.mubr.f32.mxu0 0.0
    %256 = vmatmul.mubr.f32.gmra.mrb[0].mxu0 %v110
    %v257 = vpop.f32.mrb[0].mxu0
    %v258 = vadd.f32 %v61, %v257
    %v259 = vpop.f32.mrb[0].mxu0
    %260 = vdwg.mxu0
    %v261 = vmax.f32 %v183, 0.0
    %v262 = vmax.f32 %v188, 0.0
    %v263 = vmax.f32 %v193, 0.0
    %v264 = vmax.f32 %v198, 0.0
    %v265 = vmax.f32 %v203, 0.0
    %v266 = vmax.f32 %v208, 0.0
    %v267 = vmax.f32 %v213, 0.0
    %v268 = vmax.f32 %v218, 0.0
    %v269 = vmax.f32 %v223, 0.0
    %v270 = vmax.f32 %v228, 0.0
    %v271 = vmax.f32 %v233, 0.0
    %v272 = vmax.f32 %v238, 0.0
    %v273 = vmax.f32 %v243, 0.0
    %v274 = vmax.f32 %v248, 0.0
    %v275 = vmax.f32 %v253, 0.0
    %v276 = vmax.f32 %v258, 0.0
    %v277 = vld [vmem:[%s4] sm:$0xff]
    %v278 = vld [vmem:[%s4 + $0x8] sm:$0xff]
    %v279 = vld [vmem:[%s4 + $0x10] sm:$0xff]
    %v280 = vld [vmem:[%s4 + $0x18] sm:$0xff]
    %v281 = vld [vmem:[%s4 + $0x20] sm:$0xff]
    %v282 = vld [vmem:[%s4 + $0x28] sm:$0xff]
    %v283 = vld [vmem:[%s4 + $0x30] sm:$0xff]
    %v284 = vld [vmem:[%s4 + $0x38] sm:$0xff]
    %v285 = vld [vmem:[%s5] sm:$0x1]
    %v287 = vlaneseq
    %v288 = vshrl.u32 %v287, 7
    %v289 = vsub.s32 0, %v288
    %v290 = vrot.slane %v285, %v289
    %vm292 = vcmask 523264
    %v294 = vsel %vm292, %v261, 0
    %v297 = vsel %vm292, %v262, 0
    %v300 = vsel %vm292, %v263, 0
    %v303 = vsel %vm292, %v264, 0
    %v306 = vsel %vm292, %v265, 0
    %v309 = vsel %vm292, %v266, 0
    %v312 = vsel %vm292, %v267, 0
    %v315 = vsel %vm292, %v268, 0
    %v318 = vsel %vm292, %v269, 0
    %v321 = vsel %vm292, %v270, 0
    %v324 = vsel %vm292, %v271, 0
    %v327 = vsel %vm292, %v272, 0
    %v330 = vsel %vm292, %v273, 0
    %v333 = vsel %vm292, %v274, 0
    %v336 = vsel %vm292, %v275, 0
    %v339 = vsel %vm292, %v276, 0
    %341 = vmatprep.subr.mxu0 0.0
    %342 = vmatpush1.msra.mxu0 %v277
    %343 = vmatprep.subr.mxu0 0.0
    %344 = vmatpush1.msra.mxu0 %v278
    %345 = vmatprep.subr.mxu0 0.0
    %346 = vmatpush1.msra.mxu0 %v279
    %347 = vmatprep.subr.mxu0 0.0
    %348 = vmatpush1.msra.mxu0 %v280
    %349 = vmatprep.subr.mxu0 0.0
    %350 = vmatpush1.msra.mxu0 %v281
    %351 = vmatprep.subr.mxu0 0.0
    %352 = vmatpush1.msra.mxu0 %v282
    %353 = vmatprep.subr.mxu0 0.0
    %354 = vmatpush1.msra.mxu0 %v283
    %355 = vmatprep.subr.mxu0 0.0
    %356 = vmatpush1.msra.mxu0 %v284
    %357 = vmatprep.subr.mxu0 0.0
    %358 = vmatpush1.msra.mxu0 0.0
    %359 = vmatprep.subr.mxu0 0.0
    %360 = vmatpush1.msra.mxu0 0.0
    %361 = vmatprep.subr.mxu0 0.0
    %362 = vmatpush1.msra.mxu0 0.0
    %363 = vmatprep.subr.mxu0 0.0
    %364 = vmatpush1.msra.mxu0 0.0
    %365 = vmatprep.subr.mxu0 0.0
    %366 = vmatpush1.msra.mxu0 0.0
    %367 = vmatprep.subr.mxu0 0.0
    %368 = vmatpush1.msra.mxu0 0.0
    %369 = vmatprep.subr.mxu0 0.0
    %370 = vmatpush1.msra.mxu0 0.0
    %371 = vmatprep.subr.mxu0 0.0
    %372 = vmatpush1.msra.mxu0 0.0
    %373 = vmatprep.subr.mxu0 0.0
    %374 = vmatpush1.msra.mxu0 0.0
    %375 = vmatprep.subr.mxu0 0.0
    %376 = vmatpush1.msra.mxu0 0.0
    %377 = vmatprep.subr.mxu0 0.0
    %378 = vmatpush1.msra.mxu0 0.0
    %379 = vmatprep.subr.mxu0 0.0
    %380 = vmatpush1.msra.mxu0 0.0
    %381 = vmatprep.subr.mxu0 0.0
    %382 = vmatpush1.msra.mxu0 0.0
    %383 = vmatprep.subr.mxu0 0.0
    %384 = vmatpush1.msra.mxu0 0.0
    %385 = vmatprep.subr.mxu0 0.0
    %386 = vmatpush1.msra.mxu0 0.0
    %387 = vmatprep.subr.mxu0 0.0
    %388 = vmatpush1.msra.mxu0 0.0
    %389 = vmatprep.subr.mxu0 0.0
    %390 = vmatpush1.msra.mxu0 0.0
    %391 = vmatprep.subr.mxu0 0.0
    %392 = vmatpush1.msra.mxu0 0.0
    %393 = vmatprep.subr.mxu0 0.0
    %394 = vmatpush1.msra.mxu0 0.0
    %395 = vmatprep.subr.mxu0 0.0
    %396 = vmatpush1.msra.mxu0 0.0
    %397 = vmatprep.subr.mxu0 0.0
    %398 = vmatpush1.msra.mxu0 0.0
    %399 = vmatprep.subr.mxu0 0.0
    %400 = vmatpush1.msra.mxu0 0.0
    %401 = vmatprep.subr.mxu0 0.0
    %402 = vmatpush1.msra.mxu0 0.0
    %403 = vmatprep.subr.mxu0 0.0
    %404 = vmatpush1.msra.mxu0 0.0
    %405 = vmatprep.mubr.f32.mxu0 0.0
    %406 = vmatmul.mubr.f32.gmra.mrb[0].mxu0 %v294
    %v407 = vpop.f32.mrb[0].mxu0
    %v408 = vadd.f32 %v290, %v407
    %v409 = vpop.f32.mrb[0].mxu0
    %410 = vmatprep.mubr.f32.mxu0 0.0
    %411 = vmatmul.mubr.f32.gmra.mrb[0].mxu0 %v297
    %v412 = vpop.f32.mrb[0].mxu0
    %v413 = vadd.f32 %v290, %v412
    %v414 = vpop.f32.mrb[0].mxu0
    %415 = vmatprep.mubr.f32.mxu0 0.0
    %416 = vmatmul.mubr.f32.gmra.mrb[0].mxu0 %v300
    %v417 = vpop.f32.mrb[0].mxu0
    %v418 = vadd.f32 %v290, %v417
    %v419 = vpop.f32.mrb[0].mxu0
    %420 = vmatprep.mubr.f32.mxu0 0.0
    %421 = vmatmul.mubr.f32.gmra.mrb[0].mxu0 %v303
    %v422 = vpop.f32.mrb[0].mxu0
    %v423 = vadd.f32 %v290, %v422
    %v424 = vpop.f32.mrb[0].mxu0
    %425 = vmatprep.mubr.f32.mxu0 0.0
    %426 = vmatmul.mubr.f32.gmra.mrb[0].mxu0 %v306
    %v427 = vpop.f32.mrb[0].mxu0
    %v428 = vadd.f32 %v290, %v427
    %v429 = vpop.f32.mrb[0].mxu0
    %430 = vmatprep.mubr.f32.mxu0 0.0
    %431 = vmatmul.mubr.f32.gmra.mrb[0].mxu0 %v309
    %v432 = vpop.f32.mrb[0].mxu0
    %v433 = vadd.f32 %v290, %v432
    %v434 = vpop.f32.mrb[0].mxu0
    %435 = vmatprep.mubr.f32.mxu0 0.0
    %436 = vmatmul.mubr.f32.gmra.mrb[0].mxu0 %v312
    %v437 = vpop.f32.mrb[0].mxu0
    %v438 = vadd.f32 %v290, %v437
    %v439 = vpop.f32.mrb[0].mxu0
    %440 = vmatprep.mubr.f32.mxu0 0.0
    %441 = vmatmul.mubr.f32.gmra.mrb[0].mxu0 %v315
    %v442 = vpop.f32.mrb[0].mxu0
    %v443 = vadd.f32 %v290, %v442
    %v444 = vpop.f32.mrb[0].mxu0
    %445 = vmatprep.mubr.f32.mxu0 0.0
    %446 = vmatmul.mubr.f32.gmra.mrb[0].mxu0 %v318
    %v447 = vpop.f32.mrb[0].mxu0
    %v448 = vadd.f32 %v290, %v447
    %v449 = vpop.f32.mrb[0].mxu0
    %450 = vmatprep.mubr.f32.mxu0 0.0
    %451 = vmatmul.mubr.f32.gmra.mrb[0].mxu0 %v321
    %v452 = vpop.f32.mrb[0].mxu0
    %v453 = vadd.f32 %v290, %v452
    %v454 = vpop.f32.mrb[0].mxu0
    %455 = vmatprep.mubr.f32.mxu0 0.0
    %456 = vmatmul.mubr.f32.gmra.mrb[0].mxu0 %v324
    %v457 = vpop.f32.mrb[0].mxu0
    %v458 = vadd.f32 %v290, %v457
    %v459 = vpop.f32.mrb[0].mxu0
    %460 = vmatprep.mubr.f32.mxu0 0.0
    %461 = vmatmul.mubr.f32.gmra.mrb[0].mxu0 %v327
    %v462 = vpop.f32.mrb[0].mxu0
    %v463 = vadd.f32 %v290, %v462
    %v464 = vpop.f32.mrb[0].mxu0
    %465 = vmatprep.mubr.f32.mxu0 0.0
    %466 = vmatmul.mubr.f32.gmra.mrb[0].mxu0 %v330
    %v467 = vpop.f32.mrb[0].mxu0
    %v468 = vadd.f32 %v290, %v467
    %v469 = vpop.f32.mrb[0].mxu0
    %470 = vmatprep.mubr.f32.mxu0 0.0
    %471 = vmatmul.mubr.f32.gmra.mrb[0].mxu0 %v333
    %v472 = vpop.f32.mrb[0].mxu0
    %v473 = vadd.f32 %v290, %v472
    %v474 = vpop.f32.mrb[0].mxu0
    %475 = vmatprep.mubr.f32.mxu0 0.0
    %476 = vmatmul.mubr.f32.gmra.mrb[0].mxu0 %v336
    %v477 = vpop.f32.mrb[0].mxu0
    %v478 = vadd.f32 %v290, %v477
    %v479 = vpop.f32.mrb[0].mxu0
    %480 = vmatprep.mubr.f32.mxu0 0.0
    %481 = vmatmul.mubr.f32.gmra.mrb[0].mxu0 %v339
    %v482 = vpop.f32.mrb[0].mxu0
    %v483 = vadd.f32 %v290, %v482
    %v484 = vpop.f32.mrb[0].mxu0
    %485 = vdwg.mxu0
    %v486 = vmax.f32 %v408, 0.0
    %v487 = vmax.f32 %v413, 0.0
    %v488 = vmax.f32 %v418, 0.0
    %v489 = vmax.f32 %v423, 0.0
    %v490 = vmax.f32 %v428, 0.0
    %v491 = vmax.f32 %v433, 0.0
    %v492 = vmax.f32 %v438, 0.0
    %v493 = vmax.f32 %v443, 0.0
    %v494 = vmax.f32 %v448, 0.0
    %v495 = vmax.f32 %v453, 0.0
    %v496 = vmax.f32 %v458, 0.0
    %v497 = vmax.f32 %v463, 0.0
    %v498 = vmax.f32 %v468, 0.0
    %v499 = vmax.f32 %v473, 0.0
    %v500 = vmax.f32 %v478, 0.0
    %v501 = vmax.f32 %v483, 0.0
    %v502 = vld [vmem:[%s6] sm:$0xff]
    %v503 = vld [vmem:[%s6 + $0x8] sm:$0xff]
    %v504 = vld [vmem:[%s6 + $0x10] sm:$0xff]
    %v505 = vld [vmem:[%s6 + $0x18] sm:$0xff]
    %v506 = vld [vmem:[%s6 + $0x20] sm:$0xff]
    %v507 = vld [vmem:[%s6 + $0x28] sm:$0xff]
    %v508 = vld [vmem:[%s6 + $0x30] sm:$0xff]
    %v509 = vld [vmem:[%s6 + $0x38] sm:$0xff]
    %v510 = vld [vmem:[%s7] sm:$0x3]
    %v512 = vlaneseq
    %v513 = vshrl.u32 %v512, 7
    %v514 = vsub.s32 0, %v513
    %v515 = vrot.slane %v510, %v514
    %v516 = vlaneseq
    %v517 = vshrl.u32 %v516, 7
    %v518 = vsub.s32 1, %v517
    %v519 = vrot.slane %v510, %v518
    %vm522 = vcmask 261120
    %v524 = vsel %vm522, %v486, 0
    %v527 = vsel %vm522, %v487, 0
    %v530 = vsel %vm522, %v488, 0
    %v533 = vsel %vm522, %v489, 0
    %v536 = vsel %vm522, %v490, 0
    %v539 = vsel %vm522, %v491, 0
    %v542 = vsel %vm522, %v492, 0
    %v545 = vsel %vm522, %v493, 0
    %v548 = vsel %vm522, %v494, 0
    %v551 = vsel %vm522, %v495, 0
    %v554 = vsel %vm522, %v496, 0
    %v557 = vsel %vm522, %v497, 0
    %v560 = vsel %vm522, %v498, 0
    %v563 = vsel %vm522, %v499, 0
    %v566 = vsel %vm522, %v500, 0
    %v569 = vsel %vm522, %v501, 0
    %571 = vmatprep.subr.mxu0 %v503
    %572 = vmatpush1.msra.mxu0 %v502
    %573 = vmatprep.subr.mxu0 %v505
    %574 = vmatpush1.msra.mxu0 %v504
    %575 = vmatprep.subr.mxu0 %v507
    %576 = vmatpush1.msra.mxu0 %v506
    %577 = vmatprep.subr.mxu0 %v509
    %578 = vmatpush1.msra.mxu0 %v508
    %579 = vmatprep.subr.mxu0 0.0
    %580 = vmatpush1.msra.mxu0 0.0
    %581 = vmatprep.subr.mxu0 0.0
    %582 = vmatpush1.msra.mxu0 0.0
    %583 = vmatprep.subr.mxu0 0.0
    %584 = vmatpush1.msra.mxu0 0.0
    %585 = vmatprep.subr.mxu0 0.0
    %586 = vmatpush1.msra.mxu0 0.0
    %587 = vmatprep.subr.mxu0 0.0
    %588 = vmatpush1.msra.mxu0 0.0
    %589 = vmatprep.subr.mxu0 0.0
    %590 = vmatpush1.msra.mxu0 0.0
    %591 = vmatprep.subr.mxu0 0.0
    %592 = vmatpush1.msra.mxu0 0.0
    %593 = vmatprep.subr.mxu0 0.0
    %594 = vmatpush1.msra.mxu0 0.0
    %595 = vmatprep.subr.mxu0 0.0
    %596 = vmatpush1.msra.mxu0 0.0
    %597 = vmatprep.subr.mxu0 0.0
    %598 = vmatpush1.msra.mxu0 0.0
    %599 = vmatprep.subr.mxu0 0.0
    %600 = vmatpush1.msra.mxu0 0.0
    %601 = vmatprep.subr.mxu0 0.0
    %602 = vmatpush1.msra.mxu0 0.0
    %603 = vmatprep.subr.mxu0 0.0
    %604 = vmatpush1.msra.mxu0 0.0
    %605 = vmatprep.subr.mxu0 0.0
    %606 = vmatpush1.msra.mxu0 0.0
    %607 = vmatprep.subr.mxu0 0.0
    %608 = vmatpush1.msra.mxu0 0.0
    %609 = vmatprep.subr.mxu0 0.0
    %610 = vmatpush1.msra.mxu0 0.0
    %611 = vmatprep.subr.mxu0 0.0
    %612 = vmatpush1.msra.mxu0 0.0
    %613 = vmatprep.subr.mxu0 0.0
    %614 = vmatpush1.msra.mxu0 0.0
    %615 = vmatprep.subr.mxu0 0.0
    %616 = vmatpush1.msra.mxu0 0.0
    %617 = vmatprep.subr.mxu0 0.0
    %618 = vmatpush1.msra.mxu0 0.0
    %619 = vmatprep.subr.mxu0 0.0
    %620 = vmatpush1.msra.mxu0 0.0
    %621 = vmatprep.subr.mxu0 0.0
    %622 = vmatpush1.msra.mxu0 0.0
    %623 = vmatprep.subr.mxu0 0.0
    %624 = vmatpush1.msra.mxu0 0.0
    %625 = vmatprep.subr.mxu0 0.0
    %626 = vmatpush1.msra.mxu0 0.0
    %627 = vmatprep.subr.mxu0 0.0
    %628 = vmatpush1.msra.mxu0 0.0
    %629 = vmatprep.subr.mxu0 0.0
    %630 = vmatpush1.msra.mxu0 0.0
    %631 = vmatprep.subr.mxu0 0.0
    %632 = vmatpush1.msra.mxu0 0.0
    %633 = vmatprep.subr.mxu0 0.0
    %634 = vmatpush1.msra.mxu0 0.0
    %635 = vmatprep.mubr.f32.mxu0 0.0
    %636 = vmatmul.mubr.f32.gmra.mrb[0].mxu0 %v524
    %v637 = vpop.f32.mrb[0].mxu0
    %v638 = vadd.f32 %v515, %v637
    %v639 = vpop.f32.mrb[0].mxu0
    %v640 = vadd.f32 %v519, %v639
    %641 = vmatprep.mubr.f32.mxu0 0.0
    %642 = vmatmul.mubr.f32.gmra.mrb[0].mxu0 %v527
    %v643 = vpop.f32.mrb[0].mxu0
    %v644 = vadd.f32 %v515, %v643
    %v645 = vpop.f32.mrb[0].mxu0
    %v646 = vadd.f32 %v519, %v645
    %647 = vmatprep.mubr.f32.mxu0 0.0
    %648 = vmatmul.mubr.f32.gmra.mrb[0].mxu0 %v530
    %v649 = vpop.f32.mrb[0].mxu0
    %v650 = vadd.f32 %v515, %v649
    %v651 = vpop.f32.mrb[0].mxu0
    %v652 = vadd.f32 %v519, %v651
    %653 = vmatprep.mubr.f32.mxu0 0.0
    %654 = vmatmul.mubr.f32.gmra.mrb[0].mxu0 %v533
    %v655 = vpop.f32.mrb[0].mxu0
    %v656 = vadd.f32 %v515, %v655
    %v657 = vpop.f32.mrb[0].mxu0
    %v658 = vadd.f32 %v519, %v657
    %659 = vmatprep.mubr.f32.mxu0 0.0
    %660 = vmatmul.mubr.f32.gmra.mrb[0].mxu0 %v536
    %v661 = vpop.f32.mrb[0].mxu0
    %v662 = vadd.f32 %v515, %v661
    %v663 = vpop.f32.mrb[0].mxu0
    %v664 = vadd.f32 %v519, %v663
    %665 = vmatprep.mubr.f32.mxu0 0.0
    %666 = vmatmul.mubr.f32.gmra.mrb[0].mxu0 %v539
    %v667 = vpop.f32.mrb[0].mxu0
    %v668 = vadd.f32 %v515, %v667
    %v669 = vpop.f32.mrb[0].mxu0
    %v670 = vadd.f32 %v519, %v669
    %671 = vmatprep.mubr.f32.mxu0 0.0
    %672 = vmatmul.mubr.f32.gmra.mrb[0].mxu0 %v542
    %v673 = vpop.f32.mrb[0].mxu0
    %v674 = vadd.f32 %v515, %v673
    %v675 = vpop.f32.mrb[0].mxu0
    %v676 = vadd.f32 %v519, %v675
    %677 = vmatprep.mubr.f32.mxu0 0.0
    %678 = vmatmul.mubr.f32.gmra.mrb[0].mxu0 %v545
    %v679 = vpop.f32.mrb[0].mxu0
    %v680 = vadd.f32 %v515, %v679
    %v681 = vpop.f32.mrb[0].mxu0
    %v682 = vadd.f32 %v519, %v681
    %683 = vmatprep.mubr.f32.mxu0 0.0
    %684 = vmatmul.mubr.f32.gmra.mrb[0].mxu0 %v548
    %v685 = vpop.f32.mrb[0].mxu0
    %v686 = vadd.f32 %v515, %v685
    %v687 = vpop.f32.mrb[0].mxu0
    %v688 = vadd.f32 %v519, %v687
    %689 = vmatprep.mubr.f32.mxu0 0.0
    %690 = vmatmul.mubr.f32.gmra.mrb[0].mxu0 %v551
    %v691 = vpop.f32.mrb[0].mxu0
    %v692 = vadd.f32 %v515, %v691
    %v693 = vpop.f32.mrb[0].mxu0
    %v694 = vadd.f32 %v519, %v693
    %695 = vmatprep.mubr.f32.mxu0 0.0
    %696 = vmatmul.mubr.f32.gmra.mrb[0].mxu0 %v554
    %v697 = vpop.f32.mrb[0].mxu0
    %v698 = vadd.f32 %v515, %v697
    %v699 = vpop.f32.mrb[0].mxu0
    %v700 = vadd.f32 %v519, %v699
    %701 = vmatprep.mubr.f32.mxu0 0.0
    %702 = vmatmul.mubr.f32.gmra.mrb[0].mxu0 %v557
    %v703 = vpop.f32.mrb[0].mxu0
    %v704 = vadd.f32 %v515, %v703
    %v705 = vpop.f32.mrb[0].mxu0
    %v706 = vadd.f32 %v519, %v705
    %707 = vmatprep.mubr.f32.mxu0 0.0
    %708 = vmatmul.mubr.f32.gmra.mrb[0].mxu0 %v560
    %v709 = vpop.f32.mrb[0].mxu0
    %v710 = vadd.f32 %v515, %v709
    %v711 = vpop.f32.mrb[0].mxu0
    %v712 = vadd.f32 %v519, %v711
    %713 = vmatprep.mubr.f32.mxu0 0.0
    %714 = vmatmul.mubr.f32.gmra.mrb[0].mxu0 %v563
    %v715 = vpop.f32.mrb[0].mxu0
    %v716 = vadd.f32 %v515, %v715
    %v717 = vpop.f32.mrb[0].mxu0
    %v718 = vadd.f32 %v519, %v717
    %719 = vmatprep.mubr.f32.mxu0 0.0
    %720 = vmatmul.mubr.f32.gmra.mrb[0].mxu0 %v566
    %v721 = vpop.f32.mrb[0].mxu0
    %v722 = vadd.f32 %v515, %v721
    %v723 = vpop.f32.mrb[0].mxu0
    %v724 = vadd.f32 %v519, %v723
    %725 = vmatprep.mubr.f32.mxu0 0.0
    %726 = vmatmul.mubr.f32.gmra.mrb[0].mxu0 %v569
    %v727 = vpop.f32.mrb[0].mxu0
    %v728 = vadd.f32 %v515, %v727
    %v729 = vpop.f32.mrb[0].mxu0
    %v730 = vadd.f32 %v519, %v729
    %731 = vdwg.mxu0
    %732 = vst [vmem:[#allocation2] sm:$0xff] %v638
    %733 = vst [vmem:[#allocation2 + $0x8] sm:$0xff] %v640
    %734 = vst [vmem:[#allocation2 + $0x10] sm:$0xff] %v644
    %735 = vst [vmem:[#allocation2 + $0x18] sm:$0xff] %v646
    %736 = vst [vmem:[#allocation2 + $0x20] sm:$0xff] %v650
    %737 = vst [vmem:[#allocation2 + $0x28] sm:$0xff] %v652
    %738 = vst [vmem:[#allocation2 + $0x30] sm:$0xff] %v656
    %739 = vst [vmem:[#allocation2 + $0x38] sm:$0xff] %v658
    %740 = vst [vmem:[#allocation2 + $0x40] sm:$0xff] %v662
    %741 = vst [vmem:[#allocation2 + $0x48] sm:$0xff] %v664
    %742 = vst [vmem:[#allocation2 + $0x50] sm:$0xff] %v668
    %743 = vst [vmem:[#allocation2 + $0x58] sm:$0xff] %v670
    %744 = vst [vmem:[#allocation2 + $0x60] sm:$0xff] %v674
    %745 = vst [vmem:[#allocation2 + $0x68] sm:$0xff] %v676
    %746 = vst [vmem:[#allocation2 + $0x70] sm:$0xff] %v680
    %747 = vst [vmem:[#allocation2 + $0x78] sm:$0xff] %v682
    %748 = vst [vmem:[#allocation2 + $0x80] sm:$0xff] %v686
    %749 = vst [vmem:[#allocation2 + $0x88] sm:$0xff] %v688
    %750 = vst [vmem:[#allocation2 + $0x90] sm:$0xff] %v692
    %751 = vst [vmem:[#allocation2 + $0x98] sm:$0xff] %v694
    %752 = vst [vmem:[#allocation2 + $0xa0] sm:$0xff] %v698
    %753 = vst [vmem:[#allocation2 + $0xa8] sm:$0xff] %v700
    %754 = vst [vmem:[#allocation2 + $0xb0] sm:$0xff] %v704
    %755 = vst [vmem:[#allocation2 + $0xb8] sm:$0xff] %v706
    %756 = vst [vmem:[#allocation2 + $0xc0] sm:$0xff] %v710
    %757 = vst [vmem:[#allocation2 + $0xc8] sm:$0xff] %v712
    %758 = vst [vmem:[#allocation2 + $0xd0] sm:$0xff] %v716
    %759 = vst [vmem:[#allocation2 + $0xd8] sm:$0xff] %v718
    %760 = vst [vmem:[#allocation2 + $0xe0] sm:$0xff] %v722
    %761 = vst [vmem:[#allocation2 + $0xe8] sm:$0xff] %v724
    %762 = vst [vmem:[#allocation2 + $0xf0] sm:$0xff] %v728
    %763 = vst [vmem:[#allocation2 + $0xf8] sm:$0xff] %v730
    %v764 = vld [vmem:[%s1] sm:$0xff]
    %v765 = vld [vmem:[%s8] sm:$0xff]
    %v766 = vld [vmem:[%s8 + $0x8] sm:$0xff]
    %v767 = vld [vmem:[%s8 + $0x10] sm:$0xff]
    %v768 = vld [vmem:[%s8 + $0x18] sm:$0xff]
    %v769 = vld [vmem:[%s8 + $0x20] sm:$0xff]
    %v770 = vld [vmem:[%s8 + $0x28] sm:$0xff]
    %v771 = vld [vmem:[%s8 + $0x30] sm:$0xff]
    %v772 = vld [vmem:[%s8 + $0x38] sm:$0xff]
    %s773 = smul.u32 0, 2
    %s774 = smul.addr %s773, 8
    %s775 = scalar_lea.vmem [#allocation2], %s774
    %v776 = vld [vmem:[%s775] sm:$0xff]
    %v777 = vld [vmem:[%s775 + $0x8] sm:$0xff]
    %s778 = smul.u32 15, 2
    %s779 = smul.addr %s778, 8
    %s780 = scalar_lea.vmem [#allocation2], %s779
    %v781 = vld [vmem:[%s780] sm:$0xff]
    %v782 = vld [vmem:[%s780 + $0x8] sm:$0xff]
    %v784 = vsel %vm522, 0.0, 0
    %786 = vmatprep.subr.mxu0 0.0
    %787 = vmatpush1.msra.mxu0 %v765
    %788 = vmatprep.subr.mxu0 0.0
    %789 = vmatpush1.msra.mxu0 %v767
    %790 = vmatprep.subr.mxu0 0.0
    %791 = vmatpush1.msra.mxu0 %v769
    %792 = vmatprep.subr.mxu0 0.0
    %793 = vmatpush1.msra.mxu0 %v771
    %794 = vmatprep.subr.mxu0 0.0
    %795 = vmatpush1.msra.mxu0 0.0
    %796 = vmatprep.subr.mxu0 0.0
    %797 = vmatpush1.msra.mxu0 0.0
    %798 = vmatprep.subr.mxu0 0.0
    %799 = vmatpush1.msra.mxu0 0.0
    %800 = vmatprep.subr.mxu0 0.0
    %801 = vmatpush1.msra.mxu0 0.0
    %802 = vmatprep.subr.mxu0 0.0
    %803 = vmatpush1.msra.mxu0 0.0
    %804 = vmatprep.subr.mxu0 0.0
    %805 = vmatpush1.msra.mxu0 0.0
    %806 = vmatprep.subr.mxu0 0.0
    %807 = vmatpush1.msra.mxu0 0.0
    %808 = vmatprep.subr.mxu0 0.0
    %809 = vmatpush1.msra.mxu0 0.0
    %810 = vmatprep.subr.mxu0 0.0
    %811 = vmatpush1.msra.mxu0 0.0
    %812 = vmatprep.subr.mxu0 0.0
    %813 = vmatpush1.msra.mxu0 0.0
    %814 = vmatprep.subr.mxu0 0.0
    %815 = vmatpush1.msra.mxu0 0.0
    %816 = vmatprep.subr.mxu0 0.0
    %817 = vmatpush1.msra.mxu0 0.0
    %818 = vmatprep.subr.mxu0 0.0
    %819 = vmatpush1.msra.mxu0 0.0
    %820 = vmatprep.subr.mxu0 0.0
    %821 = vmatpush1.msra.mxu0 0.0
    %822 = vmatprep.subr.mxu0 0.0
    %823 = vmatpush1.msra.mxu0 0.0
    %824 = vmatprep.subr.mxu0 0.0
    %825 = vmatpush1.msra.mxu0 0.0
    %826 = vmatprep.subr.mxu0 0.0
    %827 = vmatpush1.msra.mxu0 0.0
    %828 = vmatprep.subr.mxu0 0.0
    %829 = vmatpush1.msra.mxu0 0.0
    %830 = vmatprep.subr.mxu0 0.0
    %831 = vmatpush1.msra.mxu0 0.0
    %832 = vmatprep.subr.mxu0 0.0
    %833 = vmatpush1.msra.mxu0 0.0
    %834 = vmatprep.subr.mxu0 0.0
    %835 = vmatpush1.msra.mxu0 0.0
    %836 = vmatprep.subr.mxu0 0.0
    %837 = vmatpush1.msra.mxu0 0.0
    %838 = vmatprep.subr.mxu0 0.0
    %839 = vmatpush1.msra.mxu0 0.0
    %840 = vmatprep.subr.mxu0 0.0
    %841 = vmatpush1.msra.mxu0 0.0
    %842 = vmatprep.subr.mxu0 0.0
    %843 = vmatpush1.msra.mxu0 0.0
    %844 = vmatprep.subr.mxu0 0.0
    %845 = vmatpush1.msra.mxu0 0.0
    %846 = vmatprep.subr.mxu0 0.0
    %847 = vmatpush1.msra.mxu0 0.0
    %848 = vmatprep.subr.mxu0 0.0
    %849 = vmatpush1.msra.mxu0 0.0
    %850 = vmatprep.mubr.f32.mxu0 0.0
    %851 = vmatmul.mubr.f32.gmra.mrb[0].mxu0 %v784
    %v852 = vpop.f32.mrb[0].mxu0
    %v853 = vadd.f32 0.0, %v852
    %v854 = vpop.f32.mrb[0].mxu0
    %855 = vdwg.mxu0
    %v856 = vadd.f32 %v776, %v853
    %857 = vmatprep.subr.mxu0 0.0
    %858 = vmatpush1.msra.mxu0 %v766
    %859 = vmatprep.subr.mxu0 0.0
    %860 = vmatpush1.msra.mxu0 %v768
    %861 = vmatprep.subr.mxu0 0.0
    %862 = vmatpush1.msra.mxu0 %v770
    %863 = vmatprep.subr.mxu0 0.0
    %864 = vmatpush1.msra.mxu0 %v772
    %865 = vmatprep.subr.mxu0 0.0
    %866 = vmatpush1.msra.mxu0 0.0
    %867 = vmatprep.subr.mxu0 0.0
    %868 = vmatpush1.msra.mxu0 0.0
    %869 = vmatprep.subr.mxu0 0.0
    %870 = vmatpush1.msra.mxu0 0.0
    %871 = vmatprep.subr.mxu0 0.0
    %872 = vmatpush1.msra.mxu0 0.0
    %873 = vmatprep.subr.mxu0 0.0
    %874 = vmatpush1.msra.mxu0 0.0
    %875 = vmatprep.subr.mxu0 0.0
    %876 = vmatpush1.msra.mxu0 0.0
    %877 = vmatprep.subr.mxu0 0.0
    %878 = vmatpush1.msra.mxu0 0.0
    %879 = vmatprep.subr.mxu0 0.0
    %880 = vmatpush1.msra.mxu0 0.0
    %881 = vmatprep.subr.mxu0 0.0
    %882 = vmatpush1.msra.mxu0 0.0
    %883 = vmatprep.subr.mxu0 0.0
    %884 = vmatpush1.msra.mxu0 0.0
    %885 = vmatprep.subr.mxu0 0.0
    %886 = vmatpush1.msra.mxu0 0.0
    %887 = vmatprep.subr.mxu0 0.0
    %888 = vmatpush1.msra.mxu0 0.0
    %889 = vmatprep.subr.mxu0 0.0
    %890 = vmatpush1.msra.mxu0 0.0
    %891 = vmatprep.subr.mxu0 0.0
    %892 = vmatpush1.msra.mxu0 0.0
    %893 = vmatprep.subr.mxu0 0.0
    %894 = vmatpush1.msra.mxu0 0.0
    %895 = vmatprep.subr.mxu0 0.0
    %896 = vmatpush1.msra.mxu0 0.0
    %897 = vmatprep.subr.mxu0 0.0
    %898 = vmatpush1.msra.mxu0 0.0
    %899 = vmatprep.subr.mxu0 0.0
    %900 = vmatpush1.msra.mxu0 0.0
    %901 = vmatprep.subr.mxu0 0.0
    %902 = vmatpush1.msra.mxu0 0.0
    %903 = vmatprep.subr.mxu0 0.0
    %904 = vmatpush1.msra.mxu0 0.0
    %905 = vmatprep.subr.mxu0 0.0
    %906 = vmatpush1.msra.mxu0 0.0
    %907 = vmatprep.subr.mxu0 0.0
    %908 = vmatpush1.msra.mxu0 0.0
    %909 = vmatprep.subr.mxu0 0.0
    %910 = vmatpush1.msra.mxu0 0.0
    %911 = vmatprep.subr.mxu0 0.0
    %912 = vmatpush1.msra.mxu0 0.0
    %913 = vmatprep.subr.mxu0 0.0
    %914 = vmatpush1.msra.mxu0 0.0
    %915 = vmatprep.subr.mxu0 0.0
    %916 = vmatpush1.msra.mxu0 0.0
    %917 = vmatprep.subr.mxu0 0.0
    %918 = vmatpush1.msra.mxu0 0.0
    %919 = vmatprep.subr.mxu0 0.0
    %920 = vmatpush1.msra.mxu0 0.0
    %921 = vmatprep.mubr.f32.mxu0 0.0
    %922 = vmatmul.mubr.f32.gmra.mrb[0].mxu0 %v784
    %v923 = vpop.f32.mrb[0].mxu0
    %v924 = vadd.f32 0.0, %v923
    %v925 = vpop.f32.mrb[0].mxu0
    %926 = vdwg.mxu0
    %v927 = vadd.f32 %v782, %v924
    %v928 = vxor.u32 %v856, 2147483648
    %v929 = vmul.f32 %v928, 1.442695
    %v930 = vpow.pop %v929
    %v931 = vadd.f32 %v930, 1.0
    %v932 = vrcp.pop %v931
    %v933 = vmul.f32 1.0, %v932
    %v934 = vtanh.pop %v856
    %v935 = vmul.f32 %v933, 0.0
    %937 = vrot.lane.b32.xlu0 %v934, 64
    %v938 = vpop.permute.xlu0 %937
    %v940 = vmul.f32 %v933, %v938
    %942 = vrot.lane.b32.xlu0 %v940, 32
    %v943 = vpop.permute.xlu0 %942
    %v945 = vadd.f32 %v935, %v943
    %v946 = vtanh.pop %v945
    %948 = vrot.lane.b32.xlu0 %v946, 64
    %v949 = vpop.permute.xlu0 %948
    %v951 = vmul.f32 %v933, %v949
    %v952 = vxor.u32 %v927, 2147483648
    %v953 = vmul.f32 %v952, 1.442695
    %v954 = vpow.pop %v953
    %v955 = vadd.f32 %v954, 1.0
    %v956 = vrcp.pop %v955
    %v957 = vmul.f32 1.0, %v956
    %v958 = vtanh.pop %v927
    %v959 = vmul.f32 %v957, 0.0
    %961 = vrot.lane.b32.xlu0 %v958, 64
    %v962 = vpop.permute.xlu0 %961
    %v964 = vmul.f32 %v957, %v962
    %966 = vrot.lane.b32.xlu0 %v964, 32
    %v967 = vpop.permute.xlu0 %966
    %v969 = vadd.f32 %v959, %v967
    %v970 = vtanh.pop %v969
    %972 = vrot.lane.b32.xlu0 %v970, 64
    %v973 = vpop.permute.xlu0 %972
    %v975 = vmul.f32 %v957, %v973
    %vm976 = vcmp.gt.s32.totalorder %v764, 0
    %vm977 = vcmp.gt.s32.totalorder %v764, 15
    %v978 = vsel %vm976, 1, 0
    %979 = vset.pattern.permute.xlu0 0
    %980 = vperm.xlu0 %979, %v978
    %v981 = vpop.permute.xlu0 %980
    %vm982 = vcmp.eq.s32.totalorder %v981, 1
    %v983 = vsel %vm982, %v951, 0.0
    %v984 = vsel %vm982, %v945, 0.0
    %v985 = vsel %vm977, 1, 0
    %986 = vset.pattern.permute.xlu0 0
    %987 = vperm.xlu0 %986, %v985
    %v988 = vpop.permute.xlu0 %987
    %vm989 = vcmp.eq.s32.totalorder %v988, 1
    %v990 = vsel %vm989, %v975, 0.0
    %v991 = vsel %vm989, %v969, 0.0
    %s992 = smul.u32 1, 2
    %s993 = smul.addr %s992, 8
    %s994 = scalar_lea.vmem [#allocation2], %s993
    %v995 = vld [vmem:[%s994] sm:$0xff]
    %v996 = vld [vmem:[%s994 + $0x8] sm:$0xff]
    %s997 = smul.u32 14, 2
    %s998 = smul.addr %s997, 8
    %s999 = scalar_lea.vmem [#allocation2], %s998
    %v1000 = vld [vmem:[%s999] sm:$0xff]
    %v1001 = vld [vmem:[%s999 + $0x8] sm:$0xff]
    %1003 = vrot.lane.b32.xlu0 %v983, 32
    %v1004 = vpop.permute.xlu0 %1003
    %v1005 = vsel %vm522, %v1004, 0
    %1007 = vmatprep.subr.mxu0 0.0
    %1008 = vmatpush1.msra.mxu0 %v765
    %1009 = vmatprep.subr.mxu0 0.0
    %1010 = vmatpush1.msra.mxu0 %v767
    %1011 = vmatprep.subr.mxu0 0.0
    %1012 = vmatpush1.msra.mxu0 %v769
    %1013 = vmatprep.subr.mxu0 0.0
    %1014 = vmatpush1.msra.mxu0 %v771
    %1015 = vmatprep.subr.mxu0 0.0
    %1016 = vmatpush1.msra.mxu0 0.0
    %1017 = vmatprep.subr.mxu0 0.0
    %1018 = vmatpush1.msra.mxu0 0.0
    %1019 = vmatprep.subr.mxu0 0.0
    %1020 = vmatpush1.msra.mxu0 0.0
    %1021 = vmatprep.subr.mxu0 0.0
    %1022 = vmatpush1.msra.mxu0 0.0
    %1023 = vmatprep.subr.mxu0 0.0
    %1024 = vmatpush1.msra.mxu0 0.0
    %1025 = vmatprep.subr.mxu0 0.0
    %1026 = vmatpush1.msra.mxu0 0.0
    %1027 = vmatprep.subr.mxu0 0.0
    %1028 = vmatpush1.msra.mxu0 0.0
    %1029 = vmatprep.subr.mxu0 0.0
    %1030 = vmatpush1.msra.mxu0 0.0
    %1031 = vmatprep.subr.mxu0 0.0
    %1032 = vmatpush1.msra.mxu0 0.0
    %1033 = vmatprep.subr.mxu0 0.0
    %1034 = vmatpush1.msra.mxu0 0.0
    %1035 = vmatprep.subr.mxu0 0.0
    %1036 = vmatpush1.msra.mxu0 0.0
    %1037 = vmatprep.subr.mxu0 0.0
    %1038 = vmatpush1.msra.mxu0 0.0
    %1039 = vmatprep.subr.mxu0 0.0
    %1040 = vmatpush1.msra.mxu0 0.0
    %1041 = vmatprep.subr.mxu0 0.0
    %1042 = vmatpush1.msra.mxu0 0.0
    %1043 = vmatprep.subr.mxu0 0.0
    %1044 = vmatpush1.msra.mxu0 0.0
    %1045 = vmatprep.subr.mxu0 0.0
    %1046 = vmatpush1.msra.mxu0 0.0
    %1047 = vmatprep.subr.mxu0 0.0
    %1048 = vmatpush1.msra.mxu0 0.0
    %1049 = vmatprep.subr.mxu0 0.0
    %1050 = vmatpush1.msra.mxu0 0.0
    %1051 = vmatprep.subr.mxu0 0.0
    %1052 = vmatpush1.msra.mxu0 0.0
    %1053 = vmatprep.subr.mxu0 0.0
    %1054 = vmatpush1.msra.mxu0 0.0
    %1055 = vmatprep.subr.mxu0 0.0
    %1056 = vmatpush1.msra.mxu0 0.0
    %1057 = vmatprep.subr.mxu0 0.0
    %1058 = vmatpush1.msra.mxu0 0.0
    %1059 = vmatprep.subr.mxu0 0.0
    %1060 = vmatpush1.msra.mxu0 0.0
    %1061 = vmatprep.subr.mxu0 0.0
    %1062 = vmatpush1.msra.mxu0 0.0
    %1063 = vmatprep.subr.mxu0 0.0
    %1064 = vmatpush1.msra.mxu0 0.0
    %1065 = vmatprep.subr.mxu0 0.0
    %1066 = vmatpush1.msra.mxu0 0.0
    %1067 = vmatprep.subr.mxu0 0.0
    %1068 = vmatpush1.msra.mxu0 0.0
    %1069 = vmatprep.subr.mxu0 0.0
    %1070 = vmatpush1.msra.mxu0 0.0
    %1071 = vmatprep.mubr.f32.mxu0 0.0
    %1072 = vmatmul.mubr.f32.gmra.mrb[0].mxu0 %v1005
    %v1073 = vpop.f32.mrb[0].mxu0
    %v1074 = vadd.f32 0.0, %v1073
    %v1075 = vpop.f32.mrb[0].mxu0
    %1076 = vdwg.mxu0
    %v1077 = vadd.f32 %v995, %v1074
    %1079 = vrot.lane.b32.xlu0 %v990, 32
    %v1080 = vpop.permute.xlu0 %1079
    %v1081 = vsel %vm522, %v1080, 0
    %1083 = vmatprep.subr.mxu0 0.0
    %1084 = vmatpush1.msra.mxu0 %v766
    %1085 = vmatprep.subr.mxu0 0.0
    %1086 = vmatpush1.msra.mxu0 %v768
    %1087 = vmatprep.subr.mxu0 0.0
    %1088 = vmatpush1.msra.mxu0 %v770
    %1089 = vmatprep.subr.mxu0 0.0
    %1090 = vmatpush1.msra.mxu0 %v772
    %1091 = vmatprep.subr.mxu0 0.0
    %1092 = vmatpush1.msra.mxu0 0.0
    %1093 = vmatprep.subr.mxu0 0.0
    %1094 = vmatpush1.msra.mxu0 0.0
    %1095 = vmatprep.subr.mxu0 0.0
    %1096 = vmatpush1.msra.mxu0 0.0
    %1097 = vmatprep.subr.mxu0 0.0
    %1098 = vmatpush1.msra.mxu0 0.0
    %1099 = vmatprep.subr.mxu0 0.0
    %1100 = vmatpush1.msra.mxu0 0.0
    %1101 = vmatprep.subr.mxu0 0.0
    %1102 = vmatpush1.msra.mxu0 0.0
    %1103 = vmatprep.subr.mxu0 0.0
    %1104 = vmatpush1.msra.mxu0 0.0
    %1105 = vmatprep.subr.mxu0 0.0
    %1106 = vmatpush1.msra.mxu0 0.0
    %1107 = vmatprep.subr.mxu0 0.0
    %1108 = vmatpush1.msra.mxu0 0.0
    %1109 = vmatprep.subr.mxu0 0.0
    %1110 = vmatpush1.msra.mxu0 0.0
    %1111 = vmatprep.subr.mxu0 0.0
    %1112 = vmatpush1.msra.mxu0 0.0
    %1113 = vmatprep.subr.mxu0 0.0
    %1114 = vmatpush1.msra.mxu0 0.0
    %1115 = vmatprep.subr.mxu0 0.0
    %1116 = vmatpush1.msra.mxu0 0.0
    %1117 = vmatprep.subr.mxu0 0.0
    %1118 = vmatpush1.msra.mxu0 0.0
    %1119 = vmatprep.subr.mxu0 0.0
    %1120 = vmatpush1.msra.mxu0 0.0
    %1121 = vmatprep.subr.mxu0 0.0
    %1122 = vmatpush1.msra.mxu0 0.0
    %1123 = vmatprep.subr.mxu0 0.0
    %1124 = vmatpush1.msra.mxu0 0.0
    %1125 = vmatprep.subr.mxu0 0.0
    %1126 = vmatpush1.msra.mxu0 0.0
    %1127 = vmatprep.subr.mxu0 0.0
    %1128 = vmatpush1.msra.mxu0 0.0
    %1129 = vmatprep.subr.mxu0 0.0
    %1130 = vmatpush1.msra.mxu0 0.0
    %1131 = vmatprep.subr.mxu0 0.0
    %1132 = vmatpush1.msra.mxu0 0.0
    %1133 = vmatprep.subr.mxu0 0.0
    %1134 = vmatpush1.msra.mxu0 0.0
    %1135 = vmatprep.subr.mxu0 0.0
    %1136 = vmatpush1.msra.mxu0 0.0
    %1137 = vmatprep.subr.mxu0 0.0
    %1138 = vmatpush1.msra.mxu0 0.0
    %1139 = vmatprep.subr.mxu0 0.0
    %1140 = vmatpush1.msra.mxu0 0.0
    %1141 = vmatprep.subr.mxu0 0.0
    %1142 = vmatpush1.msra.mxu0 0.0
    %1143 = vmatprep.subr.mxu0 0.0
    %1144 = vmatpush1.msra.mxu0 0.0
    %1145 = vmatprep.subr.mxu0 0.0
    %1146 = vmatpush1.msra.mxu0 0.0
    %1147 = vmatprep.mubr.f32.mxu0 0.0
    %1148 = vmatmul.mubr.f32.gmra.mrb[0].mxu0 %v1081
    %v1149 = vpop.f32.mrb[0].mxu0
    %v1150 = vadd.f32 0.0, %v1149
    %v1151 = vpop.f32.mrb[0].mxu0
    %1152 = vdwg.mxu0
    %v1153 = vadd.f32 %v1001, %v1150
    %v1154 = vxor.u32 %v1077, 2147483648
    %v1155 = vmul.f32 %v1154, 1.442695
    %v1156 = vpow.pop %v1155
    %v1157 = vadd.f32 %v1156, 1.0
    %v1158 = vrcp.pop %v1157
    %v1159 = vmul.f32 1.0, %v1158
    %v1160 = vtanh.pop %v1077
    %v1161 = vmul.f32 %v1159, %v984
    %1163 = vrot.lane.b32.xlu0 %v1160, 64
    %v1164 = vpop.permute.xlu0 %1163
    %v1166 = vmul.f32 %v1159, %v1164
    %1168 = vrot.lane.b32.xlu0 %v1166, 32
    %v1169 = vpop.permute.xlu0 %1168
    %v1171 = vadd.f32 %v1161, %v1169
    %v1172 = vtanh.pop %v1171
    %1174 = vrot.lane.b32.xlu0 %v1172, 64
    %v1175 = vpop.permute.xlu0 %1174
    %v1177 = vmul.f32 %v1159, %v1175
    %v1178 = vxor.u32 %v1153, 2147483648
    %v1179 = vmul.f32 %v1178, 1.442695
    %v1180 = vpow.pop %v1179
    %v1181 = vadd.f32 %v1180, 1.0
    %v1182 = vrcp.pop %v1181
    %v1183 = vmul.f32 1.0, %v1182
    %v1184 = vtanh.pop %v1153
    %v1185 = vmul.f32 %v1183, %v991
    %1187 = vrot.lane.b32.xlu0 %v1184, 64
    %v1188 = vpop.permute.xlu0 %1187
    %v1190 = vmul.f32 %v1183, %v1188
    %1192 = vrot.lane.b32.xlu0 %v1190, 32
    %v1193 = vpop.permute.xlu0 %1192
    %v1195 = vadd.f32 %v1185, %v1193
    %v1196 = vtanh.pop %v1195
    %1198 = vrot.lane.b32.xlu0 %v1196, 64
    %v1199 = vpop.permute.xlu0 %1198
    %v1201 = vmul.f32 %v1183, %v1199
    %vm1202 = vcmp.gt.s32.totalorder %v764, 1
    %vm1203 = vcmp.gt.s32.totalorder %v764, 14
    %v1204 = vsel %vm1202, 1, 0
    %1205 = vset.pattern.permute.xlu0 0
    %1206 = vperm.xlu0 %1205, %v1204
    %v1207 = vpop.permute.xlu0 %1206
    %vm1208 = vcmp.eq.s32.totalorder %v1207, 1
    %v1209 = vsel %vm1208, %v1177, %v983
    %v1210 = vsel %vm1208, %v1171, %v984
    %v1211 = vsel %vm1203, 1, 0
    %1212 = vset.pattern.permute.xlu0 0
    %1213 = vperm.xlu0 %1212, %v1211
    %v1214 = vpop.permute.xlu0 %1213
    %vm1215 = vcmp.eq.s32.totalorder %v1214, 1
    %v1216 = vsel %vm1215, %v1201, %v990
    %v1217 = vsel %vm1215, %v1195, %v991
    %s1218 = smul.u32 2, 2
    %s1219 = smul.addr %s1218, 8
    %s1220 = scalar_lea.vmem [#allocation2], %s1219
    %v1221 = vld [vmem:[%s1220] sm:$0xff]
    %v1222 = vld [vmem:[%s1220 + $0x8] sm:$0xff]
    %s1223 = smul.u32 13, 2
    %s1224 = smul.addr %s1223, 8
    %s1225 = scalar_lea.vmem [#allocation2], %s1224
    %v1226 = vld [vmem:[%s1225] sm:$0xff]
    %v1227 = vld [vmem:[%s1225 + $0x8] sm:$0xff]
    %1229 = vrot.lane.b32.xlu0 %v1209, 32
    %v1230 = vpop.permute.xlu0 %1229
    %v1231 = vsel %vm522, %v1230, 0
    %1233 = vmatprep.subr.mxu0 0.0
    %1234 = vmatpush1.msra.mxu0 %v765
    %1235 = vmatprep.subr.mxu0 0.0
    %1236 = vmatpush1.msra.mxu0 %v767
    %1237 = vmatprep.subr.mxu0 0.0
    %1238 = vmatpush1.msra.mxu0 %v769
    %1239 = vmatprep.subr.mxu0 0.0
    %1240 = vmatpush1.msra.mxu0 %v771
    %1241 = vmatprep.subr.mxu0 0.0
    %1242 = vmatpush1.msra.mxu0 0.0
    %1243 = vmatprep.subr.mxu0 0.0
    %1244 = vmatpush1.msra.mxu0 0.0
    %1245 = vmatprep.subr.mxu0 0.0
    %1246 = vmatpush1.msra.mxu0 0.0
    %1247 = vmatprep.subr.mxu0 0.0
    %1248 = vmatpush1.msra.mxu0 0.0
    %1249 = vmatprep.subr.mxu0 0.0
    %1250 = vmatpush1.msra.mxu0 0.0
    %1251 = vmatprep.subr.mxu0 0.0
    %1252 = vmatpush1.msra.mxu0 0.0
    %1253 = vmatprep.subr.mxu0 0.0
    %1254 = vmatpush1.msra.mxu0 0.0
    %1255 = vmatprep.subr.mxu0 0.0
    %1256 = vmatpush1.msra.mxu0 0.0
    %1257 = vmatprep.subr.mxu0 0.0
    %1258 = vmatpush1.msra.mxu0 0.0
    %1259 = vmatprep.subr.mxu0 0.0
    %1260 = vmatpush1.msra.mxu0 0.0
    %1261 = vmatprep.subr.mxu0 0.0
    %1262 = vmatpush1.msra.mxu0 0.0
    %1263 = vmatprep.subr.mxu0 0.0
    %1264 = vmatpush1.msra.mxu0 0.0
    %1265 = vmatprep.subr.mxu0 0.0
    %1266 = vmatpush1.msra.mxu0 0.0
    %1267 = vmatprep.subr.mxu0 0.0
    %1268 = vmatpush1.msra.mxu0 0.0
    %1269 = vmatprep.subr.mxu0 0.0
    %1270 = vmatpush1.msra.mxu0 0.0
    %1271 = vmatprep.subr.mxu0 0.0
    %1272 = vmatpush1.msra.mxu0 0.0
    %1273 = vmatprep.subr.mxu0 0.0
    %1274 = vmatpush1.msra.mxu0 0.0
    %1275 = vmatprep.subr.mxu0 0.0
    %1276 = vmatpush1.msra.mxu0 0.0
    %1277 = vmatprep.subr.mxu0 0.0
    %1278 = vmatpush1.msra.mxu0 0.0
    %1279 = vmatprep.subr.mxu0 0.0
    %1280 = vmatpush1.msra.mxu0 0.0
    %1281 = vmatprep.subr.mxu0 0.0
    %1282 = vmatpush1.msra.mxu0 0.0
    %1283 = vmatprep.subr.mxu0 0.0
    %1284 = vmatpush1.msra.mxu0 0.0
    %1285 = vmatprep.subr.mxu0 0.0
    %1286 = vmatpush1.msra.mxu0 0.0
    %1287 = vmatprep.subr.mxu0 0.0
    %1288 = vmatpush1.msra.mxu0 0.0
    %1289 = vmatprep.subr.mxu0 0.0
    %1290 = vmatpush1.msra.mxu0 0.0
    %1291 = vmatprep.subr.mxu0 0.0
    %1292 = vmatpush1.msra.mxu0 0.0
    %1293 = vmatprep.subr.mxu0 0.0
    %1294 = vmatpush1.msra.mxu0 0.0
    %1295 = vmatprep.subr.mxu0 0.0
    %1296 = vmatpush1.msra.mxu0 0.0
    %1297 = vmatprep.mubr.f32.mxu0 0.0
    %1298 = vmatmul.mubr.f32.gmra.mrb[0].mxu0 %v1231
    %v1299 = vpop.f32.mrb[0].mxu0
    %v1300 = vadd.f32 0.0, %v1299
    %v1301 = vpop.f32.mrb[0].mxu0
    %1302 = vdwg.mxu0
    %v1303 = vadd.f32 %v1221, %v1300
    %1305 = vrot.lane.b32.xlu0 %v1216, 32
    %v1306 = vpop.permute.xlu0 %1305
    %v1307 = vsel %vm522, %v1306, 0
    %1309 = vmatprep.subr.mxu0 0.0
    %1310 = vmatpush1.msra.mxu0 %v766
    %1311 = vmatprep.subr.mxu0 0.0
    %1312 = vmatpush1.msra.mxu0 %v768
    %1313 = vmatprep.subr.mxu0 0.0
    %1314 = vmatpush1.msra.mxu0 %v770
    %1315 = vmatprep.subr.mxu0 0.0
    %1316 = vmatpush1.msra.mxu0 %v772
    %1317 = vmatprep.subr.mxu0 0.0
    %1318 = vmatpush1.msra.mxu0 0.0
    %1319 = vmatprep.subr.mxu0 0.0
    %1320 = vmatpush1.msra.mxu0 0.0
    %1321 = vmatprep.subr.mxu0 0.0
    %1322 = vmatpush1.msra.mxu0 0.0
    %1323 = vmatprep.subr.mxu0 0.0
    %1324 = vmatpush1.msra.mxu0 0.0
    %1325 = vmatprep.subr.mxu0 0.0
    %1326 = vmatpush1.msra.mxu0 0.0
    %1327 = vmatprep.subr.mxu0 0.0
    %1328 = vmatpush1.msra.mxu0 0.0
    %1329 = vmatprep.subr.mxu0 0.0
    %1330 = vmatpush1.msra.mxu0 0.0
    %1331 = vmatprep.subr.mxu0 0.0
    %1332 = vmatpush1.msra.mxu0 0.0
    %1333 = vmatprep.subr.mxu0 0.0
    %1334 = vmatpush1.msra.mxu0 0.0
    %1335 = vmatprep.subr.mxu0 0.0
    %1336 = vmatpush1.msra.mxu0 0.0
    %1337 = vmatprep.subr.mxu0 0.0
    %1338 = vmatpush1.msra.mxu0 0.0
    %1339 = vmatprep.subr.mxu0 0.0
    %1340 = vmatpush1.msra.mxu0 0.0
    %1341 = vmatprep.subr.mxu0 0.0
    %1342 = vmatpush1.msra.mxu0 0.0
    %1343 = vmatprep.subr.mxu0 0.0
    %1344 = vmatpush1.msra.mxu0 0.0
    %1345 = vmatprep.subr.mxu0 0.0
    %1346 = vmatpush1.msra.mxu0 0.0
    %1347 = vmatprep.subr.mxu0 0.0
    %1348 = vmatpush1.msra.mxu0 0.0
    %1349 = vmatprep.subr.mxu0 0.0
    %1350 = vmatpush1.msra.mxu0 0.0
    %1351 = vmatprep.subr.mxu0 0.0
    %1352 = vmatpush1.msra.mxu0 0.0
    %1353 = vmatprep.subr.mxu0 0.0
    %1354 = vmatpush1.msra.mxu0 0.0
    %1355 = vmatprep.subr.mxu0 0.0
    %1356 = vmatpush1.msra.mxu0 0.0
    %1357 = vmatprep.subr.mxu0 0.0
    %1358 = vmatpush1.msra.mxu0 0.0
    %1359 = vmatprep.subr.mxu0 0.0
    %1360 = vmatpush1.msra.mxu0 0.0
    %1361 = vmatprep.subr.mxu0 0.0
    %1362 = vmatpush1.msra.mxu0 0.0
    %1363 = vmatprep.subr.mxu0 0.0
    %1364 = vmatpush1.msra.mxu0 0.0
    %1365 = vmatprep.subr.mxu0 0.0
    %1366 = vmatpush1.msra.mxu0 0.0
    %1367 = vmatprep.subr.mxu0 0.0
    %1368 = vmatpush1.msra.mxu0 0.0
    %1369 = vmatprep.subr.mxu0 0.0
    %1370 = vmatpush1.msra.mxu0 0.0
    %1371 = vmatprep.subr.mxu0 0.0
    %1372 = vmatpush1.msra.mxu0 0.0
    %1373 = vmatprep.mubr.f32.mxu0 0.0
    %1374 = vmatmul.mubr.f32.gmra.mrb[0].mxu0 %v1307
    %v1375 = vpop.f32.mrb[0].mxu0
    %v1376 = vadd.f32 0.0, %v1375
    %v1377 = vpop.f32.mrb[0].mxu0
    %1378 = vdwg.mxu0
    %v1379 = vadd.f32 %v1227, %v1376
    %v1380 = vxor.u32 %v1303, 2147483648
    %v1381 = vmul.f32 %v1380, 1.442695
    %v1382 = vpow.pop %v1381
    %v1383 = vadd.f32 %v1382, 1.0
    %v1384 = vrcp.pop %v1383
    %v1385 = vmul.f32 1.0, %v1384
    %v1386 = vtanh.pop %v1303
    %v1387 = vmul.f32 %v1385, %v1210
    %1389 = vrot.lane.b32.xlu0 %v1386, 64
    %v1390 = vpop.permute.xlu0 %1389
    %v1392 = vmul.f32 %v1385, %v1390
    %1394 = vrot.lane.b32.xlu0 %v1392, 32
    %v1395 = vpop.permute.xlu0 %1394
    %v1397 = vadd.f32 %v1387, %v1395
    %v1398 = vtanh.pop %v1397
    %1400 = vrot.lane.b32.xlu0 %v1398, 64
    %v1401 = vpop.permute.xlu0 %1400
    %v1403 = vmul.f32 %v1385, %v1401
    %v1404 = vxor.u32 %v1379, 2147483648
    %v1405 = vmul.f32 %v1404, 1.442695
    %v1406 = vpow.pop %v1405
    %v1407 = vadd.f32 %v1406, 1.0
    %v1408 = vrcp.pop %v1407
    %v1409 = vmul.f32 1.0, %v1408
    %v1410 = vtanh.pop %v1379
    %v1411 = vmul.f32 %v1409, %v1217
    %1413 = vrot.lane.b32.xlu0 %v1410, 64
    %v1414 = vpop.permute.xlu0 %1413
    %v1416 = vmul.f32 %v1409, %v1414
    %1418 = vrot.lane.b32.xlu0 %v1416, 32
    %v1419 = vpop.permute.xlu0 %1418
    %v1421 = vadd.f32 %v1411, %v1419
    %v1422 = vtanh.pop %v1421
    %1424 = vrot.lane.b32.xlu0 %v1422, 64
    %v1425 = vpop.permute.xlu0 %1424
    %v1427 = vmul.f32 %v1409, %v1425
    %vm1428 = vcmp.gt.s32.totalorder %v764, 2
    %vm1429 = vcmp.gt.s32.totalorder %v764, 13
    %v1430 = vsel %vm1428, 1, 0
    %1431 = vset.pattern.permute.xlu0 0
    %1432 = vperm.xlu0 %1431, %v1430
    %v1433 = vpop.permute.xlu0 %1432
    %vm1434 = vcmp.eq.s32.totalorder %v1433, 1
    %v1435 = vsel %vm1434, %v1403, %v1209
    %v1436 = vsel %vm1434, %v1397, %v1210
    %v1437 = vsel %vm1429, 1, 0
    %1438 = vset.pattern.permute.xlu0 0
    %1439 = vperm.xlu0 %1438, %v1437
    %v1440 = vpop.permute.xlu0 %1439
    %vm1441 = vcmp.eq.s32.totalorder %v1440, 1
    %v1442 = vsel %vm1441, %v1427, %v1216
    %v1443 = vsel %vm1441, %v1421, %v1217
    %s1444 = smul.u32 3, 2
    %s1445 = smul.addr %s1444, 8
    %s1446 = scalar_lea.vmem [#allocation2], %s1445
    %v1447 = vld [vmem:[%s1446] sm:$0xff]
    %v1448 = vld [vmem:[%s1446 + $0x8] sm:$0xff]
    %s1449 = smul.u32 12, 2
    %s1450 = smul.addr %s1449, 8
    %s1451 = scalar_lea.vmem [#allocation2], %s1450
    %v1452 = vld [vmem:[%s1451] sm:$0xff]
    %v1453 = vld [vmem:[%s1451 + $0x8] sm:$0xff]
    %1455 = vrot.lane.b32.xlu0 %v1435, 32
    %v1456 = vpop.permute.xlu0 %1455
    %v1457 = vsel %vm522, %v1456, 0
    %1459 = vmatprep.subr.mxu0 0.0
    %1460 = vmatpush1.msra.mxu0 %v765
    %1461 = vmatprep.subr.mxu0 0.0
    %1462 = vmatpush1.msra.mxu0 %v767
    %1463 = vmatprep.subr.mxu0 0.0
    %1464 = vmatpush1.msra.mxu0 %v769
    %1465 = vmatprep.subr.mxu0 0.0
    %1466 = vmatpush1.msra.mxu0 %v771
    %1467 = vmatprep.subr.mxu0 0.0
    %1468 = vmatpush1.msra.mxu0 0.0
    %1469 = vmatprep.subr.mxu0 0.0
    %1470 = vmatpush1.msra.mxu0 0.0
    %1471 = vmatprep.subr.mxu0 0.0
    %1472 = vmatpush1.msra.mxu0 0.0
    %1473 = vmatprep.subr.mxu0 0.0
    %1474 = vmatpush1.msra.mxu0 0.0
    %1475 = vmatprep.subr.mxu0 0.0
    %1476 = vmatpush1.msra.mxu0 0.0
    %1477 = vmatprep.subr.mxu0 0.0
    %1478 = vmatpush1.msra.mxu0 0.0
    %1479 = vmatprep.subr.mxu0 0.0
    %1480 = vmatpush1.msra.mxu0 0.0
    %1481 = vmatprep.subr.mxu0 0.0
    %1482 = vmatpush1.msra.mxu0 0.0
    %1483 = vmatprep.subr.mxu0 0.0
    %1484 = vmatpush1.msra.mxu0 0.0
    %1485 = vmatprep.subr.mxu0 0.0
    %1486 = vmatpush1.msra.mxu0 0.0
    %1487 = vmatprep.subr.mxu0 0.0
    %1488 = vmatpush1.msra.mxu0 0.0
    %1489 = vmatprep.subr.mxu0 0.0
    %1490 = vmatpush1.msra.mxu0 0.0
    %1491 = vmatprep.subr.mxu0 0.0
    %1492 = vmatpush1.msra.mxu0 0.0
    %1493 = vmatprep.subr.mxu0 0.0
    %1494 = vmatpush1.msra.mxu0 0.0
    %1495 = vmatprep.subr.mxu0 0.0
    %1496 = vmatpush1.msra.mxu0 0.0
    %1497 = vmatprep.subr.mxu0 0.0
    %1498 = vmatpush1.msra.mxu0 0.0
    %1499 = vmatprep.subr.mxu0 0.0
    %1500 = vmatpush1.msra.mxu0 0.0
    %1501 = vmatprep.subr.mxu0 0.0
    %1502 = vmatpush1.msra.mxu0 0.0
    %1503 = vmatprep.subr.mxu0 0.0
    %1504 = vmatpush1.msra.mxu0 0.0
    %1505 = vmatprep.subr.mxu0 0.0
    %1506 = vmatpush1.msra.mxu0 0.0
    %1507 = vmatprep.subr.mxu0 0.0
    %1508 = vmatpush1.msra.mxu0 0.0
    %1509 = vmatprep.subr.mxu0 0.0
    %1510 = vmatpush1.msra.mxu0 0.0
    %1511 = vmatprep.subr.mxu0 0.0
    %1512 = vmatpush1.msra.mxu0 0.0
    %1513 = vmatprep.subr.mxu0 0.0
    %1514 = vmatpush1.msra.mxu0 0.0
    %1515 = vmatprep.subr.mxu0 0.0
    %1516 = vmatpush1.msra.mxu0 0.0
    %1517 = vmatprep.subr.mxu0 0.0
    %1518 = vmatpush1.msra.mxu0 0.0
    %1519 = vmatprep.subr.mxu0 0.0
    %1520 = vmatpush1.msra.mxu0 0.0
    %1521 = vmatprep.subr.mxu0 0.0
    %1522 = vmatpush1.msra.mxu0 0.0
    %1523 = vmatprep.mubr.f32.mxu0 0.0
    %1524 = vmatmul.mubr.f32.gmra.mrb[0].mxu0 %v1457
    %v1525 = vpop.f32.mrb[0].mxu0
    %v1526 = vadd.f32 0.0, %v1525
    %v1527 = vpop.f32.mrb[0].mxu0
    %1528 = vdwg.mxu0
    %v1529 = vadd.f32 %v1447, %v1526
    %1531 = vrot.lane.b32.xlu0 %v1442, 32
    %v1532 = vpop.permute.xlu0 %1531
    %v1533 = vsel %vm522, %v1532, 0
    %1535 = vmatprep.subr.mxu0 0.0
    %1536 = vmatpush1.msra.mxu0 %v766
    %1537 = vmatprep.subr.mxu0 0.0
    %1538 = vmatpush1.msra.mxu0 %v768
    %1539 = vmatprep.subr.mxu0 0.0
    %1540 = vmatpush1.msra.mxu0 %v770
    %1541 = vmatprep.subr.mxu0 0.0
    %1542 = vmatpush1.msra.mxu0 %v772
    %1543 = vmatprep.subr.mxu0 0.0
    %1544 = vmatpush1.msra.mxu0 0.0
    %1545 = vmatprep.subr.mxu0 0.0
    %1546 = vmatpush1.msra.mxu0 0.0
    %1547 = vmatprep.subr.mxu0 0.0
    %1548 = vmatpush1.msra.mxu0 0.0
    %1549 = vmatprep.subr.mxu0 0.0
    %1550 = vmatpush1.msra.mxu0 0.0
    %1551 = vmatprep.subr.mxu0 0.0
    %1552 = vmatpush1.msra.mxu0 0.0
    %1553 = vmatprep.subr.mxu0 0.0
    %1554 = vmatpush1.msra.mxu0 0.0
    %1555 = vmatprep.subr.mxu0 0.0
    %1556 = vmatpush1.msra.mxu0 0.0
    %1557 = vmatprep.subr.mxu0 0.0
    %1558 = vmatpush1.msra.mxu0 0.0
    %1559 = vmatprep.subr.mxu0 0.0
    %1560 = vmatpush1.msra.mxu0 0.0
    %1561 = vmatprep.subr.mxu0 0.0
    %1562 = vmatpush1.msra.mxu0 0.0
    %1563 = vmatprep.subr.mxu0 0.0
    %1564 = vmatpush1.msra.mxu0 0.0
    %1565 = vmatprep.subr.mxu0 0.0
    %1566 = vmatpush1.msra.mxu0 0.0
    %1567 = vmatprep.subr.mxu0 0.0
    %1568 = vmatpush1.msra.mxu0 0.0
    %1569 = vmatprep.subr.mxu0 0.0
    %1570 = vmatpush1.msra.mxu0 0.0
    %1571 = vmatprep.subr.mxu0 0.0
    %1572 = vmatpush1.msra.mxu0 0.0
    %1573 = vmatprep.subr.mxu0 0.0
    %1574 = vmatpush1.msra.mxu0 0.0
    %1575 = vmatprep.subr.mxu0 0.0
    %1576 = vmatpush1.msra.mxu0 0.0
    %1577 = vmatprep.subr.mxu0 0.0
    %1578 = vmatpush1.msra.mxu0 0.0
    %1579 = vmatprep.subr.mxu0 0.0
    %1580 = vmatpush1.msra.mxu0 0.0
    %1581 = vmatprep.subr.mxu0 0.0
    %1582 = vmatpush1.msra.mxu0 0.0
    %1583 = vmatprep.subr.mxu0 0.0
    %1584 = vmatpush1.msra.mxu0 0.0
    %1585 = vmatprep.subr.mxu0 0.0
    %1586 = vmatpush1.msra.mxu0 0.0
    %1587 = vmatprep.subr.mxu0 0.0
    %1588 = vmatpush1.msra.mxu0 0.0
    %1589 = vmatprep.subr.mxu0 0.0
    %1590 = vmatpush1.msra.mxu0 0.0
    %1591 = vmatprep.subr.mxu0 0.0
    %1592 = vmatpush1.msra.mxu0 0.0
    %1593 = vmatprep.subr.mxu0 0.0
    %1594 = vmatpush1.msra.mxu0 0.0
    %1595 = vmatprep.subr.mxu0 0.0
    %1596 = vmatpush1.msra.mxu0 0.0
    %1597 = vmatprep.subr.mxu0 0.0
    %1598 = vmatpush1.msra.mxu0 0.0
    %1599 = vmatprep.mubr.f32.mxu0 0.0
    %1600 = vmatmul.mubr.f32.gmra.mrb[0].mxu0 %v1533
    %v1601 = vpop.f32.mrb[0].mxu0
    %v1602 = vadd.f32 0.0, %v1601
    %v1603 = vpop.f32.mrb[0].mxu0
    %1604 = vdwg.mxu0
    %v1605 = vadd.f32 %v1453, %v1602
    %v1606 = vxor.u32 %v1529, 2147483648
    %v1607 = vmul.f32 %v1606, 1.442695
    %v1608 = vpow.pop %v1607
    %v1609 = vadd.f32 %v1608, 1.0
    %v1610 = vrcp.pop %v1609
    %v1611 = vmul.f32 1.0, %v1610
    %v1612 = vtanh.pop %v1529
    %v1613 = vmul.f32 %v1611, %v1436
    %1615 = vrot.lane.b32.xlu0 %v1612, 64
    %v1616 = vpop.permute.xlu0 %1615
    %v1618 = vmul.f32 %v1611, %v1616
    %1620 = vrot.lane.b32.xlu0 %v1618, 32
    %v1621 = vpop.permute.xlu0 %1620
    %v1623 = vadd.f32 %v1613, %v1621
    %v1624 = vtanh.pop %v1623
    %1626 = vrot.lane.b32.xlu0 %v1624, 64
    %v1627 = vpop.permute.xlu0 %1626
    %v1629 = vmul.f32 %v1611, %v1627
    %v1630 = vxor.u32 %v1605, 2147483648
    %v1631 = vmul.f32 %v1630, 1.442695
    %v1632 = vpow.pop %v1631
    %v1633 = vadd.f32 %v1632, 1.0
    %v1634 = vrcp.pop %v1633
    %v1635 = vmul.f32 1.0, %v1634
    %v1636 = vtanh.pop %v1605
    %v1637 = vmul.f32 %v1635, %v1443
    %1639 = vrot.lane.b32.xlu0 %v1636, 64
    %v1640 = vpop.permute.xlu0 %1639
    %v1642 = vmul.f32 %v1635, %v1640
    %1644 = vrot.lane.b32.xlu0 %v1642, 32
    %v1645 = vpop.permute.xlu0 %1644
    %v1647 = vadd.f32 %v1637, %v1645
    %v1648 = vtanh.pop %v1647
    %1650 = vrot.lane.b32.xlu0 %v1648, 64
    %v1651 = vpop.permute.xlu0 %1650
    %v1653 = vmul.f32 %v1635, %v1651
    %vm1654 = vcmp.gt.s32.totalorder %v764, 3
    %vm1655 = vcmp.gt.s32.totalorder %v764, 12
    %v1656 = vsel %vm1654, 1, 0
    %1657 = vset.pattern.permute.xlu0 0
    %1658 = vperm.xlu0 %1657, %v1656
    %v1659 = vpop.permute.xlu0 %1658
    %vm1660 = vcmp.eq.s32.totalorder %v1659, 1
    %v1661 = vsel %vm1660, %v1629, %v1435
    %v1662 = vsel %vm1660, %v1623, %v1436
    %v1663 = vsel %vm1655, 1, 0
    %1664 = vset.pattern.permute.xlu0 0
    %1665 = vperm.xlu0 %1664, %v1663
    %v1666 = vpop.permute.xlu0 %1665
    %vm1667 = vcmp.eq.s32.totalorder %v1666, 1
    %v1668 = vsel %vm1667, %v1653, %v1442
    %v1669 = vsel %vm1667, %v1647, %v1443
    %s1670 = smul.u32 4, 2
    %s1671 = smul.addr %s1670, 8
    %s1672 = scalar_lea.vmem [#allocation2], %s1671
    %v1673 = vld [vmem:[%s1672] sm:$0xff]
    %v1674 = vld [vmem:[%s1672 + $0x8] sm:$0xff]
    %s1675 = smul.u32 11, 2
    %s1676 = smul.addr %s1675, 8
    %s1677 = scalar_lea.vmem [#allocation2], %s1676
    %v1678 = vld [vmem:[%s1677] sm:$0xff]
    %v1679 = vld [vmem:[%s1677 + $0x8] sm:$0xff]
    %1681 = vrot.lane.b32.xlu0 %v1661, 32
    %v1682 = vpop.permute.xlu0 %1681
    %v1683 = vsel %vm522, %v1682, 0
    %1685 = vmatprep.subr.mxu0 0.0
    %1686 = vmatpush1.msra.mxu0 %v765
    %1687 = vmatprep.subr.mxu0 0.0
    %1688 = vmatpush1.msra.mxu0 %v767
    %1689 = vmatprep.subr.mxu0 0.0
    %1690 = vmatpush1.msra.mxu0 %v769
    %1691 = vmatprep.subr.mxu0 0.0
    %1692 = vmatpush1.msra.mxu0 %v771
    %1693 = vmatprep.subr.mxu0 0.0
    %1694 = vmatpush1.msra.mxu0 0.0
    %1695 = vmatprep.subr.mxu0 0.0
    %1696 = vmatpush1.msra.mxu0 0.0
    %1697 = vmatprep.subr.mxu0 0.0
    %1698 = vmatpush1.msra.mxu0 0.0
    %1699 = vmatprep.subr.mxu0 0.0
    %1700 = vmatpush1.msra.mxu0 0.0
    %1701 = vmatprep.subr.mxu0 0.0
    %1702 = vmatpush1.msra.mxu0 0.0
    %1703 = vmatprep.subr.mxu0 0.0
    %1704 = vmatpush1.msra.mxu0 0.0
    %1705 = vmatprep.subr.mxu0 0.0
    %1706 = vmatpush1.msra.mxu0 0.0
    %1707 = vmatprep.subr.mxu0 0.0
    %1708 = vmatpush1.msra.mxu0 0.0
    %1709 = vmatprep.subr.mxu0 0.0
    %1710 = vmatpush1.msra.mxu0 0.0
    %1711 = vmatprep.subr.mxu0 0.0
    %1712 = vmatpush1.msra.mxu0 0.0
    %1713 = vmatprep.subr.mxu0 0.0
    %1714 = vmatpush1.msra.mxu0 0.0
    %1715 = vmatprep.subr.mxu0 0.0
    %1716 = vmatpush1.msra.mxu0 0.0
    %1717 = vmatprep.subr.mxu0 0.0
    %1718 = vmatpush1.msra.mxu0 0.0
    %1719 = vmatprep.subr.mxu0 0.0
    %1720 = vmatpush1.msra.mxu0 0.0
    %1721 = vmatprep.subr.mxu0 0.0
    %1722 = vmatpush1.msra.mxu0 0.0
    %1723 = vmatprep.subr.mxu0 0.0
    %1724 = vmatpush1.msra.mxu0 0.0
    %1725 = vmatprep.subr.mxu0 0.0
    %1726 = vmatpush1.msra.mxu0 0.0
    %1727 = vmatprep.subr.mxu0 0.0
    %1728 = vmatpush1.msra.mxu0 0.0
    %1729 = vmatprep.subr.mxu0 0.0
    %1730 = vmatpush1.msra.mxu0 0.0
    %1731 = vmatprep.subr.mxu0 0.0
    %1732 = vmatpush1.msra.mxu0 0.0
    %1733 = vmatprep.subr.mxu0 0.0
    %1734 = vmatpush1.msra.mxu0 0.0
    %1735 = vmatprep.subr.mxu0 0.0
    %1736 = vmatpush1.msra.mxu0 0.0
    %1737 = vmatprep.subr.mxu0 0.0
    %1738 = vmatpush1.msra.mxu0 0.0
    %1739 = vmatprep.subr.mxu0 0.0
    %1740 = vmatpush1.msra.mxu0 0.0
    %1741 = vmatprep.subr.mxu0 0.0
    %1742 = vmatpush1.msra.mxu0 0.0
    %1743 = vmatprep.subr.mxu0 0.0
    %1744 = vmatpush1.msra.mxu0 0.0
    %1745 = vmatprep.subr.mxu0 0.0
    %1746 = vmatpush1.msra.mxu0 0.0
    %1747 = vmatprep.subr.mxu0 0.0
    %1748 = vmatpush1.msra.mxu0 0.0
    %1749 = vmatprep.mubr.f32.mxu0 0.0
    %1750 = vmatmul.mubr.f32.gmra.mrb[0].mxu0 %v1683
    %v1751 = vpop.f32.mrb[0].mxu0
    %v1752 = vadd.f32 0.0, %v1751
    %v1753 = vpop.f32.mrb[0].mxu0
    %1754 = vdwg.mxu0
    %v1755 = vadd.f32 %v1673, %v1752
    %1757 = vrot.lane.b32.xlu0 %v1668, 32
    %v1758 = vpop.permute.xlu0 %1757
    %v1759 = vsel %vm522, %v1758, 0
    %1761 = vmatprep.subr.mxu0 0.0
    %1762 = vmatpush1.msra.mxu0 %v766
    %1763 = vmatprep.subr.mxu0 0.0
    %1764 = vmatpush1.msra.mxu0 %v768
    %1765 = vmatprep.subr.mxu0 0.0
    %1766 = vmatpush1.msra.mxu0 %v770
    %1767 = vmatprep.subr.mxu0 0.0
    %1768 = vmatpush1.msra.mxu0 %v772
    %1769 = vmatprep.subr.mxu0 0.0
    %1770 = vmatpush1.msra.mxu0 0.0
    %1771 = vmatprep.subr.mxu0 0.0
    %1772 = vmatpush1.msra.mxu0 0.0
    %1773 = vmatprep.subr.mxu0 0.0
    %1774 = vmatpush1.msra.mxu0 0.0
    %1775 = vmatprep.subr.mxu0 0.0
    %1776 = vmatpush1.msra.mxu0 0.0
    %1777 = vmatprep.subr.mxu0 0.0
    %1778 = vmatpush1.msra.mxu0 0.0
    %1779 = vmatprep.subr.mxu0 0.0
    %1780 = vmatpush1.msra.mxu0 0.0
    %1781 = vmatprep.subr.mxu0 0.0
    %1782 = vmatpush1.msra.mxu0 0.0
    %1783 = vmatprep.subr.mxu0 0.0
    %1784 = vmatpush1.msra.mxu0 0.0
    %1785 = vmatprep.subr.mxu0 0.0
    %1786 = vmatpush1.msra.mxu0 0.0
    %1787 = vmatprep.subr.mxu0 0.0
    %1788 = vmatpush1.msra.mxu0 0.0
    %1789 = vmatprep.subr.mxu0 0.0
    %1790 = vmatpush1.msra.mxu0 0.0
    %1791 = vmatprep.subr.mxu0 0.0
    %1792 = vmatpush1.msra.mxu0 0.0
    %1793 = vmatprep.subr.mxu0 0.0
    %1794 = vmatpush1.msra.mxu0 0.0
    %1795 = vmatprep.subr.mxu0 0.0
    %1796 = vmatpush1.msra.mxu0 0.0
    %1797 = vmatprep.subr.mxu0 0.0
    %1798 = vmatpush1.msra.mxu0 0.0
    %1799 = vmatprep.subr.mxu0 0.0
    %1800 = vmatpush1.msra.mxu0 0.0
    %1801 = vmatprep.subr.mxu0 0.0
    %1802 = vmatpush1.msra.mxu0 0.0
    %1803 = vmatprep.subr.mxu0 0.0
    %1804 = vmatpush1.msra.mxu0 0.0
    %1805 = vmatprep.subr.mxu0 0.0
    %1806 = vmatpush1.msra.mxu0 0.0
    %1807 = vmatprep.subr.mxu0 0.0
    %1808 = vmatpush1.msra.mxu0 0.0
    %1809 = vmatprep.subr.mxu0 0.0
    %1810 = vmatpush1.msra.mxu0 0.0
    %1811 = vmatprep.subr.mxu0 0.0
    %1812 = vmatpush1.msra.mxu0 0.0
    %1813 = vmatprep.subr.mxu0 0.0
    %1814 = vmatpush1.msra.mxu0 0.0
    %1815 = vmatprep.subr.mxu0 0.0
    %1816 = vmatpush1.msra.mxu0 0.0
    %1817 = vmatprep.subr.mxu0 0.0
    %1818 = vmatpush1.msra.mxu0 0.0
    %1819 = vmatprep.subr.mxu0 0.0
    %1820 = vmatpush1.msra.mxu0 0.0
    %1821 = vmatprep.subr.mxu0 0.0
    %1822 = vmatpush1.msra.mxu0 0.0
    %1823 = vmatprep.subr.mxu0 0.0
    %1824 = vmatpush1.msra.mxu0 0.0
    %1825 = vmatprep.mubr.f32.mxu0 0.0
    %1826 = vmatmul.mubr.f32.gmra.mrb[0].mxu0 %v1759
    %v1827 = vpop.f32.mrb[0].mxu0
    %v1828 = vadd.f32 0.0, %v1827
    %v1829 = vpop.f32.mrb[0].mxu0
    %1830 = vdwg.mxu0
    %v1831 = vadd.f32 %v1679, %v1828
    %v1832 = vxor.u32 %v1755, 2147483648
    %v1833 = vmul.f32 %v1832, 1.442695
    %v1834 = vpow.pop %v1833
    %v1835 = vadd.f32 %v1834, 1.0
    %v1836 = vrcp.pop %v1835
    %v1837 = vmul.f32 1.0, %v1836
    %v1838 = vtanh.pop %v1755
    %v1839 = vmul.f32 %v1837, %v1662
    %1841 = vrot.lane.b32.xlu0 %v1838, 64
    %v1842 = vpop.permute.xlu0 %1841
    %v1844 = vmul.f32 %v1837, %v1842
    %1846 = vrot.lane.b32.xlu0 %v1844, 32
    %v1847 = vpop.permute.xlu0 %1846
    %v1849 = vadd.f32 %v1839, %v1847
    %v1850 = vtanh.pop %v1849
    %1852 = vrot.lane.b32.xlu0 %v1850, 64
    %v1853 = vpop.permute.xlu0 %1852
    %v1855 = vmul.f32 %v1837, %v1853
    %v1856 = vxor.u32 %v1831, 2147483648
    %v1857 = vmul.f32 %v1856, 1.442695
    %v1858 = vpow.pop %v1857
    %v1859 = vadd.f32 %v1858, 1.0
    %v1860 = vrcp.pop %v1859
    %v1861 = vmul.f32 1.0, %v1860
    %v1862 = vtanh.pop %v1831
    %v1863 = vmul.f32 %v1861, %v1669
    %1865 = vrot.lane.b32.xlu0 %v1862, 64
    %v1866 = vpop.permute.xlu0 %1865
    %v1868 = vmul.f32 %v1861, %v1866
    %1870 = vrot.lane.b32.xlu0 %v1868, 32
    %v1871 = vpop.permute.xlu0 %1870
    %v1873 = vadd.f32 %v1863, %v1871
    %v1874 = vtanh.pop %v1873
    %1876 = vrot.lane.b32.xlu0 %v1874, 64
    %v1877 = vpop.permute.xlu0 %1876
    %v1879 = vmul.f32 %v1861, %v1877
    %vm1880 = vcmp.gt.s32.totalorder %v764, 4
    %vm1881 = vcmp.gt.s32.totalorder %v764, 11
    %v1882 = vsel %vm1880, 1, 0
    %1883 = vset.pattern.permute.xlu0 0
    %1884 = vperm.xlu0 %1883, %v1882
    %v1885 = vpop.permute.xlu0 %1884
    %vm1886 = vcmp.eq.s32.totalorder %v1885, 1
    %v1887 = vsel %vm1886, %v1855, %v1661
    %v1888 = vsel %vm1886, %v1849, %v1662
    %v1889 = vsel %vm1881, 1, 0
    %1890 = vset.pattern.permute.xlu0 0
    %1891 = vperm.xlu0 %1890, %v1889
    %v1892 = vpop.permute.xlu0 %1891
    %vm1893 = vcmp.eq.s32.totalorder %v1892, 1
    %v1894 = vsel %vm1893, %v1879, %v1668
    %v1895 = vsel %vm1893, %v1873, %v1669
    %s1896 = smul.u32 5, 2
    %s1897 = smul.addr %s1896, 8
    %s1898 = scalar_lea.vmem [#allocation2], %s1897
    %v1899 = vld [vmem:[%s1898] sm:$0xff]
    %v1900 = vld [vmem:[%s1898 + $0x8] sm:$0xff]
    %s1901 = smul.u32 10, 2
    %s1902 = smul.addr %s1901, 8
    %s1903 = scalar_lea.vmem [#allocation2], %s1902
    %v1904 = vld [vmem:[%s1903] sm:$0xff]
    %v1905 = vld [vmem:[%s1903 + $0x8] sm:$0xff]
    %1907 = vrot.lane.b32.xlu0 %v1887, 32
    %v1908 = vpop.permute.xlu0 %1907
    %v1909 = vsel %vm522, %v1908, 0
    %1911 = vmatprep.subr.mxu0 0.0
    %1912 = vmatpush1.msra.mxu0 %v765
    %1913 = vmatprep.subr.mxu0 0.0
    %1914 = vmatpush1.msra.mxu0 %v767
    %1915 = vmatprep.subr.mxu0 0.0
    %1916 = vmatpush1.msra.mxu0 %v769
    %1917 = vmatprep.subr.mxu0 0.0
    %1918 = vmatpush1.msra.mxu0 %v771
    %1919 = vmatprep.subr.mxu0 0.0
    %1920 = vmatpush1.msra.mxu0 0.0
    %1921 = vmatprep.subr.mxu0 0.0
    %1922 = vmatpush1.msra.mxu0 0.0
    %1923 = vmatprep.subr.mxu0 0.0
    %1924 = vmatpush1.msra.mxu0 0.0
    %1925 = vmatprep.subr.mxu0 0.0
    %1926 = vmatpush1.msra.mxu0 0.0
    %1927 = vmatprep.subr.mxu0 0.0
    %1928 = vmatpush1.msra.mxu0 0.0
    %1929 = vmatprep.subr.mxu0 0.0
    %1930 = vmatpush1.msra.mxu0 0.0
    %1931 = vmatprep.subr.mxu0 0.0
    %1932 = vmatpush1.msra.mxu0 0.0
    %1933 = vmatprep.subr.mxu0 0.0
    %1934 = vmatpush1.msra.mxu0 0.0
    %1935 = vmatprep.subr.mxu0 0.0
    %1936 = vmatpush1.msra.mxu0 0.0
    %1937 = vmatprep.subr.mxu0 0.0
    %1938 = vmatpush1.msra.mxu0 0.0
    %1939 = vmatprep.subr.mxu0 0.0
    %1940 = vmatpush1.msra.mxu0 0.0
    %1941 = vmatprep.subr.mxu0 0.0
    %1942 = vmatpush1.msra.mxu0 0.0
    %1943 = vmatprep.subr.mxu0 0.0
    %1944 = vmatpush1.msra.mxu0 0.0
    %1945 = vmatprep.subr.mxu0 0.0
    %1946 = vmatpush1.msra.mxu0 0.0
    %1947 = vmatprep.subr.mxu0 0.0
    %1948 = vmatpush1.msra.mxu0 0.0
    %1949 = vmatprep.subr.mxu0 0.0
    %1950 = vmatpush1.msra.mxu0 0.0
    %1951 = vmatprep.subr.mxu0 0.0
    %1952 = vmatpush1.msra.mxu0 0.0
    %1953 = vmatprep.subr.mxu0 0.0
    %1954 = vmatpush1.msra.mxu0 0.0
    %1955 = vmatprep.subr.mxu0 0.0
    %1956 = vmatpush1.msra.mxu0 0.0
    %1957 = vmatprep.subr.mxu0 0.0
    %1958 = vmatpush1.msra.mxu0 0.0
    %1959 = vmatprep.subr.mxu0 0.0
    %1960 = vmatpush1.msra.mxu0 0.0
    %1961 = vmatprep.subr.mxu0 0.0
    %1962 = vmatpush1.msra.mxu0 0.0
    %1963 = vmatprep.subr.mxu0 0.0
    %1964 = vmatpush1.msra.mxu0 0.0
    %1965 = vmatprep.subr.mxu0 0.0
    %1966 = vmatpush1.msra.mxu0 0.0
    %1967 = vmatprep.subr.mxu0 0.0
    %1968 = vmatpush1.msra.mxu0 0.0
    %1969 = vmatprep.subr.mxu0 0.0
    %1970 = vmatpush1.msra.mxu0 0.0
    %1971 = vmatprep.subr.mxu0 0.0
    %1972 = vmatpush1.msra.mxu0 0.0
    %1973 = vmatprep.subr.mxu0 0.0
    %1974 = vmatpush1.msra.mxu0 0.0
    %1975 = vmatprep.mubr.f32.mxu0 0.0
    %1976 = vmatmul.mubr.f32.gmra.mrb[0].mxu0 %v1909
    %v1977 = vpop.f32.mrb[0].mxu0
    %v1978 = vadd.f32 0.0, %v1977
    %v1979 = vpop.f32.mrb[0].mxu0
    %1980 = vdwg.mxu0
    %v1981 = vadd.f32 %v1899, %v1978
    %1983 = vrot.lane.b32.xlu0 %v1894, 32
    %v1984 = vpop.permute.xlu0 %1983
    %v1985 = vsel %vm522, %v1984, 0
    %1987 = vmatprep.subr.mxu0 0.0
    %1988 = vmatpush1.msra.mxu0 %v766
    %1989 = vmatprep.subr.mxu0 0.0
    %1990 = vmatpush1.msra.mxu0 %v768
    %1991 = vmatprep.subr.mxu0 0.0
    %1992 = vmatpush1.msra.mxu0 %v770
    %1993 = vmatprep.subr.mxu0 0.0
    %1994 = vmatpush1.msra.mxu0 %v772
    %1995 = vmatprep.subr.mxu0 0.0
    %1996 = vmatpush1.msra.mxu0 0.0
    %1997 = vmatprep.subr.mxu0 0.0
    %1998 = vmatpush1.msra.mxu0 0.0
    %1999 = vmatprep.subr.mxu0 0.0
    %2000 = vmatpush1.msra.mxu0 0.0
    %2001 = vmatprep.subr.mxu0 0.0
    %2002 = vmatpush1.msra.mxu0 0.0
    %2003 = vmatprep.subr.mxu0 0.0
    %2004 = vmatpush1.msra.mxu0 0.0
    %2005 = vmatprep.subr.mxu0 0.0
    %2006 = vmatpush1.msra.mxu0 0.0
    %2007 = vmatprep.subr.mxu0 0.0
    %2008 = vmatpush1.msra.mxu0 0.0
    %2009 = vmatprep.subr.mxu0 0.0
    %2010 = vmatpush1.msra.mxu0 0.0
    %2011 = vmatprep.subr.mxu0 0.0
    %2012 = vmatpush1.msra.mxu0 0.0
    %2013 = vmatprep.subr.mxu0 0.0
    %2014 = vmatpush1.msra.mxu0 0.0
    %2015 = vmatprep.subr.mxu0 0.0
    %2016 = vmatpush1.msra.mxu0 0.0
    %2017 = vmatprep.subr.mxu0 0.0
    %2018 = vmatpush1.msra.mxu0 0.0
    %2019 = vmatprep.subr.mxu0 0.0
    %2020 = vmatpush1.msra.mxu0 0.0
    %2021 = vmatprep.subr.mxu0 0.0
    %2022 = vmatpush1.msra.mxu0 0.0
    %2023 = vmatprep.subr.mxu0 0.0
    %2024 = vmatpush1.msra.mxu0 0.0
    %2025 = vmatprep.subr.mxu0 0.0
    %2026 = vmatpush1.msra.mxu0 0.0
    %2027 = vmatprep.subr.mxu0 0.0
    %2028 = vmatpush1.msra.mxu0 0.0
    %2029 = vmatprep.subr.mxu0 0.0
    %2030 = vmatpush1.msra.mxu0 0.0
    %2031 = vmatprep.subr.mxu0 0.0
    %2032 = vmatpush1.msra.mxu0 0.0
    %2033 = vmatprep.subr.mxu0 0.0
    %2034 = vmatpush1.msra.mxu0 0.0
    %2035 = vmatprep.subr.mxu0 0.0
    %2036 = vmatpush1.msra.mxu0 0.0
    %2037 = vmatprep.subr.mxu0 0.0
    %2038 = vmatpush1.msra.mxu0 0.0
    %2039 = vmatprep.subr.mxu0 0.0
    %2040 = vmatpush1.msra.mxu0 0.0
    %2041 = vmatprep.subr.mxu0 0.0
    %2042 = vmatpush1.msra.mxu0 0.0
    %2043 = vmatprep.subr.mxu0 0.0
    %2044 = vmatpush1.msra.mxu0 0.0
    %2045 = vmatprep.subr.mxu0 0.0
    %2046 = vmatpush1.msra.mxu0 0.0
    %2047 = vmatprep.subr.mxu0 0.0
    %2048 = vmatpush1.msra.mxu0 0.0
    %2049 = vmatprep.subr.mxu0 0.0
    %2050 = vmatpush1.msra.mxu0 0.0
    %2051 = vmatprep.mubr.f32.mxu0 0.0
    %2052 = vmatmul.mubr.f32.gmra.mrb[0].mxu0 %v1985
    %v2053 = vpop.f32.mrb[0].mxu0
    %v2054 = vadd.f32 0.0, %v2053
    %v2055 = vpop.f32.mrb[0].mxu0
    %2056 = vdwg.mxu0
    %v2057 = vadd.f32 %v1905, %v2054
    %v2058 = vxor.u32 %v1981, 2147483648
    %v2059 = vmul.f32 %v2058, 1.442695
    %v2060 = vpow.pop %v2059
    %v2061 = vadd.f32 %v2060, 1.0
    %v2062 = vrcp.pop %v2061
    %v2063 = vmul.f32 1.0, %v2062
    %v2064 = vtanh.pop %v1981
    %v2065 = vmul.f32 %v2063, %v1888
    %2067 = vrot.lane.b32.xlu0 %v2064, 64
    %v2068 = vpop.permute.xlu0 %2067
    %v2070 = vmul.f32 %v2063, %v2068
    %2072 = vrot.lane.b32.xlu0 %v2070, 32
    %v2073 = vpop.permute.xlu0 %2072
    %v2075 = vadd.f32 %v2065, %v2073
    %v2076 = vtanh.pop %v2075
    %2078 = vrot.lane.b32.xlu0 %v2076, 64
    %v2079 = vpop.permute.xlu0 %2078
    %v2081 = vmul.f32 %v2063, %v2079
    %v2082 = vxor.u32 %v2057, 2147483648
    %v2083 = vmul.f32 %v2082, 1.442695
    %v2084 = vpow.pop %v2083
    %v2085 = vadd.f32 %v2084, 1.0
    %v2086 = vrcp.pop %v2085
    %v2087 = vmul.f32 1.0, %v2086
    %v2088 = vtanh.pop %v2057
    %v2089 = vmul.f32 %v2087, %v1895
    %2091 = vrot.lane.b32.xlu0 %v2088, 64
    %v2092 = vpop.permute.xlu0 %2091
    %v2094 = vmul.f32 %v2087, %v2092
    %2096 = vrot.lane.b32.xlu0 %v2094, 32
    %v2097 = vpop.permute.xlu0 %2096
    %v2099 = vadd.f32 %v2089, %v2097
    %v2100 = vtanh.pop %v2099
    %2102 = vrot.lane.b32.xlu0 %v2100, 64
    %v2103 = vpop.permute.xlu0 %2102
    %v2105 = vmul.f32 %v2087, %v2103
    %vm2106 = vcmp.gt.s32.totalorder %v764, 5
    %vm2107 = vcmp.gt.s32.totalorder %v764, 10
    %v2108 = vsel %vm2106, 1, 0
    %2109 = vset.pattern.permute.xlu0 0
    %2110 = vperm.xlu0 %2109, %v2108
    %v2111 = vpop.permute.xlu0 %2110
    %vm2112 = vcmp.eq.s32.totalorder %v2111, 1
    %v2113 = vsel %vm2112, %v2081, %v1887
    %v2114 = vsel %vm2112, %v2075, %v1888
    %v2115 = vsel %vm2107, 1, 0
    %2116 = vset.pattern.permute.xlu0 0
    %2117 = vperm.xlu0 %2116, %v2115
    %v2118 = vpop.permute.xlu0 %2117
    %vm2119 = vcmp.eq.s32.totalorder %v2118, 1
    %v2120 = vsel %vm2119, %v2105, %v1894
    %v2121 = vsel %vm2119, %v2099, %v1895
    %s2122 = smul.u32 6, 2
    %s2123 = smul.addr %s2122, 8
    %s2124 = scalar_lea.vmem [#allocation2], %s2123
    %v2125 = vld [vmem:[%s2124] sm:$0xff]
    %v2126 = vld [vmem:[%s2124 + $0x8] sm:$0xff]
    %s2127 = smul.u32 9, 2
    %s2128 = smul.addr %s2127, 8
    %s2129 = scalar_lea.vmem [#allocation2], %s2128
    %v2130 = vld [vmem:[%s2129] sm:$0xff]
    %v2131 = vld [vmem:[%s2129 + $0x8] sm:$0xff]
    %2133 = vrot.lane.b32.xlu0 %v2113, 32
    %v2134 = vpop.permute.xlu0 %2133
    %v2135 = vsel %vm522, %v2134, 0
    %2137 = vmatprep.subr.mxu0 0.0
    %2138 = vmatpush1.msra.mxu0 %v765
    %2139 = vmatprep.subr.mxu0 0.0
    %2140 = vmatpush1.msra.mxu0 %v767
    %2141 = vmatprep.subr.mxu0 0.0
    %2142 = vmatpush1.msra.mxu0 %v769
    %2143 = vmatprep.subr.mxu0 0.0
    %2144 = vmatpush1.msra.mxu0 %v771
    %2145 = vmatprep.subr.mxu0 0.0
    %2146 = vmatpush1.msra.mxu0 0.0
    %2147 = vmatprep.subr.mxu0 0.0
    %2148 = vmatpush1.msra.mxu0 0.0
    %2149 = vmatprep.subr.mxu0 0.0
    %2150 = vmatpush1.msra.mxu0 0.0
    %2151 = vmatprep.subr.mxu0 0.0
    %2152 = vmatpush1.msra.mxu0 0.0
    %2153 = vmatprep.subr.mxu0 0.0
    %2154 = vmatpush1.msra.mxu0 0.0
    %2155 = vmatprep.subr.mxu0 0.0
    %2156 = vmatpush1.msra.mxu0 0.0
    %2157 = vmatprep.subr.mxu0 0.0
    %2158 = vmatpush1.msra.mxu0 0.0
    %2159 = vmatprep.subr.mxu0 0.0
    %2160 = vmatpush1.msra.mxu0 0.0
    %2161 = vmatprep.subr.mxu0 0.0
    %2162 = vmatpush1.msra.mxu0 0.0
    %2163 = vmatprep.subr.mxu0 0.0
    %2164 = vmatpush1.msra.mxu0 0.0
    %2165 = vmatprep.subr.mxu0 0.0
    %2166 = vmatpush1.msra.mxu0 0.0
    %2167 = vmatprep.subr.mxu0 0.0
    %2168 = vmatpush1.msra.mxu0 0.0
    %2169 = vmatprep.subr.mxu0 0.0
    %2170 = vmatpush1.msra.mxu0 0.0
    %2171 = vmatprep.subr.mxu0 0.0
    %2172 = vmatpush1.msra.mxu0 0.0
    %2173 = vmatprep.subr.mxu0 0.0
    %2174 = vmatpush1.msra.mxu0 0.0
    %2175 = vmatprep.subr.mxu0 0.0
    %2176 = vmatpush1.msra.mxu0 0.0
    %2177 = vmatprep.subr.mxu0 0.0
    %2178 = vmatpush1.msra.mxu0 0.0
    %2179 = vmatprep.subr.mxu0 0.0
    %2180 = vmatpush1.msra.mxu0 0.0
    %2181 = vmatprep.subr.mxu0 0.0
    %2182 = vmatpush1.msra.mxu0 0.0
    %2183 = vmatprep.subr.mxu0 0.0
    %2184 = vmatpush1.msra.mxu0 0.0
    %2185 = vmatprep.subr.mxu0 0.0
    %2186 = vmatpush1.msra.mxu0 0.0
    %2187 = vmatprep.subr.mxu0 0.0
    %2188 = vmatpush1.msra.mxu0 0.0
    %2189 = vmatprep.subr.mxu0 0.0
    %2190 = vmatpush1.msra.mxu0 0.0
    %2191 = vmatprep.subr.mxu0 0.0
    %2192 = vmatpush1.msra.mxu0 0.0
    %2193 = vmatprep.subr.mxu0 0.0
    %2194 = vmatpush1.msra.mxu0 0.0
    %2195 = vmatprep.subr.mxu0 0.0
    %2196 = vmatpush1.msra.mxu0 0.0
    %2197 = vmatprep.subr.mxu0 0.0
    %2198 = vmatpush1.msra.mxu0 0.0
    %2199 = vmatprep.subr.mxu0 0.0
    %2200 = vmatpush1.msra.mxu0 0.0
    %2201 = vmatprep.mubr.f32.mxu0 0.0
    %2202 = vmatmul.mubr.f32.gmra.mrb[0].mxu0 %v2135
    %v2203 = vpop.f32.mrb[0].mxu0
    %v2204 = vadd.f32 0.0, %v2203
    %v2205 = vpop.f32.mrb[0].mxu0
    %2206 = vdwg.mxu0
    %v2207 = vadd.f32 %v2125, %v2204
    %2209 = vrot.lane.b32.xlu0 %v2120, 32
    %v2210 = vpop.permute.xlu0 %2209
    %v2211 = vsel %vm522, %v2210, 0
    %2213 = vmatprep.subr.mxu0 0.0
    %2214 = vmatpush1.msra.mxu0 %v766
    %2215 = vmatprep.subr.mxu0 0.0
    %2216 = vmatpush1.msra.mxu0 %v768
    %2217 = vmatprep.subr.mxu0 0.0
    %2218 = vmatpush1.msra.mxu0 %v770
    %2219 = vmatprep.subr.mxu0 0.0
    %2220 = vmatpush1.msra.mxu0 %v772
    %2221 = vmatprep.subr.mxu0 0.0
    %2222 = vmatpush1.msra.mxu0 0.0
    %2223 = vmatprep.subr.mxu0 0.0
    %2224 = vmatpush1.msra.mxu0 0.0
    %2225 = vmatprep.subr.mxu0 0.0
    %2226 = vmatpush1.msra.mxu0 0.0
    %2227 = vmatprep.subr.mxu0 0.0
    %2228 = vmatpush1.msra.mxu0 0.0
    %2229 = vmatprep.subr.mxu0 0.0
    %2230 = vmatpush1.msra.mxu0 0.0
    %2231 = vmatprep.subr.mxu0 0.0
    %2232 = vmatpush1.msra.mxu0 0.0
    %2233 = vmatprep.subr.mxu0 0.0
    %2234 = vmatpush1.msra.mxu0 0.0
    %2235 = vmatprep.subr.mxu0 0.0
    %2236 = vmatpush1.msra.mxu0 0.0
    %2237 = vmatprep.subr.mxu0 0.0
    %2238 = vmatpush1.msra.mxu0 0.0
    %2239 = vmatprep.subr.mxu0 0.0
    %2240 = vmatpush1.msra.mxu0 0.0
    %2241 = vmatprep.subr.mxu0 0.0
    %2242 = vmatpush1.msra.mxu0 0.0
    %2243 = vmatprep.subr.mxu0 0.0
    %2244 = vmatpush1.msra.mxu0 0.0
    %2245 = vmatprep.subr.mxu0 0.0
    %2246 = vmatpush1.msra.mxu0 0.0
    %2247 = vmatprep.subr.mxu0 0.0
    %2248 = vmatpush1.msra.mxu0 0.0
    %2249 = vmatprep.subr.mxu0 0.0
    %2250 = vmatpush1.msra.mxu0 0.0
    %2251 = vmatprep.subr.mxu0 0.0
    %2252 = vmatpush1.msra.mxu0 0.0
    %2253 = vmatprep.subr.mxu0 0.0
    %2254 = vmatpush1.msra.mxu0 0.0
    %2255 = vmatprep.subr.mxu0 0.0
    %2256 = vmatpush1.msra.mxu0 0.0
    %2257 = vmatprep.subr.mxu0 0.0
    %2258 = vmatpush1.msra.mxu0 0.0
    %2259 = vmatprep.subr.mxu0 0.0
    %2260 = vmatpush1.msra.mxu0 0.0
    %2261 = vmatprep.subr.mxu0 0.0
    %2262 = vmatpush1.msra.mxu0 0.0
    %2263 = vmatprep.subr.mxu0 0.0
    %2264 = vmatpush1.msra.mxu0 0.0
    %2265 = vmatprep.subr.mxu0 0.0
    %2266 = vmatpush1.msra.mxu0 0.0
    %2267 = vmatprep.subr.mxu0 0.0
    %2268 = vmatpush1.msra.mxu0 0.0
    %2269 = vmatprep.subr.mxu0 0.0
    %2270 = vmatpush1.msra.mxu0 0.0
    %2271 = vmatprep.subr.mxu0 0.0
    %2272 = vmatpush1.msra.mxu0 0.0
    %2273 = vmatprep.subr.mxu0 0.0
    %2274 = vmatpush1.msra.mxu0 0.0
    %2275 = vmatprep.subr.mxu0 0.0
    %2276 = vmatpush1.msra.mxu0 0.0
    %2277 = vmatprep.mubr.f32.mxu0 0.0
    %2278 = vmatmul.mubr.f32.gmra.mrb[0].mxu0 %v2211
    %v2279 = vpop.f32.mrb[0].mxu0
    %v2280 = vadd.f32 0.0, %v2279
    %v2281 = vpop.f32.mrb[0].mxu0
    %2282 = vdwg.mxu0
    %v2283 = vadd.f32 %v2131, %v2280
    %v2284 = vxor.u32 %v2207, 2147483648
    %v2285 = vmul.f32 %v2284, 1.442695
    %v2286 = vpow.pop %v2285
    %v2287 = vadd.f32 %v2286, 1.0
    %v2288 = vrcp.pop %v2287
    %v2289 = vmul.f32 1.0, %v2288
    %v2290 = vtanh.pop %v2207
    %v2291 = vmul.f32 %v2289, %v2114
    %2293 = vrot.lane.b32.xlu0 %v2290, 64
    %v2294 = vpop.permute.xlu0 %2293
    %v2296 = vmul.f32 %v2289, %v2294
    %2298 = vrot.lane.b32.xlu0 %v2296, 32
    %v2299 = vpop.permute.xlu0 %2298
    %v2301 = vadd.f32 %v2291, %v2299
    %v2302 = vtanh.pop %v2301
    %2304 = vrot.lane.b32.xlu0 %v2302, 64
    %v2305 = vpop.permute.xlu0 %2304
    %v2307 = vmul.f32 %v2289, %v2305
    %v2308 = vxor.u32 %v2283, 2147483648
    %v2309 = vmul.f32 %v2308, 1.442695
    %v2310 = vpow.pop %v2309
    %v2311 = vadd.f32 %v2310, 1.0
    %v2312 = vrcp.pop %v2311
    %v2313 = vmul.f32 1.0, %v2312
    %v2314 = vtanh.pop %v2283
    %v2315 = vmul.f32 %v2313, %v2121
    %2317 = vrot.lane.b32.xlu0 %v2314, 64
    %v2318 = vpop.permute.xlu0 %2317
    %v2320 = vmul.f32 %v2313, %v2318
    %2322 = vrot.lane.b32.xlu0 %v2320, 32
    %v2323 = vpop.permute.xlu0 %2322
    %v2325 = vadd.f32 %v2315, %v2323
    %v2326 = vtanh.pop %v2325
    %2328 = vrot.lane.b32.xlu0 %v2326, 64
    %v2329 = vpop.permute.xlu0 %2328
    %v2331 = vmul.f32 %v2313, %v2329
    %vm2332 = vcmp.gt.s32.totalorder %v764, 6
    %vm2333 = vcmp.gt.s32.totalorder %v764, 9
    %v2334 = vsel %vm2332, 1, 0
    %2335 = vset.pattern.permute.xlu0 0
    %2336 = vperm.xlu0 %2335, %v2334
    %v2337 = vpop.permute.xlu0 %2336
    %vm2338 = vcmp.eq.s32.totalorder %v2337, 1
    %v2339 = vsel %vm2338, %v2307, %v2113
    %v2340 = vsel %vm2338, %v2301, %v2114
    %v2341 = vsel %vm2333, 1, 0
    %2342 = vset.pattern.permute.xlu0 0
    %2343 = vperm.xlu0 %2342, %v2341
    %v2344 = vpop.permute.xlu0 %2343
    %vm2345 = vcmp.eq.s32.totalorder %v2344, 1
    %v2346 = vsel %vm2345, %v2331, %v2120
    %v2347 = vsel %vm2345, %v2325, %v2121
    %s2348 = smul.u32 7, 2
    %s2349 = smul.addr %s2348, 8
    %s2350 = scalar_lea.vmem [#allocation2], %s2349
    %v2351 = vld [vmem:[%s2350] sm:$0xff]
    %v2352 = vld [vmem:[%s2350 + $0x8] sm:$0xff]
    %s2353 = smul.u32 8, 2
    %s2354 = smul.addr %s2353, 8
    %s2355 = scalar_lea.vmem [#allocation2], %s2354
    %v2356 = vld [vmem:[%s2355] sm:$0xff]
    %v2357 = vld [vmem:[%s2355 + $0x8] sm:$0xff]
    %2359 = vrot.lane.b32.xlu0 %v2339, 32
    %v2360 = vpop.permute.xlu0 %2359
    %v2361 = vsel %vm522, %v2360, 0
    %2363 = vmatprep.subr.mxu0 0.0
    %2364 = vmatpush1.msra.mxu0 %v765
    %2365 = vmatprep.subr.mxu0 0.0
    %2366 = vmatpush1.msra.mxu0 %v767
    %2367 = vmatprep.subr.mxu0 0.0
    %2368 = vmatpush1.msra.mxu0 %v769
    %2369 = vmatprep.subr.mxu0 0.0
    %2370 = vmatpush1.msra.mxu0 %v771
    %2371 = vmatprep.subr.mxu0 0.0
    %2372 = vmatpush1.msra.mxu0 0.0
    %2373 = vmatprep.subr.mxu0 0.0
    %2374 = vmatpush1.msra.mxu0 0.0
    %2375 = vmatprep.subr.mxu0 0.0
    %2376 = vmatpush1.msra.mxu0 0.0
    %2377 = vmatprep.subr.mxu0 0.0
    %2378 = vmatpush1.msra.mxu0 0.0
    %2379 = vmatprep.subr.mxu0 0.0
    %2380 = vmatpush1.msra.mxu0 0.0
    %2381 = vmatprep.subr.mxu0 0.0
    %2382 = vmatpush1.msra.mxu0 0.0
    %2383 = vmatprep.subr.mxu0 0.0
    %2384 = vmatpush1.msra.mxu0 0.0
    %2385 = vmatprep.subr.mxu0 0.0
    %2386 = vmatpush1.msra.mxu0 0.0
    %2387 = vmatprep.subr.mxu0 0.0
    %2388 = vmatpush1.msra.mxu0 0.0
    %2389 = vmatprep.subr.mxu0 0.0
    %2390 = vmatpush1.msra.mxu0 0.0
    %2391 = vmatprep.subr.mxu0 0.0
    %2392 = vmatpush1.msra.mxu0 0.0
    %2393 = vmatprep.subr.mxu0 0.0
    %2394 = vmatpush1.msra.mxu0 0.0
    %2395 = vmatprep.subr.mxu0 0.0
    %2396 = vmatpush1.msra.mxu0 0.0
    %2397 = vmatprep.subr.mxu0 0.0
    %2398 = vmatpush1.msra.mxu0 0.0
    %2399 = vmatprep.subr.mxu0 0.0
    %2400 = vmatpush1.msra.mxu0 0.0
    %2401 = vmatprep.subr.mxu0 0.0
    %2402 = vmatpush1.msra.mxu0 0.0
    %2403 = vmatprep.subr.mxu0 0.0
    %2404 = vmatpush1.msra.mxu0 0.0
    %2405 = vmatprep.subr.mxu0 0.0
    %2406 = vmatpush1.msra.mxu0 0.0
    %2407 = vmatprep.subr.mxu0 0.0
    %2408 = vmatpush1.msra.mxu0 0.0
    %2409 = vmatprep.subr.mxu0 0.0
    %2410 = vmatpush1.msra.mxu0 0.0
    %2411 = vmatprep.subr.mxu0 0.0
    %2412 = vmatpush1.msra.mxu0 0.0
    %2413 = vmatprep.subr.mxu0 0.0
    %2414 = vmatpush1.msra.mxu0 0.0
    %2415 = vmatprep.subr.mxu0 0.0
    %2416 = vmatpush1.msra.mxu0 0.0
    %2417 = vmatprep.subr.mxu0 0.0
    %2418 = vmatpush1.msra.mxu0 0.0
    %2419 = vmatprep.subr.mxu0 0.0
    %2420 = vmatpush1.msra.mxu0 0.0
    %2421 = vmatprep.subr.mxu0 0.0
    %2422 = vmatpush1.msra.mxu0 0.0
    %2423 = vmatprep.subr.mxu0 0.0
    %2424 = vmatpush1.msra.mxu0 0.0
    %2425 = vmatprep.subr.mxu0 0.0
    %2426 = vmatpush1.msra.mxu0 0.0
    %2427 = vmatprep.mubr.f32.mxu0 0.0
    %2428 = vmatmul.mubr.f32.gmra.mrb[0].mxu0 %v2361
    %v2429 = vpop.f32.mrb[0].mxu0
    %v2430 = vadd.f32 0.0, %v2429
    %v2431 = vpop.f32.mrb[0].mxu0
    %2432 = vdwg.mxu0
    %v2433 = vadd.f32 %v2351, %v2430
    %2435 = vrot.lane.b32.xlu0 %v2346, 32
    %v2436 = vpop.permute.xlu0 %2435
    %v2437 = vsel %vm522, %v2436, 0
    %2439 = vmatprep.subr.mxu0 0.0
    %2440 = vmatpush1.msra.mxu0 %v766
    %2441 = vmatprep.subr.mxu0 0.0
    %2442 = vmatpush1.msra.mxu0 %v768
    %2443 = vmatprep.subr.mxu0 0.0
    %2444 = vmatpush1.msra.mxu0 %v770
    %2445 = vmatprep.subr.mxu0 0.0
    %2446 = vmatpush1.msra.mxu0 %v772
    %2447 = vmatprep.subr.mxu0 0.0
    %2448 = vmatpush1.msra.mxu0 0.0
    %2449 = vmatprep.subr.mxu0 0.0
    %2450 = vmatpush1.msra.mxu0 0.0
    %2451 = vmatprep.subr.mxu0 0.0
    %2452 = vmatpush1.msra.mxu0 0.0
    %2453 = vmatprep.subr.mxu0 0.0
    %2454 = vmatpush1.msra.mxu0 0.0
    %2455 = vmatprep.subr.mxu0 0.0
    %2456 = vmatpush1.msra.mxu0 0.0
    %2457 = vmatprep.subr.mxu0 0.0
    %2458 = vmatpush1.msra.mxu0 0.0
    %2459 = vmatprep.subr.mxu0 0.0
    %2460 = vmatpush1.msra.mxu0 0.0
    %2461 = vmatprep.subr.mxu0 0.0
    %2462 = vmatpush1.msra.mxu0 0.0
    %2463 = vmatprep.subr.mxu0 0.0
    %2464 = vmatpush1.msra.mxu0 0.0
    %2465 = vmatprep.subr.mxu0 0.0
    %2466 = vmatpush1.msra.mxu0 0.0
    %2467 = vmatprep.subr.mxu0 0.0
    %2468 = vmatpush1.msra.mxu0 0.0
    %2469 = vmatprep.subr.mxu0 0.0
    %2470 = vmatpush1.msra.mxu0 0.0
    %2471 = vmatprep.subr.mxu0 0.0
    %2472 = vmatpush1.msra.mxu0 0.0
    %2473 = vmatprep.subr.mxu0 0.0
    %2474 = vmatpush1.msra.mxu0 0.0
    %2475 = vmatprep.subr.mxu0 0.0
    %2476 = vmatpush1.msra.mxu0 0.0
    %2477 = vmatprep.subr.mxu0 0.0
    %2478 = vmatpush1.msra.mxu0 0.0
    %2479 = vmatprep.subr.mxu0 0.0
    %2480 = vmatpush1.msra.mxu0 0.0
    %2481 = vmatprep.subr.mxu0 0.0
    %2482 = vmatpush1.msra.mxu0 0.0
    %2483 = vmatprep.subr.mxu0 0.0
    %2484 = vmatpush1.msra.mxu0 0.0
    %2485 = vmatprep.subr.mxu0 0.0
    %2486 = vmatpush1.msra.mxu0 0.0
    %2487 = vmatprep.subr.mxu0 0.0
    %2488 = vmatpush1.msra.mxu0 0.0
    %2489 = vmatprep.subr.mxu0 0.0
    %2490 = vmatpush1.msra.mxu0 0.0
    %2491 = vmatprep.subr.mxu0 0.0
    %2492 = vmatpush1.msra.mxu0 0.0
    %2493 = vmatprep.subr.mxu0 0.0
    %2494 = vmatpush1.msra.mxu0 0.0
    %2495 = vmatprep.subr.mxu0 0.0
    %2496 = vmatpush1.msra.mxu0 0.0
    %2497 = vmatprep.subr.mxu0 0.0
    %2498 = vmatpush1.msra.mxu0 0.0
    %2499 = vmatprep.subr.mxu0 0.0
    %2500 = vmatpush1.msra.mxu0 0.0
    %2501 = vmatprep.subr.mxu0 0.0
    %2502 = vmatpush1.msra.mxu0 0.0
    %2503 = vmatprep.mubr.f32.mxu0 0.0
    %2504 = vmatmul.mubr.f32.gmra.mrb[0].mxu0 %v2437
    %v2505 = vpop.f32.mrb[0].mxu0
    %v2506 = vadd.f32 0.0, %v2505
    %v2507 = vpop.f32.mrb[0].mxu0
    %2508 = vdwg.mxu0
    %v2509 = vadd.f32 %v2357, %v2506
    %v2510 = vxor.u32 %v2433, 2147483648
    %v2511 = vmul.f32 %v2510, 1.442695
    %v2512 = vpow.pop %v2511
    %v2513 = vadd.f32 %v2512, 1.0
    %v2514 = vrcp.pop %v2513
    %v2515 = vmul.f32 1.0, %v2514
    %v2516 = vtanh.pop %v2433
    %v2517 = vmul.f32 %v2515, %v2340
    %2519 = vrot.lane.b32.xlu0 %v2516, 64
    %v2520 = vpop.permute.xlu0 %2519
    %v2522 = vmul.f32 %v2515, %v2520
    %2524 = vrot.lane.b32.xlu0 %v2522, 32
    %v2525 = vpop.permute.xlu0 %2524
    %v2527 = vadd.f32 %v2517, %v2525
    %v2528 = vtanh.pop %v2527
    %2530 = vrot.lane.b32.xlu0 %v2528, 64
    %v2531 = vpop.permute.xlu0 %2530
    %v2533 = vmul.f32 %v2515, %v2531
    %v2534 = vxor.u32 %v2509, 2147483648
    %v2535 = vmul.f32 %v2534, 1.442695
    %v2536 = vpow.pop %v2535
    %v2537 = vadd.f32 %v2536, 1.0
    %v2538 = vrcp.pop %v2537
    %v2539 = vmul.f32 1.0, %v2538
    %v2540 = vtanh.pop %v2509
    %v2541 = vmul.f32 %v2539, %v2347
    %2543 = vrot.lane.b32.xlu0 %v2540, 64
    %v2544 = vpop.permute.xlu0 %2543
    %v2546 = vmul.f32 %v2539, %v2544
    %2548 = vrot.lane.b32.xlu0 %v2546, 32
    %v2549 = vpop.permute.xlu0 %2548
    %v2551 = vadd.f32 %v2541, %v2549
    %v2552 = vtanh.pop %v2551
    %2554 = vrot.lane.b32.xlu0 %v2552, 64
    %v2555 = vpop.permute.xlu0 %2554
    %v2557 = vmul.f32 %v2539, %v2555
    %vm2558 = vcmp.gt.s32.totalorder %v764, 7
    %vm2559 = vcmp.gt.s32.totalorder %v764, 8
    %v2560 = vsel %vm2558, 1, 0
    %2561 = vset.pattern.permute.xlu0 0
    %2562 = vperm.xlu0 %2561, %v2560
    %v2563 = vpop.permute.xlu0 %2562
    %vm2564 = vcmp.eq.s32.totalorder %v2563, 1
    %v2565 = vsel %vm2564, %v2533, %v2339
    %v2566 = vsel %vm2564, %v2527, %v2340
    %v2567 = vsel %vm2559, 1, 0
    %2568 = vset.pattern.permute.xlu0 0
    %2569 = vperm.xlu0 %2568, %v2567
    %v2570 = vpop.permute.xlu0 %2569
    %vm2571 = vcmp.eq.s32.totalorder %v2570, 1
    %v2572 = vsel %vm2571, %v2557, %v2346
    %v2573 = vsel %vm2571, %v2551, %v2347
    %2575 = vrot.lane.b32.xlu0 %v2565, 32
    %v2576 = vpop.permute.xlu0 %2575
    %v2577 = vsel %vm522, %v2576, 0
    %2579 = vmatprep.subr.mxu0 0.0
    %2580 = vmatpush1.msra.mxu0 %v765
    %2581 = vmatprep.subr.mxu0 0.0
    %2582 = vmatpush1.msra.mxu0 %v767
    %2583 = vmatprep.subr.mxu0 0.0
    %2584 = vmatpush1.msra.mxu0 %v769
    %2585 = vmatprep.subr.mxu0 0.0
    %2586 = vmatpush1.msra.mxu0 %v771
    %2587 = vmatprep.subr.mxu0 0.0
    %2588 = vmatpush1.msra.mxu0 0.0
    %2589 = vmatprep.subr.mxu0 0.0
    %2590 = vmatpush1.msra.mxu0 0.0
    %2591 = vmatprep.subr.mxu0 0.0
    %2592 = vmatpush1.msra.mxu0 0.0
    %2593 = vmatprep.subr.mxu0 0.0
    %2594 = vmatpush1.msra.mxu0 0.0
    %2595 = vmatprep.subr.mxu0 0.0
    %2596 = vmatpush1.msra.mxu0 0.0
    %2597 = vmatprep.subr.mxu0 0.0
    %2598 = vmatpush1.msra.mxu0 0.0
    %2599 = vmatprep.subr.mxu0 0.0
    %2600 = vmatpush1.msra.mxu0 0.0
    %2601 = vmatprep.subr.mxu0 0.0
    %2602 = vmatpush1.msra.mxu0 0.0
    %2603 = vmatprep.subr.mxu0 0.0
    %2604 = vmatpush1.msra.mxu0 0.0
    %2605 = vmatprep.subr.mxu0 0.0
    %2606 = vmatpush1.msra.mxu0 0.0
    %2607 = vmatprep.subr.mxu0 0.0
    %2608 = vmatpush1.msra.mxu0 0.0
    %2609 = vmatprep.subr.mxu0 0.0
    %2610 = vmatpush1.msra.mxu0 0.0
    %2611 = vmatprep.subr.mxu0 0.0
    %2612 = vmatpush1.msra.mxu0 0.0
    %2613 = vmatprep.subr.mxu0 0.0
    %2614 = vmatpush1.msra.mxu0 0.0
    %2615 = vmatprep.subr.mxu0 0.0
    %2616 = vmatpush1.msra.mxu0 0.0
    %2617 = vmatprep.subr.mxu0 0.0
    %2618 = vmatpush1.msra.mxu0 0.0
    %2619 = vmatprep.subr.mxu0 0.0
    %2620 = vmatpush1.msra.mxu0 0.0
    %2621 = vmatprep.subr.mxu0 0.0
    %2622 = vmatpush1.msra.mxu0 0.0
    %2623 = vmatprep.subr.mxu0 0.0
    %2624 = vmatpush1.msra.mxu0 0.0
    %2625 = vmatprep.subr.mxu0 0.0
    %2626 = vmatpush1.msra.mxu0 0.0
    %2627 = vmatprep.subr.mxu0 0.0
    %2628 = vmatpush1.msra.mxu0 0.0
    %2629 = vmatprep.subr.mxu0 0.0
    %2630 = vmatpush1.msra.mxu0 0.0
    %2631 = vmatprep.subr.mxu0 0.0
    %2632 = vmatpush1.msra.mxu0 0.0
    %2633 = vmatprep.subr.mxu0 0.0
    %2634 = vmatpush1.msra.mxu0 0.0
    %2635 = vmatprep.subr.mxu0 0.0
    %2636 = vmatpush1.msra.mxu0 0.0
    %2637 = vmatprep.subr.mxu0 0.0
    %2638 = vmatpush1.msra.mxu0 0.0
    %2639 = vmatprep.subr.mxu0 0.0
    %2640 = vmatpush1.msra.mxu0 0.0
    %2641 = vmatprep.subr.mxu0 0.0
    %2642 = vmatpush1.msra.mxu0 0.0
    %2643 = vmatprep.mubr.f32.mxu0 0.0
    %2644 = vmatmul.mubr.f32.gmra.mrb[0].mxu0 %v2577
    %v2645 = vpop.f32.mrb[0].mxu0
    %v2646 = vadd.f32 0.0, %v2645
    %v2647 = vpop.f32.mrb[0].mxu0
    %2648 = vdwg.mxu0
    %v2649 = vadd.f32 %v2356, %v2646
    %2651 = vrot.lane.b32.xlu0 %v2572, 32
    %v2652 = vpop.permute.xlu0 %2651
    %v2653 = vsel %vm522, %v2652, 0
    %2655 = vmatprep.subr.mxu0 0.0
    %2656 = vmatpush1.msra.mxu0 %v766
    %2657 = vmatprep.subr.mxu0 0.0
    %2658 = vmatpush1.msra.mxu0 %v768
    %2659 = vmatprep.subr.mxu0 0.0
    %2660 = vmatpush1.msra.mxu0 %v770
    %2661 = vmatprep.subr.mxu0 0.0
    %2662 = vmatpush1.msra.mxu0 %v772
    %2663 = vmatprep.subr.mxu0 0.0
    %2664 = vmatpush1.msra.mxu0 0.0
    %2665 = vmatprep.subr.mxu0 0.0
    %2666 = vmatpush1.msra.mxu0 0.0
    %2667 = vmatprep.subr.mxu0 0.0
    %2668 = vmatpush1.msra.mxu0 0.0
    %2669 = vmatprep.subr.mxu0 0.0
    %2670 = vmatpush1.msra.mxu0 0.0
    %2671 = vmatprep.subr.mxu0 0.0
    %2672 = vmatpush1.msra.mxu0 0.0
    %2673 = vmatprep.subr.mxu0 0.0
    %2674 = vmatpush1.msra.mxu0 0.0
    %2675 = vmatprep.subr.mxu0 0.0
    %2676 = vmatpush1.msra.mxu0 0.0
    %2677 = vmatprep.subr.mxu0 0.0
    %2678 = vmatpush1.msra.mxu0 0.0
    %2679 = vmatprep.subr.mxu0 0.0
    %2680 = vmatpush1.msra.mxu0 0.0
    %2681 = vmatprep.subr.mxu0 0.0
    %2682 = vmatpush1.msra.mxu0 0.0
    %2683 = vmatprep.subr.mxu0 0.0
    %2684 = vmatpush1.msra.mxu0 0.0
    %2685 = vmatprep.subr.mxu0 0.0
    %2686 = vmatpush1.msra.mxu0 0.0
    %2687 = vmatprep.subr.mxu0 0.0
    %2688 = vmatpush1.msra.mxu0 0.0
    %2689 = vmatprep.subr.mxu0 0.0
    %2690 = vmatpush1.msra.mxu0 0.0
    %2691 = vmatprep.subr.mxu0 0.0
    %2692 = vmatpush1.msra.mxu0 0.0
    %2693 = vmatprep.subr.mxu0 0.0
    %2694 = vmatpush1.msra.mxu0 0.0
    %2695 = vmatprep.subr.mxu0 0.0
    %2696 = vmatpush1.msra.mxu0 0.0
    %2697 = vmatprep.subr.mxu0 0.0
    %2698 = vmatpush1.msra.mxu0 0.0
    %2699 = vmatprep.subr.mxu0 0.0
    %2700 = vmatpush1.msra.mxu0 0.0
    %2701 = vmatprep.subr.mxu0 0.0
    %2702 = vmatpush1.msra.mxu0 0.0
    %2703 = vmatprep.subr.mxu0 0.0
    %2704 = vmatpush1.msra.mxu0 0.0
    %2705 = vmatprep.subr.mxu0 0.0
    %2706 = vmatpush1.msra.mxu0 0.0
    %2707 = vmatprep.subr.mxu0 0.0
    %2708 = vmatpush1.msra.mxu0 0.0
    %2709 = vmatprep.subr.mxu0 0.0
    %2710 = vmatpush1.msra.mxu0 0.0
    %2711 = vmatprep.subr.mxu0 0.0
    %2712 = vmatpush1.msra.mxu0 0.0
    %2713 = vmatprep.subr.mxu0 0.0
    %2714 = vmatpush1.msra.mxu0 0.0
    %2715 = vmatprep.subr.mxu0 0.0
    %2716 = vmatpush1.msra.mxu0 0.0
    %2717 = vmatprep.subr.mxu0 0.0
    %2718 = vmatpush1.msra.mxu0 0.0
    %2719 = vmatprep.mubr.f32.mxu0 0.0
    %2720 = vmatmul.mubr.f32.gmra.mrb[0].mxu0 %v2653
    %v2721 = vpop.f32.mrb[0].mxu0
    %v2722 = vadd.f32 0.0, %v2721
    %v2723 = vpop.f32.mrb[0].mxu0
    %2724 = vdwg.mxu0
    %v2725 = vadd.f32 %v2352, %v2722
    %v2726 = vxor.u32 %v2649, 2147483648
    %v2727 = vmul.f32 %v2726, 1.442695
    %v2728 = vpow.pop %v2727
    %v2729 = vadd.f32 %v2728, 1.0
    %v2730 = vrcp.pop %v2729
    %v2731 = vmul.f32 1.0, %v2730
    %v2732 = vtanh.pop %v2649
    %v2733 = vmul.f32 %v2731, %v2566
    %2735 = vrot.lane.b32.xlu0 %v2732, 64
    %v2736 = vpop.permute.xlu0 %2735
    %v2738 = vmul.f32 %v2731, %v2736
    %2740 = vrot.lane.b32.xlu0 %v2738, 32
    %v2741 = vpop.permute.xlu0 %2740
    %v2743 = vadd.f32 %v2733, %v2741
    %v2744 = vtanh.pop %v2743
    %2746 = vrot.lane.b32.xlu0 %v2744, 64
    %v2747 = vpop.permute.xlu0 %2746
    %v2749 = vmul.f32 %v2731, %v2747
    %v2750 = vxor.u32 %v2725, 2147483648
    %v2751 = vmul.f32 %v2750, 1.442695
    %v2752 = vpow.pop %v2751
    %v2753 = vadd.f32 %v2752, 1.0
    %v2754 = vrcp.pop %v2753
    %v2755 = vmul.f32 1.0, %v2754
    %v2756 = vtanh.pop %v2725
    %v2757 = vmul.f32 %v2755, %v2573
    %2759 = vrot.lane.b32.xlu0 %v2756, 64
    %v2760 = vpop.permute.xlu0 %2759
    %v2762 = vmul.f32 %v2755, %v2760
    %2764 = vrot.lane.b32.xlu0 %v2762, 32
    %v2765 = vpop.permute.xlu0 %2764
    %v2767 = vadd.f32 %v2757, %v2765
    %v2768 = vtanh.pop %v2767
    %2770 = vrot.lane.b32.xlu0 %v2768, 64
    %v2771 = vpop.permute.xlu0 %2770
    %v2773 = vmul.f32 %v2755, %v2771
    %v2774 = vsel %vm2571, %v2749, %v2565
    %v2775 = vsel %vm2571, %v2743, %v2566
    %v2776 = vsel %vm2564, %v2773, %v2572
    %v2777 = vsel %vm2564, %v2767, %v2573
    %2779 = vrot.lane.b32.xlu0 %v2774, 32
    %v2780 = vpop.permute.xlu0 %2779
    %v2781 = vsel %vm522, %v2780, 0
    %2783 = vmatprep.subr.mxu0 0.0
    %2784 = vmatpush1.msra.mxu0 %v765
    %2785 = vmatprep.subr.mxu0 0.0
    %2786 = vmatpush1.msra.mxu0 %v767
    %2787 = vmatprep.subr.mxu0 0.0
    %2788 = vmatpush1.msra.mxu0 %v769
    %2789 = vmatprep.subr.mxu0 0.0
    %2790 = vmatpush1.msra.mxu0 %v771
    %2791 = vmatprep.subr.mxu0 0.0
    %2792 = vmatpush1.msra.mxu0 0.0
    %2793 = vmatprep.subr.mxu0 0.0
    %2794 = vmatpush1.msra.mxu0 0.0
    %2795 = vmatprep.subr.mxu0 0.0
    %2796 = vmatpush1.msra.mxu0 0.0
    %2797 = vmatprep.subr.mxu0 0.0
    %2798 = vmatpush1.msra.mxu0 0.0
    %2799 = vmatprep.subr.mxu0 0.0
    %2800 = vmatpush1.msra.mxu0 0.0
    %2801 = vmatprep.subr.mxu0 0.0
    %2802 = vmatpush1.msra.mxu0 0.0
    %2803 = vmatprep.subr.mxu0 0.0
    %2804 = vmatpush1.msra.mxu0 0.0
    %2805 = vmatprep.subr.mxu0 0.0
    %2806 = vmatpush1.msra.mxu0 0.0
    %2807 = vmatprep.subr.mxu0 0.0
    %2808 = vmatpush1.msra.mxu0 0.0
    %2809 = vmatprep.subr.mxu0 0.0
    %2810 = vmatpush1.msra.mxu0 0.0
    %2811 = vmatprep.subr.mxu0 0.0
    %2812 = vmatpush1.msra.mxu0 0.0
    %2813 = vmatprep.subr.mxu0 0.0
    %2814 = vmatpush1.msra.mxu0 0.0
    %2815 = vmatprep.subr.mxu0 0.0
    %2816 = vmatpush1.msra.mxu0 0.0
    %2817 = vmatprep.subr.mxu0 0.0
    %2818 = vmatpush1.msra.mxu0 0.0
    %2819 = vmatprep.subr.mxu0 0.0
    %2820 = vmatpush1.msra.mxu0 0.0
    %2821 = vmatprep.subr.mxu0 0.0
    %2822 = vmatpush1.msra.mxu0 0.0
    %2823 = vmatprep.subr.mxu0 0.0
    %2824 = vmatpush1.msra.mxu0 0.0
    %2825 = vmatprep.subr.mxu0 0.0
    %2826 = vmatpush1.msra.mxu0 0.0
    %2827 = vmatprep.subr.mxu0 0.0
    %2828 = vmatpush1.msra.mxu0 0.0
    %2829 = vmatprep.subr.mxu0 0.0
    %2830 = vmatpush1.msra.mxu0 0.0
    %2831 = vmatprep.subr.mxu0 0.0
    %2832 = vmatpush1.msra.mxu0 0.0
    %2833 = vmatprep.subr.mxu0 0.0
    %2834 = vmatpush1.msra.mxu0 0.0
    %2835 = vmatprep.subr.mxu0 0.0
    %2836 = vmatpush1.msra.mxu0 0.0
    %2837 = vmatprep.subr.mxu0 0.0
    %2838 = vmatpush1.msra.mxu0 0.0
    %2839 = vmatprep.subr.mxu0 0.0
    %2840 = vmatpush1.msra.mxu0 0.0
    %2841 = vmatprep.subr.mxu0 0.0
    %2842 = vmatpush1.msra.mxu0 0.0
    %2843 = vmatprep.subr.mxu0 0.0
    %2844 = vmatpush1.msra.mxu0 0.0
    %2845 = vmatprep.subr.mxu0 0.0
    %2846 = vmatpush1.msra.mxu0 0.0
    %2847 = vmatprep.mubr.f32.mxu0 0.0
    %2848 = vmatmul.mubr.f32.gmra.mrb[0].mxu0 %v2781
    %v2849 = vpop.f32.mrb[0].mxu0
    %v2850 = vadd.f32 0.0, %v2849
    %v2851 = vpop.f32.mrb[0].mxu0
    %2852 = vdwg.mxu0
    %v2853 = vadd.f32 %v2130, %v2850
    %2855 = vrot.lane.b32.xlu0 %v2776, 32
    %v2856 = vpop.permute.xlu0 %2855
    %v2857 = vsel %vm522, %v2856, 0
    %2859 = vmatprep.subr.mxu0 0.0
    %2860 = vmatpush1.msra.mxu0 %v766
    %2861 = vmatprep.subr.mxu0 0.0
    %2862 = vmatpush1.msra.mxu0 %v768
    %2863 = vmatprep.subr.mxu0 0.0
    %2864 = vmatpush1.msra.mxu0 %v770
    %2865 = vmatprep.subr.mxu0 0.0
    %2866 = vmatpush1.msra.mxu0 %v772
    %2867 = vmatprep.subr.mxu0 0.0
    %2868 = vmatpush1.msra.mxu0 0.0
    %2869 = vmatprep.subr.mxu0 0.0
    %2870 = vmatpush1.msra.mxu0 0.0
    %2871 = vmatprep.subr.mxu0 0.0
    %2872 = vmatpush1.msra.mxu0 0.0
    %2873 = vmatprep.subr.mxu0 0.0
    %2874 = vmatpush1.msra.mxu0 0.0
    %2875 = vmatprep.subr.mxu0 0.0
    %2876 = vmatpush1.msra.mxu0 0.0
    %2877 = vmatprep.subr.mxu0 0.0
    %2878 = vmatpush1.msra.mxu0 0.0
    %2879 = vmatprep.subr.mxu0 0.0
    %2880 = vmatpush1.msra.mxu0 0.0
    %2881 = vmatprep.subr.mxu0 0.0
    %2882 = vmatpush1.msra.mxu0 0.0
    %2883 = vmatprep.subr.mxu0 0.0
    %2884 = vmatpush1.msra.mxu0 0.0
    %2885 = vmatprep.subr.mxu0 0.0
    %2886 = vmatpush1.msra.mxu0 0.0
    %2887 = vmatprep.subr.mxu0 0.0
    %2888 = vmatpush1.msra.mxu0 0.0
    %2889 = vmatprep.subr.mxu0 0.0
    %2890 = vmatpush1.msra.mxu0 0.0
    %2891 = vmatprep.subr.mxu0 0.0
    %2892 = vmatpush1.msra.mxu0 0.0
    %2893 = vmatprep.subr.mxu0 0.0
    %2894 = vmatpush1.msra.mxu0 0.0
    %2895 = vmatprep.subr.mxu0 0.0
    %2896 = vmatpush1.msra.mxu0 0.0
    %2897 = vmatprep.subr.mxu0 0.0
    %2898 = vmatpush1.msra.mxu0 0.0
    %2899 = vmatprep.subr.mxu0 0.0
    %2900 = vmatpush1.msra.mxu0 0.0
    %2901 = vmatprep.subr.mxu0 0.0
    %2902 = vmatpush1.msra.mxu0 0.0
    %2903 = vmatprep.subr.mxu0 0.0
    %2904 = vmatpush1.msra.mxu0 0.0
    %2905 = vmatprep.subr.mxu0 0.0
    %2906 = vmatpush1.msra.mxu0 0.0
    %2907 = vmatprep.subr.mxu0 0.0
    %2908 = vmatpush1.msra.mxu0 0.0
    %2909 = vmatprep.subr.mxu0 0.0
    %2910 = vmatpush1.msra.mxu0 0.0
    %2911 = vmatprep.subr.mxu0 0.0
    %2912 = vmatpush1.msra.mxu0 0.0
    %2913 = vmatprep.subr.mxu0 0.0
    %2914 = vmatpush1.msra.mxu0 0.0
    %2915 = vmatprep.subr.mxu0 0.0
    %2916 = vmatpush1.msra.mxu0 0.0
    %2917 = vmatprep.subr.mxu0 0.0
    %2918 = vmatpush1.msra.mxu0 0.0
    %2919 = vmatprep.subr.mxu0 0.0
    %2920 = vmatpush1.msra.mxu0 0.0
    %2921 = vmatprep.subr.mxu0 0.0
    %2922 = vmatpush1.msra.mxu0 0.0
    %2923 = vmatprep.mubr.f32.mxu0 0.0
    %2924 = vmatmul.mubr.f32.gmra.mrb[0].mxu0 %v2857
    %v2925 = vpop.f32.mrb[0].mxu0
    %v2926 = vadd.f32 0.0, %v2925
    %v2927 = vpop.f32.mrb[0].mxu0
    %2928 = vdwg.mxu0
    %v2929 = vadd.f32 %v2126, %v2926
    %v2930 = vxor.u32 %v2853, 2147483648
    %v2931 = vmul.f32 %v2930, 1.442695
    %v2932 = vpow.pop %v2931
    %v2933 = vadd.f32 %v2932, 1.0
    %v2934 = vrcp.pop %v2933
    %v2935 = vmul.f32 1.0, %v2934
    %v2936 = vtanh.pop %v2853
    %v2937 = vmul.f32 %v2935, %v2775
    %2939 = vrot.lane.b32.xlu0 %v2936, 64
    %v2940 = vpop.permute.xlu0 %2939
    %v2942 = vmul.f32 %v2935, %v2940
    %2944 = vrot.lane.b32.xlu0 %v2942, 32
    %v2945 = vpop.permute.xlu0 %2944
    %v2947 = vadd.f32 %v2937, %v2945
    %v2948 = vtanh.pop %v2947
    %2950 = vrot.lane.b32.xlu0 %v2948, 64
    %v2951 = vpop.permute.xlu0 %2950
    %v2953 = vmul.f32 %v2935, %v2951
    %v2954 = vxor.u32 %v2929, 2147483648
    %v2955 = vmul.f32 %v2954, 1.442695
    %v2956 = vpow.pop %v2955
    %v2957 = vadd.f32 %v2956, 1.0
    %v2958 = vrcp.pop %v2957
    %v2959 = vmul.f32 1.0, %v2958
    %v2960 = vtanh.pop %v2929
    %v2961 = vmul.f32 %v2959, %v2777
    %2963 = vrot.lane.b32.xlu0 %v2960, 64
    %v2964 = vpop.permute.xlu0 %2963
    %v2966 = vmul.f32 %v2959, %v2964
    %2968 = vrot.lane.b32.xlu0 %v2966, 32
    %v2969 = vpop.permute.xlu0 %2968
    %v2971 = vadd.f32 %v2961, %v2969
    %v2972 = vtanh.pop %v2971
    %2974 = vrot.lane.b32.xlu0 %v2972, 64
    %v2975 = vpop.permute.xlu0 %2974
    %v2977 = vmul.f32 %v2959, %v2975
    %v2978 = vsel %vm2345, %v2953, %v2774
    %v2979 = vsel %vm2345, %v2947, %v2775
    %v2980 = vsel %vm2338, %v2977, %v2776
    %v2981 = vsel %vm2338, %v2971, %v2777
    %2983 = vrot.lane.b32.xlu0 %v2978, 32
    %v2984 = vpop.permute.xlu0 %2983
    %v2985 = vsel %vm522, %v2984, 0
    %2987 = vmatprep.subr.mxu0 0.0
    %2988 = vmatpush1.msra.mxu0 %v765
    %2989 = vmatprep.subr.mxu0 0.0
    %2990 = vmatpush1.msra.mxu0 %v767
    %2991 = vmatprep.subr.mxu0 0.0
    %2992 = vmatpush1.msra.mxu0 %v769
    %2993 = vmatprep.subr.mxu0 0.0
    %2994 = vmatpush1.msra.mxu0 %v771
    %2995 = vmatprep.subr.mxu0 0.0
    %2996 = vmatpush1.msra.mxu0 0.0
    %2997 = vmatprep.subr.mxu0 0.0
    %2998 = vmatpush1.msra.mxu0 0.0
    %2999 = vmatprep.subr.mxu0 0.0
    %3000 = vmatpush1.msra.mxu0 0.0
    %3001 = vmatprep.subr.mxu0 0.0
    %3002 = vmatpush1.msra.mxu0 0.0
    %3003 = vmatprep.subr.mxu0 0.0
    %3004 = vmatpush1.msra.mxu0 0.0
    %3005 = vmatprep.subr.mxu0 0.0
    %3006 = vmatpush1.msra.mxu0 0.0
    %3007 = vmatprep.subr.mxu0 0.0
    %3008 = vmatpush1.msra.mxu0 0.0
    %3009 = vmatprep.subr.mxu0 0.0
    %3010 = vmatpush1.msra.mxu0 0.0
    %3011 = vmatprep.subr.mxu0 0.0
    %3012 = vmatpush1.msra.mxu0 0.0
    %3013 = vmatprep.subr.mxu0 0.0
    %3014 = vmatpush1.msra.mxu0 0.0
    %3015 = vmatprep.subr.mxu0 0.0
    %3016 = vmatpush1.msra.mxu0 0.0
    %3017 = vmatprep.subr.mxu0 0.0
    %3018 = vmatpush1.msra.mxu0 0.0
    %3019 = vmatprep.subr.mxu0 0.0
    %3020 = vmatpush1.msra.mxu0 0.0
    %3021 = vmatprep.subr.mxu0 0.0
    %3022 = vmatpush1.msra.mxu0 0.0
    %3023 = vmatprep.subr.mxu0 0.0
    %3024 = vmatpush1.msra.mxu0 0.0
    %3025 = vmatprep.subr.mxu0 0.0
    %3026 = vmatpush1.msra.mxu0 0.0
    %3027 = vmatprep.subr.mxu0 0.0
    %3028 = vmatpush1.msra.mxu0 0.0
    %3029 = vmatprep.subr.mxu0 0.0
    %3030 = vmatpush1.msra.mxu0 0.0
    %3031 = vmatprep.subr.mxu0 0.0
    %3032 = vmatpush1.msra.mxu0 0.0
    %3033 = vmatprep.subr.mxu0 0.0
    %3034 = vmatpush1.msra.mxu0 0.0
    %3035 = vmatprep.subr.mxu0 0.0
    %3036 = vmatpush1.msra.mxu0 0.0
    %3037 = vmatprep.subr.mxu0 0.0
    %3038 = vmatpush1.msra.mxu0 0.0
    %3039 = vmatprep.subr.mxu0 0.0
    %3040 = vmatpush1.msra.mxu0 0.0
    %3041 = vmatprep.subr.mxu0 0.0
    %3042 = vmatpush1.msra.mxu0 0.0
    %3043 = vmatprep.subr.mxu0 0.0
    %3044 = vmatpush1.msra.mxu0 0.0
    %3045 = vmatprep.subr.mxu0 0.0
    %3046 = vmatpush1.msra.mxu0 0.0
    %3047 = vmatprep.subr.mxu0 0.0
    %3048 = vmatpush1.msra.mxu0 0.0
    %3049 = vmatprep.subr.mxu0 0.0
    %3050 = vmatpush1.msra.mxu0 0.0
    %3051 = vmatprep.mubr.f32.mxu0 0.0
    %3052 = vmatmul.mubr.f32.gmra.mrb[0].mxu0 %v2985
    %v3053 = vpop.f32.mrb[0].mxu0
    %v3054 = vadd.f32 0.0, %v3053
    %v3055 = vpop.f32.mrb[0].mxu0
    %3056 = vdwg.mxu0
    %v3057 = vadd.f32 %v1904, %v3054
    %3059 = vrot.lane.b32.xlu0 %v2980, 32
    %v3060 = vpop.permute.xlu0 %3059
    %v3061 = vsel %vm522, %v3060, 0
    %3063 = vmatprep.subr.mxu0 0.0
    %3064 = vmatpush1.msra.mxu0 %v766
    %3065 = vmatprep.subr.mxu0 0.0
    %3066 = vmatpush1.msra.mxu0 %v768
    %3067 = vmatprep.subr.mxu0 0.0
    %3068 = vmatpush1.msra.mxu0 %v770
    %3069 = vmatprep.subr.mxu0 0.0
    %3070 = vmatpush1.msra.mxu0 %v772
    %3071 = vmatprep.subr.mxu0 0.0
    %3072 = vmatpush1.msra.mxu0 0.0
    %3073 = vmatprep.subr.mxu0 0.0
    %3074 = vmatpush1.msra.mxu0 0.0
    %3075 = vmatprep.subr.mxu0 0.0
    %3076 = vmatpush1.msra.mxu0 0.0
    %3077 = vmatprep.subr.mxu0 0.0
    %3078 = vmatpush1.msra.mxu0 0.0
    %3079 = vmatprep.subr.mxu0 0.0
    %3080 = vmatpush1.msra.mxu0 0.0
    %3081 = vmatprep.subr.mxu0 0.0
    %3082 = vmatpush1.msra.mxu0 0.0
    %3083 = vmatprep.subr.mxu0 0.0
    %3084 = vmatpush1.msra.mxu0 0.0
    %3085 = vmatprep.subr.mxu0 0.0
    %3086 = vmatpush1.msra.mxu0 0.0
    %3087 = vmatprep.subr.mxu0 0.0
    %3088 = vmatpush1.msra.mxu0 0.0
    %3089 = vmatprep.subr.mxu0 0.0
    %3090 = vmatpush1.msra.mxu0 0.0
    %3091 = vmatprep.subr.mxu0 0.0
    %3092 = vmatpush1.msra.mxu0 0.0
    %3093 = vmatprep.subr.mxu0 0.0
    %3094 = vmatpush1.msra.mxu0 0.0
    %3095 = vmatprep.subr.mxu0 0.0
    %3096 = vmatpush1.msra.mxu0 0.0
    %3097 = vmatprep.subr.mxu0 0.0
    %3098 = vmatpush1.msra.mxu0 0.0
    %3099 = vmatprep.subr.mxu0 0.0
    %3100 = vmatpush1.msra.mxu0 0.0
    %3101 = vmatprep.subr.mxu0 0.0
    %3102 = vmatpush1.msra.mxu0 0.0
    %3103 = vmatprep.subr.mxu0 0.0
    %3104 = vmatpush1.msra.mxu0 0.0
    %3105 = vmatprep.subr.mxu0 0.0
    %3106 = vmatpush1.msra.mxu0 0.0
    %3107 = vmatprep.subr.mxu0 0.0
    %3108 = vmatpush1.msra.mxu0 0.0
    %3109 = vmatprep.subr.mxu0 0.0
    %3110 = vmatpush1.msra.mxu0 0.0
    %3111 = vmatprep.subr.mxu0 0.0
    %3112 = vmatpush1.msra.mxu0 0.0
    %3113 = vmatprep.subr.mxu0 0.0
    %3114 = vmatpush1.msra.mxu0 0.0
    %3115 = vmatprep.subr.mxu0 0.0
    %3116 = vmatpush1.msra.mxu0 0.0
    %3117 = vmatprep.subr.mxu0 0.0
    %3118 = vmatpush1.msra.mxu0 0.0
    %3119 = vmatprep.subr.mxu0 0.0
    %3120 = vmatpush1.msra.mxu0 0.0
    %3121 = vmatprep.subr.mxu0 0.0
    %3122 = vmatpush1.msra.mxu0 0.0
    %3123 = vmatprep.subr.mxu0 0.0
    %3124 = vmatpush1.msra.mxu0 0.0
    %3125 = vmatprep.subr.mxu0 0.0
    %3126 = vmatpush1.msra.mxu0 0.0
    %3127 = vmatprep.mubr.f32.mxu0 0.0
    %3128 = vmatmul.mubr.f32.gmra.mrb[0].mxu0 %v3061
    %v3129 = vpop.f32.mrb[0].mxu0
    %v3130 = vadd.f32 0.0, %v3129
    %v3131 = vpop.f32.mrb[0].mxu0
    %3132 = vdwg.mxu0
    %v3133 = vadd.f32 %v1900, %v3130
    %v3134 = vxor.u32 %v3057, 2147483648
    %v3135 = vmul.f32 %v3134, 1.442695
    %v3136 = vpow.pop %v3135
    %v3137 = vadd.f32 %v3136, 1.0
    %v3138 = vrcp.pop %v3137
    %v3139 = vmul.f32 1.0, %v3138
    %v3140 = vtanh.pop %v3057
    %v3141 = vmul.f32 %v3139, %v2979
    %3143 = vrot.lane.b32.xlu0 %v3140, 64
    %v3144 = vpop.permute.xlu0 %3143
    %v3146 = vmul.f32 %v3139, %v3144
    %3148 = vrot.lane.b32.xlu0 %v3146, 32
    %v3149 = vpop.permute.xlu0 %3148
    %v3151 = vadd.f32 %v3141, %v3149
    %v3152 = vtanh.pop %v3151
    %3154 = vrot.lane.b32.xlu0 %v3152, 64
    %v3155 = vpop.permute.xlu0 %3154
    %v3157 = vmul.f32 %v3139, %v3155
    %v3158 = vxor.u32 %v3133, 2147483648
    %v3159 = vmul.f32 %v3158, 1.442695
    %v3160 = vpow.pop %v3159
    %v3161 = vadd.f32 %v3160, 1.0
    %v3162 = vrcp.pop %v3161
    %v3163 = vmul.f32 1.0, %v3162
    %v3164 = vtanh.pop %v3133
    %v3165 = vmul.f32 %v3163, %v2981
    %3167 = vrot.lane.b32.xlu0 %v3164, 64
    %v3168 = vpop.permute.xlu0 %3167
    %v3170 = vmul.f32 %v3163, %v3168
    %3172 = vrot.lane.b32.xlu0 %v3170, 32
    %v3173 = vpop.permute.xlu0 %3172
    %v3175 = vadd.f32 %v3165, %v3173
    %v3176 = vtanh.pop %v3175
    %3178 = vrot.lane.b32.xlu0 %v3176, 64
    %v3179 = vpop.permute.xlu0 %3178
    %v3181 = vmul.f32 %v3163, %v3179
    %v3182 = vsel %vm2119, %v3157, %v2978
    %v3183 = vsel %vm2119, %v3151, %v2979
    %v3184 = vsel %vm2112, %v3181, %v2980
    %v3185 = vsel %vm2112, %v3175, %v2981
    %3187 = vrot.lane.b32.xlu0 %v3182, 32
    %v3188 = vpop.permute.xlu0 %3187
    %v3189 = vsel %vm522, %v3188, 0
    %3191 = vmatprep.subr.mxu0 0.0
    %3192 = vmatpush1.msra.mxu0 %v765
    %3193 = vmatprep.subr.mxu0 0.0
    %3194 = vmatpush1.msra.mxu0 %v767
    %3195 = vmatprep.subr.mxu0 0.0
    %3196 = vmatpush1.msra.mxu0 %v769
    %3197 = vmatprep.subr.mxu0 0.0
    %3198 = vmatpush1.msra.mxu0 %v771
    %3199 = vmatprep.subr.mxu0 0.0
    %3200 = vmatpush1.msra.mxu0 0.0
    %3201 = vmatprep.subr.mxu0 0.0
    %3202 = vmatpush1.msra.mxu0 0.0
    %3203 = vmatprep.subr.mxu0 0.0
    %3204 = vmatpush1.msra.mxu0 0.0
    %3205 = vmatprep.subr.mxu0 0.0
    %3206 = vmatpush1.msra.mxu0 0.0
    %3207 = vmatprep.subr.mxu0 0.0
    %3208 = vmatpush1.msra.mxu0 0.0
    %3209 = vmatprep.subr.mxu0 0.0
    %3210 = vmatpush1.msra.mxu0 0.0
    %3211 = vmatprep.subr.mxu0 0.0
    %3212 = vmatpush1.msra.mxu0 0.0
    %3213 = vmatprep.subr.mxu0 0.0
    %3214 = vmatpush1.msra.mxu0 0.0
    %3215 = vmatprep.subr.mxu0 0.0
    %3216 = vmatpush1.msra.mxu0 0.0
    %3217 = vmatprep.subr.mxu0 0.0
    %3218 = vmatpush1.msra.mxu0 0.0
    %3219 = vmatprep.subr.mxu0 0.0
    %3220 = vmatpush1.msra.mxu0 0.0
    %3221 = vmatprep.subr.mxu0 0.0
    %3222 = vmatpush1.msra.mxu0 0.0
    %3223 = vmatprep.subr.mxu0 0.0
    %3224 = vmatpush1.msra.mxu0 0.0
    %3225 = vmatprep.subr.mxu0 0.0
    %3226 = vmatpush1.msra.mxu0 0.0
    %3227 = vmatprep.subr.mxu0 0.0
    %3228 = vmatpush1.msra.mxu0 0.0
    %3229 = vmatprep.subr.mxu0 0.0
    %3230 = vmatpush1.msra.mxu0 0.0
    %3231 = vmatprep.subr.mxu0 0.0
    %3232 = vmatpush1.msra.mxu0 0.0
    %3233 = vmatprep.subr.mxu0 0.0
    %3234 = vmatpush1.msra.mxu0 0.0
    %3235 = vmatprep.subr.mxu0 0.0
    %3236 = vmatpush1.msra.mxu0 0.0
    %3237 = vmatprep.subr.mxu0 0.0
    %3238 = vmatpush1.msra.mxu0 0.0
    %3239 = vmatprep.subr.mxu0 0.0
    %3240 = vmatpush1.msra.mxu0 0.0
    %3241 = vmatprep.subr.mxu0 0.0
    %3242 = vmatpush1.msra.mxu0 0.0
    %3243 = vmatprep.subr.mxu0 0.0
    %3244 = vmatpush1.msra.mxu0 0.0
    %3245 = vmatprep.subr.mxu0 0.0
    %3246 = vmatpush1.msra.mxu0 0.0
    %3247 = vmatprep.subr.mxu0 0.0
    %3248 = vmatpush1.msra.mxu0 0.0
    %3249 = vmatprep.subr.mxu0 0.0
    %3250 = vmatpush1.msra.mxu0 0.0
    %3251 = vmatprep.subr.mxu0 0.0
    %3252 = vmatpush1.msra.mxu0 0.0
    %3253 = vmatprep.subr.mxu0 0.0
    %3254 = vmatpush1.msra.mxu0 0.0
    %3255 = vmatprep.mubr.f32.mxu0 0.0
    %3256 = vmatmul.mubr.f32.gmra.mrb[0].mxu0 %v3189
    %v3257 = vpop.f32.mrb[0].mxu0
    %v3258 = vadd.f32 0.0, %v3257
    %v3259 = vpop.f32.mrb[0].mxu0
    %3260 = vdwg.mxu0
    %v3261 = vadd.f32 %v1678, %v3258
    %3263 = vrot.lane.b32.xlu0 %v3184, 32
    %v3264 = vpop.permute.xlu0 %3263
    %v3265 = vsel %vm522, %v3264, 0
    %3267 = vmatprep.subr.mxu0 0.0
    %3268 = vmatpush1.msra.mxu0 %v766
    %3269 = vmatprep.subr.mxu0 0.0
    %3270 = vmatpush1.msra.mxu0 %v768
    %3271 = vmatprep.subr.mxu0 0.0
    %3272 = vmatpush1.msra.mxu0 %v770
    %3273 = vmatprep.subr.mxu0 0.0
    %3274 = vmatpush1.msra.mxu0 %v772
    %3275 = vmatprep.subr.mxu0 0.0
    %3276 = vmatpush1.msra.mxu0 0.0
    %3277 = vmatprep.subr.mxu0 0.0
    %3278 = vmatpush1.msra.mxu0 0.0
    %3279 = vmatprep.subr.mxu0 0.0
    %3280 = vmatpush1.msra.mxu0 0.0
    %3281 = vmatprep.subr.mxu0 0.0
    %3282 = vmatpush1.msra.mxu0 0.0
    %3283 = vmatprep.subr.mxu0 0.0
    %3284 = vmatpush1.msra.mxu0 0.0
    %3285 = vmatprep.subr.mxu0 0.0
    %3286 = vmatpush1.msra.mxu0 0.0
    %3287 = vmatprep.subr.mxu0 0.0
    %3288 = vmatpush1.msra.mxu0 0.0
    %3289 = vmatprep.subr.mxu0 0.0
    %3290 = vmatpush1.msra.mxu0 0.0
    %3291 = vmatprep.subr.mxu0 0.0
    %3292 = vmatpush1.msra.mxu0 0.0
    %3293 = vmatprep.subr.mxu0 0.0
    %3294 = vmatpush1.msra.mxu0 0.0
    %3295 = vmatprep.subr.mxu0 0.0
    %3296 = vmatpush1.msra.mxu0 0.0
    %3297 = vmatprep.subr.mxu0 0.0
    %3298 = vmatpush1.msra.mxu0 0.0
    %3299 = vmatprep.subr.mxu0 0.0
    %3300 = vmatpush1.msra.mxu0 0.0
    %3301 = vmatprep.subr.mxu0 0.0
    %3302 = vmatpush1.msra.mxu0 0.0
    %3303 = vmatprep.subr.mxu0 0.0
    %3304 = vmatpush1.msra.mxu0 0.0
    %3305 = vmatprep.subr.mxu0 0.0
    %3306 = vmatpush1.msra.mxu0 0.0
    %3307 = vmatprep.subr.mxu0 0.0
    %3308 = vmatpush1.msra.mxu0 0.0
    %3309 = vmatprep.subr.mxu0 0.0
    %3310 = vmatpush1.msra.mxu0 0.0
    %3311 = vmatprep.subr.mxu0 0.0
    %3312 = vmatpush1.msra.mxu0 0.0
    %3313 = vmatprep.subr.mxu0 0.0
    %3314 = vmatpush1.msra.mxu0 0.0
    %3315 = vmatprep.subr.mxu0 0.0
    %3316 = vmatpush1.msra.mxu0 0.0
    %3317 = vmatprep.subr.mxu0 0.0
    %3318 = vmatpush1.msra.mxu0 0.0
    %3319 = vmatprep.subr.mxu0 0.0
    %3320 = vmatpush1.msra.mxu0 0.0
    %3321 = vmatprep.subr.mxu0 0.0
    %3322 = vmatpush1.msra.mxu0 0.0
    %3323 = vmatprep.subr.mxu0 0.0
    %3324 = vmatpush1.msra.mxu0 0.0
    %3325 = vmatprep.subr.mxu0 0.0
    %3326 = vmatpush1.msra.mxu0 0.0
    %3327 = vmatprep.subr.mxu0 0.0
    %3328 = vmatpush1.msra.mxu0 0.0
    %3329 = vmatprep.subr.mxu0 0.0
    %3330 = vmatpush1.msra.mxu0 0.0
    %3331 = vmatprep.mubr.f32.mxu0 0.0
    %3332 = vmatmul.mubr.f32.gmra.mrb[0].mxu0 %v3265
    %v3333 = vpop.f32.mrb[0].mxu0
    %v3334 = vadd.f32 0.0, %v3333
    %v3335 = vpop.f32.mrb[0].mxu0
    %3336 = vdwg.mxu0
    %v3337 = vadd.f32 %v1674, %v3334
    %v3338 = vxor.u32 %v3261, 2147483648
    %v3339 = vmul.f32 %v3338, 1.442695
    %v3340 = vpow.pop %v3339
    %v3341 = vadd.f32 %v3340, 1.0
    %v3342 = vrcp.pop %v3341
    %v3343 = vmul.f32 1.0, %v3342
    %v3344 = vtanh.pop %v3261
    %v3345 = vmul.f32 %v3343, %v3183
    %3347 = vrot.lane.b32.xlu0 %v3344, 64
    %v3348 = vpop.permute.xlu0 %3347
    %v3350 = vmul.f32 %v3343, %v3348
    %3352 = vrot.lane.b32.xlu0 %v3350, 32
    %v3353 = vpop.permute.xlu0 %3352
    %v3355 = vadd.f32 %v3345, %v3353
    %v3356 = vtanh.pop %v3355
    %3358 = vrot.lane.b32.xlu0 %v3356, 64
    %v3359 = vpop.permute.xlu0 %3358
    %v3361 = vmul.f32 %v3343, %v3359
    %v3362 = vxor.u32 %v3337, 2147483648
    %v3363 = vmul.f32 %v3362, 1.442695
    %v3364 = vpow.pop %v3363
    %v3365 = vadd.f32 %v3364, 1.0
    %v3366 = vrcp.pop %v3365
    %v3367 = vmul.f32 1.0, %v3366
    %v3368 = vtanh.pop %v3337
    %v3369 = vmul.f32 %v3367, %v3185
    %3371 = vrot.lane.b32.xlu0 %v3368, 64
    %v3372 = vpop.permute.xlu0 %3371
    %v3374 = vmul.f32 %v3367, %v3372
    %3376 = vrot.lane.b32.xlu0 %v3374, 32
    %v3377 = vpop.permute.xlu0 %3376
    %v3379 = vadd.f32 %v3369, %v3377
    %v3380 = vtanh.pop %v3379
    %3382 = vrot.lane.b32.xlu0 %v3380, 64
    %v3383 = vpop.permute.xlu0 %3382
    %v3385 = vmul.f32 %v3367, %v3383
    %v3386 = vsel %vm1893, %v3361, %v3182
    %v3387 = vsel %vm1893, %v3355, %v3183
    %v3388 = vsel %vm1886, %v3385, %v3184
    %v3389 = vsel %vm1886, %v3379, %v3185
    %3391 = vrot.lane.b32.xlu0 %v3386, 32
    %v3392 = vpop.permute.xlu0 %3391
    %v3393 = vsel %vm522, %v3392, 0
    %3395 = vmatprep.subr.mxu0 0.0
    %3396 = vmatpush1.msra.mxu0 %v765
    %3397 = vmatprep.subr.mxu0 0.0
    %3398 = vmatpush1.msra.mxu0 %v767
    %3399 = vmatprep.subr.mxu0 0.0
    %3400 = vmatpush1.msra.mxu0 %v769
    %3401 = vmatprep.subr.mxu0 0.0
    %3402 = vmatpush1.msra.mxu0 %v771
    %3403 = vmatprep.subr.mxu0 0.0
    %3404 = vmatpush1.msra.mxu0 0.0
    %3405 = vmatprep.subr.mxu0 0.0
    %3406 = vmatpush1.msra.mxu0 0.0
    %3407 = vmatprep.subr.mxu0 0.0
    %3408 = vmatpush1.msra.mxu0 0.0
    %3409 = vmatprep.subr.mxu0 0.0
    %3410 = vmatpush1.msra.mxu0 0.0
    %3411 = vmatprep.subr.mxu0 0.0
    %3412 = vmatpush1.msra.mxu0 0.0
    %3413 = vmatprep.subr.mxu0 0.0
    %3414 = vmatpush1.msra.mxu0 0.0
    %3415 = vmatprep.subr.mxu0 0.0
    %3416 = vmatpush1.msra.mxu0 0.0
    %3417 = vmatprep.subr.mxu0 0.0
    %3418 = vmatpush1.msra.mxu0 0.0
    %3419 = vmatprep.subr.mxu0 0.0
    %3420 = vmatpush1.msra.mxu0 0.0
    %3421 = vmatprep.subr.mxu0 0.0
    %3422 = vmatpush1.msra.mxu0 0.0
    %3423 = vmatprep.subr.mxu0 0.0
    %3424 = vmatpush1.msra.mxu0 0.0
    %3425 = vmatprep.subr.mxu0 0.0
    %3426 = vmatpush1.msra.mxu0 0.0
    %3427 = vmatprep.subr.mxu0 0.0
    %3428 = vmatpush1.msra.mxu0 0.0
    %3429 = vmatprep.subr.mxu0 0.0
    %3430 = vmatpush1.msra.mxu0 0.0
    %3431 = vmatprep.subr.mxu0 0.0
    %3432 = vmatpush1.msra.mxu0 0.0
    %3433 = vmatprep.subr.mxu0 0.0
    %3434 = vmatpush1.msra.mxu0 0.0
    %3435 = vmatprep.subr.mxu0 0.0
    %3436 = vmatpush1.msra.mxu0 0.0
    %3437 = vmatprep.subr.mxu0 0.0
    %3438 = vmatpush1.msra.mxu0 0.0
    %3439 = vmatprep.subr.mxu0 0.0
    %3440 = vmatpush1.msra.mxu0 0.0
    %3441 = vmatprep.subr.mxu0 0.0
    %3442 = vmatpush1.msra.mxu0 0.0
    %3443 = vmatprep.subr.mxu0 0.0
    %3444 = vmatpush1.msra.mxu0 0.0
    %3445 = vmatprep.subr.mxu0 0.0
    %3446 = vmatpush1.msra.mxu0 0.0
    %3447 = vmatprep.subr.mxu0 0.0
    %3448 = vmatpush1.msra.mxu0 0.0
    %3449 = vmatprep.subr.mxu0 0.0
    %3450 = vmatpush1.msra.mxu0 0.0
    %3451 = vmatprep.subr.mxu0 0.0
    %3452 = vmatpush1.msra.mxu0 0.0
    %3453 = vmatprep.subr.mxu0 0.0
    %3454 = vmatpush1.msra.mxu0 0.0
    %3455 = vmatprep.subr.mxu0 0.0
    %3456 = vmatpush1.msra.mxu0 0.0
    %3457 = vmatprep.subr.mxu0 0.0
    %3458 = vmatpush1.msra.mxu0 0.0
    %3459 = vmatprep.mubr.f32.mxu0 0.0
    %3460 = vmatmul.mubr.f32.gmra.mrb[0].mxu0 %v3393
    %v3461 = vpop.f32.mrb[0].mxu0
    %v3462 = vadd.f32 0.0, %v3461
    %v3463 = vpop.f32.mrb[0].mxu0
    %3464 = vdwg.mxu0
    %v3465 = vadd.f32 %v1452, %v3462
    %3467 = vrot.lane.b32.xlu0 %v3388, 32
    %v3468 = vpop.permute.xlu0 %3467
    %v3469 = vsel %vm522, %v3468, 0
    %3471 = vmatprep.subr.mxu0 0.0
    %3472 = vmatpush1.msra.mxu0 %v766
    %3473 = vmatprep.subr.mxu0 0.0
    %3474 = vmatpush1.msra.mxu0 %v768
    %3475 = vmatprep.subr.mxu0 0.0
    %3476 = vmatpush1.msra.mxu0 %v770
    %3477 = vmatprep.subr.mxu0 0.0
    %3478 = vmatpush1.msra.mxu0 %v772
    %3479 = vmatprep.subr.mxu0 0.0
    %3480 = vmatpush1.msra.mxu0 0.0
    %3481 = vmatprep.subr.mxu0 0.0
    %3482 = vmatpush1.msra.mxu0 0.0
    %3483 = vmatprep.subr.mxu0 0.0
    %3484 = vmatpush1.msra.mxu0 0.0
    %3485 = vmatprep.subr.mxu0 0.0
    %3486 = vmatpush1.msra.mxu0 0.0
    %3487 = vmatprep.subr.mxu0 0.0
    %3488 = vmatpush1.msra.mxu0 0.0
    %3489 = vmatprep.subr.mxu0 0.0
    %3490 = vmatpush1.msra.mxu0 0.0
    %3491 = vmatprep.subr.mxu0 0.0
    %3492 = vmatpush1.msra.mxu0 0.0
    %3493 = vmatprep.subr.mxu0 0.0
    %3494 = vmatpush1.msra.mxu0 0.0
    %3495 = vmatprep.subr.mxu0 0.0
    %3496 = vmatpush1.msra.mxu0 0.0
    %3497 = vmatprep.subr.mxu0 0.0
    %3498 = vmatpush1.msra.mxu0 0.0
    %3499 = vmatprep.subr.mxu0 0.0
    %3500 = vmatpush1.msra.mxu0 0.0
    %3501 = vmatprep.subr.mxu0 0.0
    %3502 = vmatpush1.msra.mxu0 0.0
    %3503 = vmatprep.subr.mxu0 0.0
    %3504 = vmatpush1.msra.mxu0 0.0
    %3505 = vmatprep.subr.mxu0 0.0
    %3506 = vmatpush1.msra.mxu0 0.0
    %3507 = vmatprep.subr.mxu0 0.0
    %3508 = vmatpush1.msra.mxu0 0.0
    %3509 = vmatprep.subr.mxu0 0.0
    %3510 = vmatpush1.msra.mxu0 0.0
    %3511 = vmatprep.subr.mxu0 0.0
    %3512 = vmatpush1.msra.mxu0 0.0
    %3513 = vmatprep.subr.mxu0 0.0
    %3514 = vmatpush1.msra.mxu0 0.0
    %3515 = vmatprep.subr.mxu0 0.0
    %3516 = vmatpush1.msra.mxu0 0.0
    %3517 = vmatprep.subr.mxu0 0.0
    %3518 = vmatpush1.msra.mxu0 0.0
    %3519 = vmatprep.subr.mxu0 0.0
    %3520 = vmatpush1.msra.mxu0 0.0
    %3521 = vmatprep.subr.mxu0 0.0
    %3522 = vmatpush1.msra.mxu0 0.0
    %3523 = vmatprep.subr.mxu0 0.0
    %3524 = vmatpush1.msra.mxu0 0.0
    %3525 = vmatprep.subr.mxu0 0.0
    %3526 = vmatpush1.msra.mxu0 0.0
    %3527 = vmatprep.subr.mxu0 0.0
    %3528 = vmatpush1.msra.mxu0 0.0
    %3529 = vmatprep.subr.mxu0 0.0
    %3530 = vmatpush1.msra.mxu0 0.0
    %3531 = vmatprep.subr.mxu0 0.0
    %3532 = vmatpush1.msra.mxu0 0.0
    %3533 = vmatprep.subr.mxu0 0.0
    %3534 = vmatpush1.msra.mxu0 0.0
    %3535 = vmatprep.mubr.f32.mxu0 0.0
    %3536 = vmatmul.mubr.f32.gmra.mrb[0].mxu0 %v3469
    %v3537 = vpop.f32.mrb[0].mxu0
    %v3538 = vadd.f32 0.0, %v3537
    %v3539 = vpop.f32.mrb[0].mxu0
    %3540 = vdwg.mxu0
    %v3541 = vadd.f32 %v1448, %v3538
    %v3542 = vxor.u32 %v3465, 2147483648
    %v3543 = vmul.f32 %v3542, 1.442695
    %v3544 = vpow.pop %v3543
    %v3545 = vadd.f32 %v3544, 1.0
    %v3546 = vrcp.pop %v3545
    %v3547 = vmul.f32 1.0, %v3546
    %v3548 = vtanh.pop %v3465
    %v3549 = vmul.f32 %v3547, %v3387
    %3551 = vrot.lane.b32.xlu0 %v3548, 64
    %v3552 = vpop.permute.xlu0 %3551
    %v3554 = vmul.f32 %v3547, %v3552
    %3556 = vrot.lane.b32.xlu0 %v3554, 32
    %v3557 = vpop.permute.xlu0 %3556
    %v3559 = vadd.f32 %v3549, %v3557
    %v3560 = vtanh.pop %v3559
    %3562 = vrot.lane.b32.xlu0 %v3560, 64
    %v3563 = vpop.permute.xlu0 %3562
    %v3565 = vmul.f32 %v3547, %v3563
    %v3566 = vxor.u32 %v3541, 2147483648
    %v3567 = vmul.f32 %v3566, 1.442695
    %v3568 = vpow.pop %v3567
    %v3569 = vadd.f32 %v3568, 1.0
    %v3570 = vrcp.pop %v3569
    %v3571 = vmul.f32 1.0, %v3570
    %v3572 = vtanh.pop %v3541
    %v3573 = vmul.f32 %v3571, %v3389
    %3575 = vrot.lane.b32.xlu0 %v3572, 64
    %v3576 = vpop.permute.xlu0 %3575
    %v3578 = vmul.f32 %v3571, %v3576
    %3580 = vrot.lane.b32.xlu0 %v3578, 32
    %v3581 = vpop.permute.xlu0 %3580
    %v3583 = vadd.f32 %v3573, %v3581
    %v3584 = vtanh.pop %v3583
    %3586 = vrot.lane.b32.xlu0 %v3584, 64
    %v3587 = vpop.permute.xlu0 %3586
    %v3589 = vmul.f32 %v3571, %v3587
    %v3590 = vsel %vm1667, %v3565, %v3386
    %v3591 = vsel %vm1667, %v3559, %v3387
    %v3592 = vsel %vm1660, %v3589, %v3388
    %v3593 = vsel %vm1660, %v3583, %v3389
    %3595 = vrot.lane.b32.xlu0 %v3590, 32
    %v3596 = vpop.permute.xlu0 %3595
    %v3597 = vsel %vm522, %v3596, 0
    %3599 = vmatprep.subr.mxu0 0.0
    %3600 = vmatpush1.msra.mxu0 %v765
    %3601 = vmatprep.subr.mxu0 0.0
    %3602 = vmatpush1.msra.mxu0 %v767
    %3603 = vmatprep.subr.mxu0 0.0
    %3604 = vmatpush1.msra.mxu0 %v769
    %3605 = vmatprep.subr.mxu0 0.0
    %3606 = vmatpush1.msra.mxu0 %v771
    %3607 = vmatprep.subr.mxu0 0.0
    %3608 = vmatpush1.msra.mxu0 0.0
    %3609 = vmatprep.subr.mxu0 0.0
    %3610 = vmatpush1.msra.mxu0 0.0
    %3611 = vmatprep.subr.mxu0 0.0
    %3612 = vmatpush1.msra.mxu0 0.0
    %3613 = vmatprep.subr.mxu0 0.0
    %3614 = vmatpush1.msra.mxu0 0.0
    %3615 = vmatprep.subr.mxu0 0.0
    %3616 = vmatpush1.msra.mxu0 0.0
    %3617 = vmatprep.subr.mxu0 0.0
    %3618 = vmatpush1.msra.mxu0 0.0
    %3619 = vmatprep.subr.mxu0 0.0
    %3620 = vmatpush1.msra.mxu0 0.0
    %3621 = vmatprep.subr.mxu0 0.0
    %3622 = vmatpush1.msra.mxu0 0.0
    %3623 = vmatprep.subr.mxu0 0.0
    %3624 = vmatpush1.msra.mxu0 0.0
    %3625 = vmatprep.subr.mxu0 0.0
    %3626 = vmatpush1.msra.mxu0 0.0
    %3627 = vmatprep.subr.mxu0 0.0
    %3628 = vmatpush1.msra.mxu0 0.0
    %3629 = vmatprep.subr.mxu0 0.0
    %3630 = vmatpush1.msra.mxu0 0.0
    %3631 = vmatprep.subr.mxu0 0.0
    %3632 = vmatpush1.msra.mxu0 0.0
    %3633 = vmatprep.subr.mxu0 0.0
    %3634 = vmatpush1.msra.mxu0 0.0
    %3635 = vmatprep.subr.mxu0 0.0
    %3636 = vmatpush1.msra.mxu0 0.0
    %3637 = vmatprep.subr.mxu0 0.0
    %3638 = vmatpush1.msra.mxu0 0.0
    %3639 = vmatprep.subr.mxu0 0.0
    %3640 = vmatpush1.msra.mxu0 0.0
    %3641 = vmatprep.subr.mxu0 0.0
    %3642 = vmatpush1.msra.mxu0 0.0
    %3643 = vmatprep.subr.mxu0 0.0
    %3644 = vmatpush1.msra.mxu0 0.0
    %3645 = vmatprep.subr.mxu0 0.0
    %3646 = vmatpush1.msra.mxu0 0.0
    %3647 = vmatprep.subr.mxu0 0.0
    %3648 = vmatpush1.msra.mxu0 0.0
    %3649 = vmatprep.subr.mxu0 0.0
    %3650 = vmatpush1.msra.mxu0 0.0
    %3651 = vmatprep.subr.mxu0 0.0
    %3652 = vmatpush1.msra.mxu0 0.0
    %3653 = vmatprep.subr.mxu0 0.0
    %3654 = vmatpush1.msra.mxu0 0.0
    %3655 = vmatprep.subr.mxu0 0.0
    %3656 = vmatpush1.msra.mxu0 0.0
    %3657 = vmatprep.subr.mxu0 0.0
    %3658 = vmatpush1.msra.mxu0 0.0
    %3659 = vmatprep.subr.mxu0 0.0
    %3660 = vmatpush1.msra.mxu0 0.0
    %3661 = vmatprep.subr.mxu0 0.0
    %3662 = vmatpush1.msra.mxu0 0.0
    %3663 = vmatprep.mubr.f32.mxu0 0.0
    %3664 = vmatmul.mubr.f32.gmra.mrb[0].mxu0 %v3597
    %v3665 = vpop.f32.mrb[0].mxu0
    %v3666 = vadd.f32 0.0, %v3665
    %v3667 = vpop.f32.mrb[0].mxu0
    %3668 = vdwg.mxu0
    %v3669 = vadd.f32 %v1226, %v3666
    %3671 = vrot.lane.b32.xlu0 %v3592, 32
    %v3672 = vpop.permute.xlu0 %3671
    %v3673 = vsel %vm522, %v3672, 0
    %3675 = vmatprep.subr.mxu0 0.0
    %3676 = vmatpush1.msra.mxu0 %v766
    %3677 = vmatprep.subr.mxu0 0.0
    %3678 = vmatpush1.msra.mxu0 %v768
    %3679 = vmatprep.subr.mxu0 0.0
    %3680 = vmatpush1.msra.mxu0 %v770
    %3681 = vmatprep.subr.mxu0 0.0
    %3682 = vmatpush1.msra.mxu0 %v772
    %3683 = vmatprep.subr.mxu0 0.0
    %3684 = vmatpush1.msra.mxu0 0.0
    %3685 = vmatprep.subr.mxu0 0.0
    %3686 = vmatpush1.msra.mxu0 0.0
    %3687 = vmatprep.subr.mxu0 0.0
    %3688 = vmatpush1.msra.mxu0 0.0
    %3689 = vmatprep.subr.mxu0 0.0
    %3690 = vmatpush1.msra.mxu0 0.0
    %3691 = vmatprep.subr.mxu0 0.0
    %3692 = vmatpush1.msra.mxu0 0.0
    %3693 = vmatprep.subr.mxu0 0.0
    %3694 = vmatpush1.msra.mxu0 0.0
    %3695 = vmatprep.subr.mxu0 0.0
    %3696 = vmatpush1.msra.mxu0 0.0
    %3697 = vmatprep.subr.mxu0 0.0
    %3698 = vmatpush1.msra.mxu0 0.0
    %3699 = vmatprep.subr.mxu0 0.0
    %3700 = vmatpush1.msra.mxu0 0.0
    %3701 = vmatprep.subr.mxu0 0.0
    %3702 = vmatpush1.msra.mxu0 0.0
    %3703 = vmatprep.subr.mxu0 0.0
    %3704 = vmatpush1.msra.mxu0 0.0
    %3705 = vmatprep.subr.mxu0 0.0
    %3706 = vmatpush1.msra.mxu0 0.0
    %3707 = vmatprep.subr.mxu0 0.0
    %3708 = vmatpush1.msra.mxu0 0.0
    %3709 = vmatprep.subr.mxu0 0.0
    %3710 = vmatpush1.msra.mxu0 0.0
    %3711 = vmatprep.subr.mxu0 0.0
    %3712 = vmatpush1.msra.mxu0 0.0
    %3713 = vmatprep.subr.mxu0 0.0
    %3714 = vmatpush1.msra.mxu0 0.0
    %3715 = vmatprep.subr.mxu0 0.0
    %3716 = vmatpush1.msra.mxu0 0.0
    %3717 = vmatprep.subr.mxu0 0.0
    %3718 = vmatpush1.msra.mxu0 0.0
    %3719 = vmatprep.subr.mxu0 0.0
    %3720 = vmatpush1.msra.mxu0 0.0
    %3721 = vmatprep.subr.mxu0 0.0
    %3722 = vmatpush1.msra.mxu0 0.0
    %3723 = vmatprep.subr.mxu0 0.0
    %3724 = vmatpush1.msra.mxu0 0.0
    %3725 = vmatprep.subr.mxu0 0.0
    %3726 = vmatpush1.msra.mxu0 0.0
    %3727 = vmatprep.subr.mxu0 0.0
    %3728 = vmatpush1.msra.mxu0 0.0
    %3729 = vmatprep.subr.mxu0 0.0
    %3730 = vmatpush1.msra.mxu0 0.0
    %3731 = vmatprep.subr.mxu0 0.0
    %3732 = vmatpush1.msra.mxu0 0.0
    %3733 = vmatprep.subr.mxu0 0.0
    %3734 = vmatpush1.msra.mxu0 0.0
    %3735 = vmatprep.subr.mxu0 0.0
    %3736 = vmatpush1.msra.mxu0 0.0
    %3737 = vmatprep.subr.mxu0 0.0
    %3738 = vmatpush1.msra.mxu0 0.0
    %3739 = vmatprep.mubr.f32.mxu0 0.0
    %3740 = vmatmul.mubr.f32.gmra.mrb[0].mxu0 %v3673
    %v3741 = vpop.f32.mrb[0].mxu0
    %v3742 = vadd.f32 0.0, %v3741
    %v3743 = vpop.f32.mrb[0].mxu0
    %3744 = vdwg.mxu0
    %v3745 = vadd.f32 %v1222, %v3742
    %v3746 = vxor.u32 %v3669, 2147483648
    %v3747 = vmul.f32 %v3746, 1.442695
    %v3748 = vpow.pop %v3747
    %v3749 = vadd.f32 %v3748, 1.0
    %v3750 = vrcp.pop %v3749
    %v3751 = vmul.f32 1.0, %v3750
    %v3752 = vtanh.pop %v3669
    %v3753 = vmul.f32 %v3751, %v3591
    %3755 = vrot.lane.b32.xlu0 %v3752, 64
    %v3756 = vpop.permute.xlu0 %3755
    %v3758 = vmul.f32 %v3751, %v3756
    %3760 = vrot.lane.b32.xlu0 %v3758, 32
    %v3761 = vpop.permute.xlu0 %3760
    %v3763 = vadd.f32 %v3753, %v3761
    %v3764 = vtanh.pop %v3763
    %3766 = vrot.lane.b32.xlu0 %v3764, 64
    %v3767 = vpop.permute.xlu0 %3766
    %v3769 = vmul.f32 %v3751, %v3767
    %v3770 = vxor.u32 %v3745, 2147483648
    %v3771 = vmul.f32 %v3770, 1.442695
    %v3772 = vpow.pop %v3771
    %v3773 = vadd.f32 %v3772, 1.0
    %v3774 = vrcp.pop %v3773
    %v3775 = vmul.f32 1.0, %v3774
    %v3776 = vtanh.pop %v3745
    %v3777 = vmul.f32 %v3775, %v3593
    %3779 = vrot.lane.b32.xlu0 %v3776, 64
    %v3780 = vpop.permute.xlu0 %3779
    %v3782 = vmul.f32 %v3775, %v3780
    %3784 = vrot.lane.b32.xlu0 %v3782, 32
    %v3785 = vpop.permute.xlu0 %3784
    %v3787 = vadd.f32 %v3777, %v3785
    %v3788 = vtanh.pop %v3787
    %3790 = vrot.lane.b32.xlu0 %v3788, 64
    %v3791 = vpop.permute.xlu0 %3790
    %v3793 = vmul.f32 %v3775, %v3791
    %v3794 = vsel %vm1441, %v3769, %v3590
    %v3795 = vsel %vm1441, %v3763, %v3591
    %v3796 = vsel %vm1434, %v3793, %v3592
    %v3797 = vsel %vm1434, %v3787, %v3593
    %3799 = vrot.lane.b32.xlu0 %v3794, 32
    %v3800 = vpop.permute.xlu0 %3799
    %v3801 = vsel %vm522, %v3800, 0
    %3803 = vmatprep.subr.mxu0 0.0
    %3804 = vmatpush1.msra.mxu0 %v765
    %3805 = vmatprep.subr.mxu0 0.0
    %3806 = vmatpush1.msra.mxu0 %v767
    %3807 = vmatprep.subr.mxu0 0.0
    %3808 = vmatpush1.msra.mxu0 %v769
    %3809 = vmatprep.subr.mxu0 0.0
    %3810 = vmatpush1.msra.mxu0 %v771
    %3811 = vmatprep.subr.mxu0 0.0
    %3812 = vmatpush1.msra.mxu0 0.0
    %3813 = vmatprep.subr.mxu0 0.0
    %3814 = vmatpush1.msra.mxu0 0.0
    %3815 = vmatprep.subr.mxu0 0.0
    %3816 = vmatpush1.msra.mxu0 0.0
    %3817 = vmatprep.subr.mxu0 0.0
    %3818 = vmatpush1.msra.mxu0 0.0
    %3819 = vmatprep.subr.mxu0 0.0
    %3820 = vmatpush1.msra.mxu0 0.0
    %3821 = vmatprep.subr.mxu0 0.0
    %3822 = vmatpush1.msra.mxu0 0.0
    %3823 = vmatprep.subr.mxu0 0.0
    %3824 = vmatpush1.msra.mxu0 0.0
    %3825 = vmatprep.subr.mxu0 0.0
    %3826 = vmatpush1.msra.mxu0 0.0
    %3827 = vmatprep.subr.mxu0 0.0
    %3828 = vmatpush1.msra.mxu0 0.0
    %3829 = vmatprep.subr.mxu0 0.0
    %3830 = vmatpush1.msra.mxu0 0.0
    %3831 = vmatprep.subr.mxu0 0.0
    %3832 = vmatpush1.msra.mxu0 0.0
    %3833 = vmatprep.subr.mxu0 0.0
    %3834 = vmatpush1.msra.mxu0 0.0
    %3835 = vmatprep.subr.mxu0 0.0
    %3836 = vmatpush1.msra.mxu0 0.0
    %3837 = vmatprep.subr.mxu0 0.0
    %3838 = vmatpush1.msra.mxu0 0.0
    %3839 = vmatprep.subr.mxu0 0.0
    %3840 = vmatpush1.msra.mxu0 0.0
    %3841 = vmatprep.subr.mxu0 0.0
    %3842 = vmatpush1.msra.mxu0 0.0
    %3843 = vmatprep.subr.mxu0 0.0
    %3844 = vmatpush1.msra.mxu0 0.0
    %3845 = vmatprep.subr.mxu0 0.0
    %3846 = vmatpush1.msra.mxu0 0.0
    %3847 = vmatprep.subr.mxu0 0.0
    %3848 = vmatpush1.msra.mxu0 0.0
    %3849 = vmatprep.subr.mxu0 0.0
    %3850 = vmatpush1.msra.mxu0 0.0
    %3851 = vmatprep.subr.mxu0 0.0
    %3852 = vmatpush1.msra.mxu0 0.0
    %3853 = vmatprep.subr.mxu0 0.0
    %3854 = vmatpush1.msra.mxu0 0.0
    %3855 = vmatprep.subr.mxu0 0.0
    %3856 = vmatpush1.msra.mxu0 0.0
    %3857 = vmatprep.subr.mxu0 0.0
    %3858 = vmatpush1.msra.mxu0 0.0
    %3859 = vmatprep.subr.mxu0 0.0
    %3860 = vmatpush1.msra.mxu0 0.0
    %3861 = vmatprep.subr.mxu0 0.0
    %3862 = vmatpush1.msra.mxu0 0.0
    %3863 = vmatprep.subr.mxu0 0.0
    %3864 = vmatpush1.msra.mxu0 0.0
    %3865 = vmatprep.subr.mxu0 0.0
    %3866 = vmatpush1.msra.mxu0 0.0
    %3867 = vmatprep.mubr.f32.mxu0 0.0
    %3868 = vmatmul.mubr.f32.gmra.mrb[0].mxu0 %v3801
    %v3869 = vpop.f32.mrb[0].mxu0
    %v3870 = vadd.f32 0.0, %v3869
    %v3871 = vpop.f32.mrb[0].mxu0
    %3872 = vdwg.mxu0
    %v3873 = vadd.f32 %v1000, %v3870
    %3875 = vrot.lane.b32.xlu0 %v3796, 32
    %v3876 = vpop.permute.xlu0 %3875
    %v3877 = vsel %vm522, %v3876, 0
    %3879 = vmatprep.subr.mxu0 0.0
    %3880 = vmatpush1.msra.mxu0 %v766
    %3881 = vmatprep.subr.mxu0 0.0
    %3882 = vmatpush1.msra.mxu0 %v768
    %3883 = vmatprep.subr.mxu0 0.0
    %3884 = vmatpush1.msra.mxu0 %v770
    %3885 = vmatprep.subr.mxu0 0.0
    %3886 = vmatpush1.msra.mxu0 %v772
    %3887 = vmatprep.subr.mxu0 0.0
    %3888 = vmatpush1.msra.mxu0 0.0
    %3889 = vmatprep.subr.mxu0 0.0
    %3890 = vmatpush1.msra.mxu0 0.0
    %3891 = vmatprep.subr.mxu0 0.0
    %3892 = vmatpush1.msra.mxu0 0.0
    %3893 = vmatprep.subr.mxu0 0.0
    %3894 = vmatpush1.msra.mxu0 0.0
    %3895 = vmatprep.subr.mxu0 0.0
    %3896 = vmatpush1.msra.mxu0 0.0
    %3897 = vmatprep.subr.mxu0 0.0
    %3898 = vmatpush1.msra.mxu0 0.0
    %3899 = vmatprep.subr.mxu0 0.0
    %3900 = vmatpush1.msra.mxu0 0.0
    %3901 = vmatprep.subr.mxu0 0.0
    %3902 = vmatpush1.msra.mxu0 0.0
    %3903 = vmatprep.subr.mxu0 0.0
    %3904 = vmatpush1.msra.mxu0 0.0
    %3905 = vmatprep.subr.mxu0 0.0
    %3906 = vmatpush1.msra.mxu0 0.0
    %3907 = vmatprep.subr.mxu0 0.0
    %3908 = vmatpush1.msra.mxu0 0.0
    %3909 = vmatprep.subr.mxu0 0.0
    %3910 = vmatpush1.msra.mxu0 0.0
    %3911 = vmatprep.subr.mxu0 0.0
    %3912 = vmatpush1.msra.mxu0 0.0
    %3913 = vmatprep.subr.mxu0 0.0
    %3914 = vmatpush1.msra.mxu0 0.0
    %3915 = vmatprep.subr.mxu0 0.0
    %3916 = vmatpush1.msra.mxu0 0.0
    %3917 = vmatprep.subr.mxu0 0.0
    %3918 = vmatpush1.msra.mxu0 0.0
    %3919 = vmatprep.subr.mxu0 0.0
    %3920 = vmatpush1.msra.mxu0 0.0
    %3921 = vmatprep.subr.mxu0 0.0
    %3922 = vmatpush1.msra.mxu0 0.0
    %3923 = vmatprep.subr.mxu0 0.0
    %3924 = vmatpush1.msra.mxu0 0.0
    %3925 = vmatprep.subr.mxu0 0.0
    %3926 = vmatpush1.msra.mxu0 0.0
    %3927 = vmatprep.subr.mxu0 0.0
    %3928 = vmatpush1.msra.mxu0 0.0
    %3929 = vmatprep.subr.mxu0 0.0
    %3930 = vmatpush1.msra.mxu0 0.0
    %3931 = vmatprep.subr.mxu0 0.0
    %3932 = vmatpush1.msra.mxu0 0.0
    %3933 = vmatprep.subr.mxu0 0.0
    %3934 = vmatpush1.msra.mxu0 0.0
    %3935 = vmatprep.subr.mxu0 0.0
    %3936 = vmatpush1.msra.mxu0 0.0
    %3937 = vmatprep.subr.mxu0 0.0
    %3938 = vmatpush1.msra.mxu0 0.0
    %3939 = vmatprep.subr.mxu0 0.0
    %3940 = vmatpush1.msra.mxu0 0.0
    %3941 = vmatprep.subr.mxu0 0.0
    %3942 = vmatpush1.msra.mxu0 0.0
    %3943 = vmatprep.mubr.f32.mxu0 0.0
    %3944 = vmatmul.mubr.f32.gmra.mrb[0].mxu0 %v3877
    %v3945 = vpop.f32.mrb[0].mxu0
    %v3946 = vadd.f32 0.0, %v3945
    %v3947 = vpop.f32.mrb[0].mxu0
    %3948 = vdwg.mxu0
    %v3949 = vadd.f32 %v996, %v3946
    %v3950 = vxor.u32 %v3873, 2147483648
    %v3951 = vmul.f32 %v3950, 1.442695
    %v3952 = vpow.pop %v3951
    %v3953 = vadd.f32 %v3952, 1.0
    %v3954 = vrcp.pop %v3953
    %v3955 = vmul.f32 1.0, %v3954
    %v3956 = vtanh.pop %v3873
    %v3957 = vmul.f32 %v3955, %v3795
    %3959 = vrot.lane.b32.xlu0 %v3956, 64
    %v3960 = vpop.permute.xlu0 %3959
    %v3962 = vmul.f32 %v3955, %v3960
    %3964 = vrot.lane.b32.xlu0 %v3962, 32
    %v3965 = vpop.permute.xlu0 %3964
    %v3967 = vadd.f32 %v3957, %v3965
    %v3968 = vtanh.pop %v3967
    %3970 = vrot.lane.b32.xlu0 %v3968, 64
    %v3971 = vpop.permute.xlu0 %3970
    %v3973 = vmul.f32 %v3955, %v3971
    %v3974 = vxor.u32 %v3949, 2147483648
    %v3975 = vmul.f32 %v3974, 1.442695
    %v3976 = vpow.pop %v3975
    %v3977 = vadd.f32 %v3976, 1.0
    %v3978 = vrcp.pop %v3977
    %v3979 = vmul.f32 1.0, %v3978
    %v3980 = vtanh.pop %v3949
    %v3981 = vmul.f32 %v3979, %v3797
    %3983 = vrot.lane.b32.xlu0 %v3980, 64
    %v3984 = vpop.permute.xlu0 %3983
    %v3986 = vmul.f32 %v3979, %v3984
    %3988 = vrot.lane.b32.xlu0 %v3986, 32
    %v3989 = vpop.permute.xlu0 %3988
    %v3991 = vadd.f32 %v3981, %v3989
    %v3992 = vtanh.pop %v3991
    %3994 = vrot.lane.b32.xlu0 %v3992, 64
    %v3995 = vpop.permute.xlu0 %3994
    %v3997 = vmul.f32 %v3979, %v3995
    %v3998 = vsel %vm1215, %v3973, %v3794
    %v3999 = vsel %vm1215, %v3967, %v3795
    %v4000 = vsel %vm1208, %v3997, %v3796
    %v4001 = vsel %vm1208, %v3991, %v3797
    %4003 = vrot.lane.b32.xlu0 %v3998, 32
    %v4004 = vpop.permute.xlu0 %4003
    %v4005 = vsel %vm522, %v4004, 0
    %4007 = vmatprep.subr.mxu0 0.0
    %4008 = vmatpush1.msra.mxu0 %v765
    %4009 = vmatprep.subr.mxu0 0.0
    %4010 = vmatpush1.msra.mxu0 %v767
    %4011 = vmatprep.subr.mxu0 0.0
    %4012 = vmatpush1.msra.mxu0 %v769
    %4013 = vmatprep.subr.mxu0 0.0
    %4014 = vmatpush1.msra.mxu0 %v771
    %4015 = vmatprep.subr.mxu0 0.0
    %4016 = vmatpush1.msra.mxu0 0.0
    %4017 = vmatprep.subr.mxu0 0.0
    %4018 = vmatpush1.msra.mxu0 0.0
    %4019 = vmatprep.subr.mxu0 0.0
    %4020 = vmatpush1.msra.mxu0 0.0
    %4021 = vmatprep.subr.mxu0 0.0
    %4022 = vmatpush1.msra.mxu0 0.0
    %4023 = vmatprep.subr.mxu0 0.0
    %4024 = vmatpush1.msra.mxu0 0.0
    %4025 = vmatprep.subr.mxu0 0.0
    %4026 = vmatpush1.msra.mxu0 0.0
    %4027 = vmatprep.subr.mxu0 0.0
    %4028 = vmatpush1.msra.mxu0 0.0
    %4029 = vmatprep.subr.mxu0 0.0
    %4030 = vmatpush1.msra.mxu0 0.0
    %4031 = vmatprep.subr.mxu0 0.0
    %4032 = vmatpush1.msra.mxu0 0.0
    %4033 = vmatprep.subr.mxu0 0.0
    %4034 = vmatpush1.msra.mxu0 0.0
    %4035 = vmatprep.subr.mxu0 0.0
    %4036 = vmatpush1.msra.mxu0 0.0
    %4037 = vmatprep.subr.mxu0 0.0
    %4038 = vmatpush1.msra.mxu0 0.0
    %4039 = vmatprep.subr.mxu0 0.0
    %4040 = vmatpush1.msra.mxu0 0.0
    %4041 = vmatprep.subr.mxu0 0.0
    %4042 = vmatpush1.msra.mxu0 0.0
    %4043 = vmatprep.subr.mxu0 0.0
    %4044 = vmatpush1.msra.mxu0 0.0
    %4045 = vmatprep.subr.mxu0 0.0
    %4046 = vmatpush1.msra.mxu0 0.0
    %4047 = vmatprep.subr.mxu0 0.0
    %4048 = vmatpush1.msra.mxu0 0.0
    %4049 = vmatprep.subr.mxu0 0.0
    %4050 = vmatpush1.msra.mxu0 0.0
    %4051 = vmatprep.subr.mxu0 0.0
    %4052 = vmatpush1.msra.mxu0 0.0
    %4053 = vmatprep.subr.mxu0 0.0
    %4054 = vmatpush1.msra.mxu0 0.0
    %4055 = vmatprep.subr.mxu0 0.0
    %4056 = vmatpush1.msra.mxu0 0.0
    %4057 = vmatprep.subr.mxu0 0.0
    %4058 = vmatpush1.msra.mxu0 0.0
    %4059 = vmatprep.subr.mxu0 0.0
    %4060 = vmatpush1.msra.mxu0 0.0
    %4061 = vmatprep.subr.mxu0 0.0
    %4062 = vmatpush1.msra.mxu0 0.0
    %4063 = vmatprep.subr.mxu0 0.0
    %4064 = vmatpush1.msra.mxu0 0.0
    %4065 = vmatprep.subr.mxu0 0.0
    %4066 = vmatpush1.msra.mxu0 0.0
    %4067 = vmatprep.subr.mxu0 0.0
    %4068 = vmatpush1.msra.mxu0 0.0
    %4069 = vmatprep.subr.mxu0 0.0
    %4070 = vmatpush1.msra.mxu0 0.0
    %4071 = vmatprep.mubr.f32.mxu0 0.0
    %4072 = vmatmul.mubr.f32.gmra.mrb[0].mxu0 %v4005
    %v4073 = vpop.f32.mrb[0].mxu0
    %v4074 = vadd.f32 0.0, %v4073
    %v4075 = vpop.f32.mrb[0].mxu0
    %4076 = vdwg.mxu0
    %v4077 = vadd.f32 %v781, %v4074
    %4079 = vrot.lane.b32.xlu0 %v4000, 32
    %v4080 = vpop.permute.xlu0 %4079
    %v4081 = vsel %vm522, %v4080, 0
    %4083 = vmatprep.subr.mxu0 0.0
    %4084 = vmatpush1.msra.mxu0 %v766
    %4085 = vmatprep.subr.mxu0 0.0
    %4086 = vmatpush1.msra.mxu0 %v768
    %4087 = vmatprep.subr.mxu0 0.0
    %4088 = vmatpush1.msra.mxu0 %v770
    %4089 = vmatprep.subr.mxu0 0.0
    %4090 = vmatpush1.msra.mxu0 %v772
    %4091 = vmatprep.subr.mxu0 0.0
    %4092 = vmatpush1.msra.mxu0 0.0
    %4093 = vmatprep.subr.mxu0 0.0
    %4094 = vmatpush1.msra.mxu0 0.0
    %4095 = vmatprep.subr.mxu0 0.0
    %4096 = vmatpush1.msra.mxu0 0.0
    %4097 = vmatprep.subr.mxu0 0.0
    %4098 = vmatpush1.msra.mxu0 0.0
    %4099 = vmatprep.subr.mxu0 0.0
    %4100 = vmatpush1.msra.mxu0 0.0
    %4101 = vmatprep.subr.mxu0 0.0
    %4102 = vmatpush1.msra.mxu0 0.0
    %4103 = vmatprep.subr.mxu0 0.0
    %4104 = vmatpush1.msra.mxu0 0.0
    %4105 = vmatprep.subr.mxu0 0.0
    %4106 = vmatpush1.msra.mxu0 0.0
    %4107 = vmatprep.subr.mxu0 0.0
    %4108 = vmatpush1.msra.mxu0 0.0
    %4109 = vmatprep.subr.mxu0 0.0
    %4110 = vmatpush1.msra.mxu0 0.0
    %4111 = vmatprep.subr.mxu0 0.0
    %4112 = vmatpush1.msra.mxu0 0.0
    %4113 = vmatprep.subr.mxu0 0.0
    %4114 = vmatpush1.msra.mxu0 0.0
    %4115 = vmatprep.subr.mxu0 0.0
    %4116 = vmatpush1.msra.mxu0 0.0
    %4117 = vmatprep.subr.mxu0 0.0
    %4118 = vmatpush1.msra.mxu0 0.0
    %4119 = vmatprep.subr.mxu0 0.0
    %4120 = vmatpush1.msra.mxu0 0.0
    %4121 = vmatprep.subr.mxu0 0.0
    %4122 = vmatpush1.msra.mxu0 0.0
    %4123 = vmatprep.subr.mxu0 0.0
    %4124 = vmatpush1.msra.mxu0 0.0
    %4125 = vmatprep.subr.mxu0 0.0
    %4126 = vmatpush1.msra.mxu0 0.0
    %4127 = vmatprep.subr.mxu0 0.0
    %4128 = vmatpush1.msra.mxu0 0.0
    %4129 = vmatprep.subr.mxu0 0.0
    %4130 = vmatpush1.msra.mxu0 0.0
    %4131 = vmatprep.subr.mxu0 0.0
    %4132 = vmatpush1.msra.mxu0 0.0
    %4133 = vmatprep.subr.mxu0 0.0
    %4134 = vmatpush1.msra.mxu0 0.0
    %4135 = vmatprep.subr.mxu0 0.0
    %4136 = vmatpush1.msra.mxu0 0.0
    %4137 = vmatprep.subr.mxu0 0.0
    %4138 = vmatpush1.msra.mxu0 0.0
    %4139 = vmatprep.subr.mxu0 0.0
    %4140 = vmatpush1.msra.mxu0 0.0
    %4141 = vmatprep.subr.mxu0 0.0
    %4142 = vmatpush1.msra.mxu0 0.0
    %4143 = vmatprep.subr.mxu0 0.0
    %4144 = vmatpush1.msra.mxu0 0.0
    %4145 = vmatprep.subr.mxu0 0.0
    %4146 = vmatpush1.msra.mxu0 0.0
    %4147 = vmatprep.mubr.f32.mxu0 0.0
    %4148 = vmatmul.mubr.f32.gmra.mrb[0].mxu0 %v4081
    %v4149 = vpop.f32.mrb[0].mxu0
    %v4150 = vadd.f32 0.0, %v4149
    %v4151 = vpop.f32.mrb[0].mxu0
    %4152 = vdwg.mxu0
    %v4153 = vadd.f32 %v777, %v4150
    %v4154 = vxor.u32 %v4077, 2147483648
    %v4155 = vmul.f32 %v4154, 1.442695
    %v4156 = vpow.pop %v4155
    %v4157 = vadd.f32 %v4156, 1.0
    %v4158 = vrcp.pop %v4157
    %v4159 = vmul.f32 1.0, %v4158
    %v4160 = vtanh.pop %v4077
    %v4161 = vmul.f32 %v4159, %v3999
    %4163 = vrot.lane.b32.xlu0 %v4160, 64
    %v4164 = vpop.permute.xlu0 %4163
    %v4166 = vmul.f32 %v4159, %v4164
    %4168 = vrot.lane.b32.xlu0 %v4166, 32
    %v4169 = vpop.permute.xlu0 %4168
    %v4171 = vadd.f32 %v4161, %v4169
    %v4172 = vxor.u32 %v4153, 2147483648
    %v4173 = vmul.f32 %v4172, 1.442695
    %v4174 = vpow.pop %v4173
    %v4175 = vadd.f32 %v4174, 1.0
    %v4176 = vrcp.pop %v4175
    %v4177 = vmul.f32 1.0, %v4176
    %v4178 = vtanh.pop %v4153
    %v4179 = vmul.f32 %v4177, %v4001
    %4181 = vrot.lane.b32.xlu0 %v4178, 64
    %v4182 = vpop.permute.xlu0 %4181
    %v4184 = vmul.f32 %v4177, %v4182
    %4186 = vrot.lane.b32.xlu0 %v4184, 32
    %v4187 = vpop.permute.xlu0 %4186
    %v4189 = vadd.f32 %v4179, %v4187
    %v4190 = vsel %vm989, %v4171, %v3999
    %v4191 = vsel %vm982, %v4189, %v4001
    %v4192 = vld [vmem:[%s9] sm:$0xff]
    %v4193 = vld [vmem:[%s9 + $0x8] sm:$0xff]
    %v4194 = vld [vmem:[%s9 + $0x10] sm:$0xff]
    %v4195 = vld [vmem:[%s9 + $0x18] sm:$0xff]
    %v4196 = vld [vmem:[%s9 + $0x20] sm:$0xff]
    %v4197 = vld [vmem:[%s9 + $0x28] sm:$0xff]
    %v4198 = vld [vmem:[%s9 + $0x30] sm:$0xff]
    %v4199 = vld [vmem:[%s9 + $0x38] sm:$0xff]
    %4201 = vrot.lane.b32.xlu0 %v4191, 96
    %v4202 = vpop.permute.xlu0 %4201
    %v4203 = vsel %vm522, %v4202, 0
    %4205 = vmatprep.subr.mxu0 0.0
    %4206 = vmatpush1.msra.mxu0 %v4196
    %4207 = vmatprep.subr.mxu0 0.0
    %4208 = vmatpush1.msra.mxu0 %v4197
    %4209 = vmatprep.subr.mxu0 0.0
    %4210 = vmatpush1.msra.mxu0 %v4198
    %4211 = vmatprep.subr.mxu0 0.0
    %4212 = vmatpush1.msra.mxu0 %v4199
    %4213 = vmatprep.subr.mxu0 0.0
    %4214 = vmatpush1.msra.mxu0 0.0
    %4215 = vmatprep.subr.mxu0 0.0
    %4216 = vmatpush1.msra.mxu0 0.0
    %4217 = vmatprep.subr.mxu0 0.0
    %4218 = vmatpush1.msra.mxu0 0.0
    %4219 = vmatprep.subr.mxu0 0.0
    %4220 = vmatpush1.msra.mxu0 0.0
    %4221 = vmatprep.subr.mxu0 0.0
    %4222 = vmatpush1.msra.mxu0 0.0
    %4223 = vmatprep.subr.mxu0 0.0
    %4224 = vmatpush1.msra.mxu0 0.0
    %4225 = vmatprep.subr.mxu0 0.0
    %4226 = vmatpush1.msra.mxu0 0.0
    %4227 = vmatprep.subr.mxu0 0.0
    %4228 = vmatpush1.msra.mxu0 0.0
    %4229 = vmatprep.subr.mxu0 0.0
    %4230 = vmatpush1.msra.mxu0 0.0
    %4231 = vmatprep.subr.mxu0 0.0
    %4232 = vmatpush1.msra.mxu0 0.0
    %4233 = vmatprep.subr.mxu0 0.0
    %4234 = vmatpush1.msra.mxu0 0.0
    %4235 = vmatprep.subr.mxu0 0.0
    %4236 = vmatpush1.msra.mxu0 0.0
    %4237 = vmatprep.subr.mxu0 0.0
    %4238 = vmatpush1.msra.mxu0 0.0
    %4239 = vmatprep.subr.mxu0 0.0
    %4240 = vmatpush1.msra.mxu0 0.0
    %4241 = vmatprep.subr.mxu0 0.0
    %4242 = vmatpush1.msra.mxu0 0.0
    %4243 = vmatprep.subr.mxu0 0.0
    %4244 = vmatpush1.msra.mxu0 0.0
    %4245 = vmatprep.subr.mxu0 0.0
    %4246 = vmatpush1.msra.mxu0 0.0
    %4247 = vmatprep.subr.mxu0 0.0
    %4248 = vmatpush1.msra.mxu0 0.0
    %4249 = vmatprep.subr.mxu0 0.0
    %4250 = vmatpush1.msra.mxu0 0.0
    %4251 = vmatprep.subr.mxu0 0.0
    %4252 = vmatpush1.msra.mxu0 0.0
    %4253 = vmatprep.subr.mxu0 0.0
    %4254 = vmatpush1.msra.mxu0 0.0
    %4255 = vmatprep.subr.mxu0 0.0
    %4256 = vmatpush1.msra.mxu0 0.0
    %4257 = vmatprep.subr.mxu0 0.0
    %4258 = vmatpush1.msra.mxu0 0.0
    %4259 = vmatprep.subr.mxu0 0.0
    %4260 = vmatpush1.msra.mxu0 0.0
    %4261 = vmatprep.subr.mxu0 0.0
    %4262 = vmatpush1.msra.mxu0 0.0
    %4263 = vmatprep.subr.mxu0 0.0
    %4264 = vmatpush1.msra.mxu0 0.0
    %4265 = vmatprep.subr.mxu0 0.0
    %4266 = vmatpush1.msra.mxu0 0.0
    %4267 = vmatprep.subr.mxu0 0.0
    %4268 = vmatpush1.msra.mxu0 0.0
    %4269 = vmatprep.mubr.f32.mxu0 0.0
    %4270 = vmatmul.mubr.f32.gmra.mrb[0].mxu0 %v4203
    %v4271 = vpop.f32.mrb[0].mxu0
    %v4272 = vadd.f32 0.0, %v4271
    %v4273 = vpop.f32.mrb[0].mxu0
    %4274 = vdwg.mxu0
    %4276 = vrot.lane.b32.xlu0 %v4190, 96
    %v4277 = vpop.permute.xlu0 %4276
    %v4278 = vsel %vm522, %v4277, 0
    %4280 = vmatprep.subr.mxu0 0.0
    %4281 = vmatpush1.msra.mxu0 %v4192
    %4282 = vmatprep.subr.mxu0 0.0
    %4283 = vmatpush1.msra.mxu0 %v4193
    %4284 = vmatprep.subr.mxu0 0.0
    %4285 = vmatpush1.msra.mxu0 %v4194
    %4286 = vmatprep.subr.mxu0 0.0
    %4287 = vmatpush1.msra.mxu0 %v4195
    %4288 = vmatprep.subr.mxu0 0.0
    %4289 = vmatpush1.msra.mxu0 0.0
    %4290 = vmatprep.subr.mxu0 0.0
    %4291 = vmatpush1.msra.mxu0 0.0
    %4292 = vmatprep.subr.mxu0 0.0
    %4293 = vmatpush1.msra.mxu0 0.0
    %4294 = vmatprep.subr.mxu0 0.0
    %4295 = vmatpush1.msra.mxu0 0.0
    %4296 = vmatprep.subr.mxu0 0.0
    %4297 = vmatpush1.msra.mxu0 0.0
    %4298 = vmatprep.subr.mxu0 0.0
    %4299 = vmatpush1.msra.mxu0 0.0
    %4300 = vmatprep.subr.mxu0 0.0
    %4301 = vmatpush1.msra.mxu0 0.0
    %4302 = vmatprep.subr.mxu0 0.0
    %4303 = vmatpush1.msra.mxu0 0.0
    %4304 = vmatprep.subr.mxu0 0.0
    %4305 = vmatpush1.msra.mxu0 0.0
    %4306 = vmatprep.subr.mxu0 0.0
    %4307 = vmatpush1.msra.mxu0 0.0
    %4308 = vmatprep.subr.mxu0 0.0
    %4309 = vmatpush1.msra.mxu0 0.0
    %4310 = vmatprep.subr.mxu0 0.0
    %4311 = vmatpush1.msra.mxu0 0.0
    %4312 = vmatprep.subr.mxu0 0.0
    %4313 = vmatpush1.msra.mxu0 0.0
    %4314 = vmatprep.subr.mxu0 0.0
    %4315 = vmatpush1.msra.mxu0 0.0
    %4316 = vmatprep.subr.mxu0 0.0
    %4317 = vmatpush1.msra.mxu0 0.0
    %4318 = vmatprep.subr.mxu0 0.0
    %4319 = vmatpush1.msra.mxu0 0.0
    %4320 = vmatprep.subr.mxu0 0.0
    %4321 = vmatpush1.msra.mxu0 0.0
    %4322 = vmatprep.subr.mxu0 0.0
    %4323 = vmatpush1.msra.mxu0 0.0
    %4324 = vmatprep.subr.mxu0 0.0
    %4325 = vmatpush1.msra.mxu0 0.0
    %4326 = vmatprep.subr.mxu0 0.0
    %4327 = vmatpush1.msra.mxu0 0.0
    %4328 = vmatprep.subr.mxu0 0.0
    %4329 = vmatpush1.msra.mxu0 0.0
    %4330 = vmatprep.subr.mxu0 0.0
    %4331 = vmatpush1.msra.mxu0 0.0
    %4332 = vmatprep.subr.mxu0 0.0
    %4333 = vmatpush1.msra.mxu0 0.0
    %4334 = vmatprep.subr.mxu0 0.0
    %4335 = vmatpush1.msra.mxu0 0.0
    %4336 = vmatprep.subr.mxu0 0.0
    %4337 = vmatpush1.msra.mxu0 0.0
    %4338 = vmatprep.subr.mxu0 0.0
    %4339 = vmatpush1.msra.mxu0 0.0
    %4340 = vmatprep.subr.mxu0 0.0
    %4341 = vmatpush1.msra.mxu0 0.0
    %4342 = vmatprep.subr.mxu0 0.0
    %4343 = vmatpush1.msra.mxu0 0.0
    %4344 = vmatprep.mubr.f32.mxu0 0.0
    %4345 = vmatmul.mubr.f32.gmra.mrb[0].mxu0 %v4278
    %v4346 = vpop.f32.mrb[0].mxu0
    %v4347 = vadd.f32 %v4272, %v4346
    %v4348 = vpop.f32.mrb[0].mxu0
    %4349 = vdwg.mxu0
    %v4350 = vld [vmem:[%s10] sm:$0x1]
    %v4352 = vlaneseq
    %v4353 = vshrl.u32 %v4352, 7
    %v4354 = vsub.s32 0, %v4353
    %v4355 = vrot.slane %v4350, %v4354
    %v4357 = vadd.f32 %v4347, %v4355
    %v4358 = vmax.f32 %v4357, 0.0
    %4359 = vst.msk [vmem:[#allocation3] sm:$0xff] %vm522, %v4358
    // Predicated region
    $region46: #{tpu_custom_call.1} parent=1 // pred_check
      _
    $region47: #{tpu_custom_call.1} parent=1 // pred_check_branch
      %4361 = sbr.rel (0) target = $region49
    $region48: #{tpu_custom_call.1} parent=1 // pred_region
      %s4363 = ssub.s32 128, 128
      %4364 = vsyncadd [#allocation4], %s4363
      %s4366 = sshll.u32 [#allocation3], 4
      %s4367 = int_to_ptr.vmem [resolvable:$true] %s4366
      %4369 = dma.vmem_to_hbm [thread:$0]  %s4367, 128, %s11, [#allocation4]
    $region49: #{tpu_custom_call.1} parent=1 // pred_fallthru
      _
    // Predicated region
    $region50: #{tpu_custom_call.1} parent=1 // pred_check
      _
    $region51: #{tpu_custom_call.1} parent=1 // pred_check_branch
      %4371 = sbr.rel (0) target = $region53
    $region52: #{tpu_custom_call.1} parent=1 // pred_region
      %4372 = dma.done [#allocation4], 128
    $region53: #{tpu_custom_call.1} parent=1 // pred_fallthru
      _
    %4373 = vsyncpa [#allocation4], 1

</llo_original>
